<compile_context>
chip_gen: v6e
topology: v6e:2x2x1
jax: 0.10.0
libtpu: 0.0.40
codegen_flags: <defaults>
</compile_context>

<pallas_src>
import functools
import math

import jax
import jax.numpy as jnp
from jax import lax
from jax.experimental import pallas as pl
from jax.experimental.pallas import tpu as pltpu


# ----------------------------------------------------------------------------
# Tiling helpers
# ----------------------------------------------------------------------------
def _pick_tile(n, target, mult):
    """Largest t <= target with n % t == 0 and t % mult == 0, else full n."""
    if n <= target:
        return n
    for t in range(min(target, n), 0, -1):
        if n % t == 0 and t % mult == 0:
            return t
    return n  # full-extent block is always a legal BlockSpec dim


_VMEM_LIMIT = 32 * 1024 * 1024  # fits v5e/v6e; leaves headroom below v7x's 64 MiB


# ----------------------------------------------------------------------------
# Kernel 1: xw = x @ Wg + bg   (per branch, row tiled; both grid axes parallel)
# ----------------------------------------------------------------------------
def _xw_kernel(x_ref, w_ref, b_ref, o_ref):
    xw = jnp.dot(x_ref[...], w_ref[...], preferred_element_type=jnp.float32)
    o_ref[...] = (xw + b_ref[...]).astype(o_ref.dtype)


# ----------------------------------------------------------------------------
# Kernel 2: fused HGCN conv + leaky_relu(0.25) + projection + l2-normalize
#   grid = (branch, row tile i, reduction tile k); k is "arbitrary"
# ----------------------------------------------------------------------------
def _branch_kernel(g_ref, xw_ref, w1_ref, b1_ref, w2_ref, b2_ref,
                   z_ref, n_ref, acc_ref):
    k = pl.program_id(2)

    @pl.when(k == 0)
    def _():
        acc_ref[...] = jnp.zeros_like(acc_ref)

    # G[i, k] @ (X @ Wg + bg)[k]  -- bf16 MXU operands, f32 accumulation.
    acc_ref[...] += jnp.dot(g_ref[...], xw_ref[...],
                            preferred_element_type=jnp.float32)

    @pl.when(k == pl.num_programs(2) - 1)
    def _():
        z = acc_ref[...]
        z = jnp.where(z >= 0.0, z, 0.25 * z)          # leaky_relu(0.25), f32
        z_ref[...] = z.astype(z_ref.dtype)

        # projection: fc2(elu(fc1(z)))  -- bf16 only on MXU inputs
        a = jnp.dot(z.astype(jnp.bfloat16), w1_ref[...],
                    preferred_element_type=jnp.float32) + b1_ref[...]
        a = jnp.where(a > 0.0, a, jnp.exp(jnp.minimum(a, 0.0)) - 1.0)  # ELU
        h = jnp.dot(a.astype(jnp.bfloat16), w2_ref[...],
                    preferred_element_type=jnp.float32) + b2_ref[...]

        # F.normalize(h) per row; rsqrt -> EUP slot, clamp matches eps=1e-12.
        ssq = jnp.sum(h * h, axis=1, keepdims=True)
        n = h * lax.rsqrt(jnp.maximum(ssq, 1e-24))
        n_ref[...] = n.astype(n_ref.dtype)


# ----------------------------------------------------------------------------
# Kernel 3: contrastive loss over row slabs of the normalized projections.
#   - no NxN iota/eye mask: refl diag == exp(1/tau) analytically (rows are
#     L2-normalized); between diag is an elementwise per-row dot of n1, n2.
#   - dot_general contracts the feature dims directly (no .T relayout).
#   - scalar accumulated across row tiles in SMEM scratch ("arbitrary" axis),
#     written to the (1,1) SMEM output at the last grid step.
# ----------------------------------------------------------------------------
def _loss_kernel(n1t_ref, n2t_ref, n1_ref, n2_ref, o_ref, acc_sc,
                 *, inv_tau, alpha, e_self):
    i = pl.program_id(0)

    @pl.when(i == 0)
    def _():
        acc_sc[0] = jnp.float32(0.0)

    dn = (((1,), (1,)), ((), ()))      # contract feature dim of both operands
    n1t = n1t_ref[...]
    n2t = n2t_ref[...]

    s11 = lax.dot_general(n1t, n1_ref[...], dn, preferred_element_type=jnp.float32)
    s12 = lax.dot_general(n1t, n2_ref[...], dn, preferred_element_type=jnp.float32)
    s22 = lax.dot_general(n2t, n2_ref[...], dn, preferred_element_type=jnp.float32)
    s21 = lax.dot_general(n2t, n1_ref[...], dn, preferred_element_type=jnp.float32)

    e11 = jnp.sum(jnp.exp(s11 * inv_tau), axis=1, keepdims=True)
    e12 = jnp.sum(jnp.exp(s12 * inv_tau), axis=1, keepdims=True)
    e22 = jnp.sum(jnp.exp(s22 * inv_tau), axis=1, keepdims=True)
    e21 = jnp.sum(jnp.exp(s21 * inv_tau), axis=1, keepdims=True)

    # between_sim.diag() in log-space; shared by both loss directions.
    d = jnp.sum(n1t.astype(jnp.float32) * n2t.astype(jnp.float32),
                axis=1, keepdims=True) * inv_tau

    # -log(diag / (refl_sum + betw_sum - refl_diag)) = log(denom) - d
    loss1 = jnp.log(e11 + e12 - e_self) - d
    loss2 = jnp.log(e22 + e21 - e_self) - d

    # torch: loss.sum(dim=-1).mean() on a 1-D (N,) tensor == plain sum over N.
    acc_sc[0] += alpha * jnp.sum(loss1) + (1.0 - alpha) * jnp.sum(loss2)

    @pl.when(i == pl.num_programs(0) - 1)
    def _():
        o_ref[0, 0] = acc_sc[0]


# ----------------------------------------------------------------------------
# Forward wrapper
# ----------------------------------------------------------------------------
def cl_hgcn_forward(params, x1, adj1, x2, adj2, tau=0.5, alpha=0.5,
                    block_m=256, block_k=512):
    N, D = x1.shape
    H = params["w_g1"].shape[1]
    P = params["w_fc1"].shape[1]
    f32, bf16 = jnp.float32, jnp.bfloat16

    # Stack the two branches on a leading "parallel" axis; cast MXU operands.
    x_s = jnp.stack([x1, x2]).astype(bf16)                               # (2,N,D)
    g_s = jnp.stack([adj1, adj2]).astype(bf16)                           # (2,N,N)
    wg_s = jnp.stack([params["w_g1"], params["w_g2"]]).astype(bf16)      # (2,D,H)
    bg_s = jnp.stack([params["b_g1"], params["b_g2"]]).reshape(2, 1, H).astype(f32)
    w1 = params["w_fc1"].astype(bf16)                                    # (H,P)
    b1 = params["b_fc1"].reshape(1, P).astype(f32)
    w2 = params["w_fc2"].astype(bf16)                                    # (P,H)
    b2 = params["b_fc2"].reshape(1, H).astype(f32)

    tm = _pick_tile(N, block_m, 8)     # row tile (sublane axis)
    tk = _pick_tile(N, block_k, 128)   # reduction tile (lane axis of G blocks)
    n_i, n_k = N // tm, N // tk

    # ---- kernel 1: xw = x @ Wg + bg (both branches) --------------------------
    xw = pl.pallas_call(
        _xw_kernel,
        out_shape=jax.ShapeDtypeStruct((2, N, H), bf16),
        grid=(2, n_i),
        in_specs=[
            pl.BlockSpec((None, tm, D), lambda b, i: (b, i, 0)),
            pl.BlockSpec((None, D, H), lambda b, i: (b, 0, 0)),
            pl.BlockSpec((None, 1, H), lambda b, i: (b, 0, 0)),
        ],
        out_specs=pl.BlockSpec((None, tm, H), lambda b, i: (b, i, 0)),
        compiler_params=pltpu.CompilerParams(
            dimension_semantics=("parallel", "parallel"),
            vmem_limit_bytes=_VMEM_LIMIT),
    )(x_s, wg_s, bg_s)

    # ---- kernel 2: conv + act + projection + normalize (fused) ---------------
    z_s, n_s = pl.pallas_call(
        _branch_kernel,
        out_shape=(jax.ShapeDtypeStruct((2, N, H), f32),
                   jax.ShapeDtypeStruct((2, N, H), bf16)),
        grid=(2, n_i, n_k),
        in_specs=[
            pl.BlockSpec((None, tm, tk), lambda b, i, k: (b, i, k)),   # G
            pl.BlockSpec((None, tk, H), lambda b, i, k: (b, k, 0)),    # xw
            pl.BlockSpec((H, P), lambda b, i, k: (0, 0)),              # w_fc1
            pl.BlockSpec((1, P), lambda b, i, k: (0, 0)),              # b_fc1
            pl.BlockSpec((P, H), lambda b, i, k: (0, 0)),              # w_fc2
            pl.BlockSpec((1, H), lambda b, i, k: (0, 0)),              # b_fc2
        ],
        out_specs=(
            pl.BlockSpec((None, tm, H), lambda b, i, k: (b, i, 0)),    # z
            pl.BlockSpec((None, tm, H), lambda b, i, k: (b, i, 0)),    # normalized h
        ),
        scratch_shapes=[pltpu.VMEM((tm, H), f32)],
        compiler_params=pltpu.CompilerParams(
            dimension_semantics=("parallel", "parallel", "arbitrary"),
            vmem_limit_bytes=_VMEM_LIMIT),
    )(g_s, xw, w1, b1, w2, b2)

    # ---- kernel 3: contrastive loss (row-slab tiled) --------------------------
    kern = functools.partial(_loss_kernel,
                             inv_tau=float(1.0 / tau),
                             alpha=float(alpha),
                             e_self=float(math.exp(1.0 / tau)))
    # TODO(synk): the "between" similarity of the reverse direction is the
    # transpose of the forward one; reusing it would need a cross-tile column
    # sum accumulator and is not done here (4 matmuls per row tile instead of 3).
    loss = pl.pallas_call(
        kern,
        out_shape=jax.ShapeDtypeStruct((1, 1), jnp.float32),
        grid=(n_i,),
        in_specs=[
            pl.BlockSpec((None, tm, H), lambda i: (0, i, 0)),   # n1 row tile
            pl.BlockSpec((None, tm, H), lambda i: (1, i, 0)),   # n2 row tile
            pl.BlockSpec((None, N, H), lambda i: (0, 0, 0)),    # n1 full (columns)
            pl.BlockSpec((None, N, H), lambda i: (1, 0, 0)),    # n2 full (columns)
        ],
        out_specs=pl.BlockSpec((1, 1), lambda i: (0, 0),
                               memory_space=pltpu.MemorySpace.SMEM),
        scratch_shapes=[pltpu.SMEM((1,), jnp.float32)],
        compiler_params=pltpu.CompilerParams(
            dimension_semantics=("arbitrary",),
            vmem_limit_bytes=_VMEM_LIMIT),
    )(n_s, n_s, n_s, n_s)[0, 0]

    return z_s[0], z_s[1], loss


# ----------------------------------------------------------------------------
# Pure-JAX f32 reference (for correctness sanity check)
# ----------------------------------------------------------------------------
def _ref_forward(params, x1, adj1, x2, adj2, tau=0.5, alpha=0.5):
    def hgcn(x, w, b, g):
        z = g @ (x @ w + b)
        return jnp.where(z >= 0.0, z, 0.25 * z)

    def proj(z):
        a = z @ params["w_fc1"] + params["b_fc1"]
        a = jnp.where(a > 0.0, a, jnp.exp(jnp.minimum(a, 0.0)) - 1.0)
        return a @ params["w_fc2"] + params["b_fc2"]

    def norm(z):
        return z / jnp.maximum(jnp.linalg.norm(z, axis=1, keepdims=True), 1e-12)

    def sim(a, b):
        an, bn = norm(a), norm(b)
        refl = jnp.exp(an @ an.T / tau)
        betw = jnp.exp(an @ bn.T / tau)
        per = -jnp.log(jnp.diag(betw) /
                       (refl.sum(1) + betw.sum(1) - jnp.diag(refl)))
        return per.sum()   # torch: .sum(dim=-1).mean() on a 1-D tensor == sum

    z1 = hgcn(x1, params["w_g1"], params["b_g1"], adj1)
    z2 = hgcn(x2, params["w_g2"], params["b_g2"], adj2)
    h1, h2 = proj(z1), proj(z2)
    loss = alpha * sim(h1, h2) + (1.0 - alpha) * sim(h2, h1)
    return z1, z2, loss


# ----------------------------------------------------------------------------
# Deterministic parameter init (mirrors the module's uniform(-stdv, stdv) init)
# ----------------------------------------------------------------------------
def init_params(key, d_in, hidden, proj):
    ks = jax.random.split(key, 8)
    stdv_g = 1.0 / math.sqrt(hidden)
    stdv_1 = 1.0 / math.sqrt(hidden)
    stdv_2 = 1.0 / math.sqrt(proj)
    u = lambda k, shape, s: jax.random.uniform(k, shape, jnp.float32, -s, s)
    return {
        "w_g1": u(ks[0], (d_in, hidden), stdv_g),
        "b_g1": u(ks[1], (hidden,), stdv_g),
        "w_g2": u(ks[2], (d_in, hidden), stdv_g),
        "b_g2": u(ks[3], (hidden,), stdv_g),
        "w_fc1": u(ks[4], (hidden, proj), stdv_1),   # torch fc1.weight.T
        "b_fc1": u(ks[5], (proj,), stdv_1),
        "w_fc2": u(ks[6], (proj, hidden), stdv_2),   # torch fc2.weight.T
        "b_fc2": u(ks[7], (hidden,), stdv_2),
    }


if __name__ == "__main__":
    # N nodes, D_in input features, hidden = hid_list[0] = hid_list[-1],
    # proj = num_proj_hidden.  Lane-dense (multiples of 128) and small.
    N, D_IN, HID, PROJ = 256, 128, 128, 128

    key = jax.random.PRNGKey(0)
    kx1, kx2, ka1, ka2, kp = jax.random.split(key, 5)
    x1 = jax.random.normal(kx1, (N, D_IN), jnp.float32)
    x2 = jax.random.normal(kx2, (N, D_IN), jnp.float32)
    adj1 = jax.random.uniform(ka1, (N, N), jnp.float32)
    adj2 = jax.random.uniform(ka2, (N, N), jnp.float32)
    params = init_params(kp, D_IN, HID, PROJ)

    # Small blocks so the demo actually exercises the multi-tile grid and the
    # accumulator init/finalize path.
    fwd = jax.jit(functools.partial(cl_hgcn_forward, tau=0.5, alpha=0.5,
                                    block_m=128, block_k=128))
    z1, z2, loss = fwd(params, x1, adj1, x2, adj2)
    jax.block_until_ready((z1, z2, loss))

    # sanity check against a pure-JAX f32 reference (kernel uses bf16 MXU ops)
    rz1, rz2, rloss = _ref_forward(params, x1, adj1, x2, adj2,
                                   tau=0.5, alpha=0.5)
    assert jnp.allclose(z1, rz1, rtol=5e-2, atol=1e-1)
    assert jnp.allclose(z2, rz2, rtol=5e-2, atol=1e-1)
    assert jnp.allclose(loss, rloss, rtol=2e-2, atol=1.0)
    assert bool(jnp.isfinite(loss))

    print("KERNEL_OK")
</pallas_src>

<mosaic_0001>
module attributes {stable_mosaic.version = 11 : i64} {
  func.func @_xw_kernel(%arg0: i32, %arg1: i32, %arg2: memref<1x128x128xbf16, #tpu.memory_space<vmem>>, %arg3: memref<1x128x128xbf16, #tpu.memory_space<vmem>>, %arg4: memref<1x1x128xf32, #tpu.memory_space<vmem>>, %arg5: memref<1x128x128xbf16, #tpu.memory_space<vmem>>) attributes {dimension_semantics = [#tpu.dimension_semantics<parallel>, #tpu.dimension_semantics<parallel>], iteration_bounds = array<i64: 2, 2>, scalar_prefetch = 0 : i64, scratch_operands = 0 : i64, tpu.core_type = #tpu.core_type<tc>, window_params = [{transform_indices = @transform_0, window_bounds = array<i64: 1, 128, 128>}, {transform_indices = @transform_1, window_bounds = array<i64: 1, 128, 128>}, {transform_indices = @transform_2, window_bounds = array<i64: 1, 1, 128>}, {transform_indices = @transform_3, window_bounds = array<i64: 1, 128, 128>}]} {
    %c0 = arith.constant 0 : index
    %c0_0 = arith.constant 0 : index
    %c0_1 = arith.constant 0 : index
    %0 = vector.load %arg2[%c0, %c0_0, %c0_1] : memref<1x128x128xbf16, #tpu.memory_space<vmem>>, vector<1x128x128xbf16>
    %1 = vector.shape_cast %0 : vector<1x128x128xbf16> to vector<128x128xbf16>
    %c0_2 = arith.constant 0 : index
    %c0_3 = arith.constant 0 : index
    %c0_4 = arith.constant 0 : index
    %2 = vector.load %arg3[%c0_2, %c0_3, %c0_4] : memref<1x128x128xbf16, #tpu.memory_space<vmem>>, vector<1x128x128xbf16>
    %3 = vector.shape_cast %2 : vector<1x128x128xbf16> to vector<128x128xbf16>
    %cst = arith.constant dense<0.000000e+00> : vector<128x128xf32>
    %4 = tpu.matmul %1, %3, %cst {dimension_numbers = #tpu.dot_dimension_numbers<[1], [0], [0], [1], [0, 0, 1, 1], [], []>} : vector<128x128xbf16>, vector<128x128xbf16>, vector<128x128xf32> -> vector<128x128xf32>
    %c0_5 = arith.constant 0 : index
    %c0_6 = arith.constant 0 : index
    %c0_7 = arith.constant 0 : index
    %5 = vector.load %arg4[%c0_5, %c0_6, %c0_7] : memref<1x1x128xf32, #tpu.memory_space<vmem>>, vector<1x1x128xf32>
    %6 = vector.shape_cast %5 : vector<1x1x128xf32> to vector<1x128xf32>
    %7 = vector.broadcast %6 : vector<1x128xf32> to vector<128x128xf32>
    %8 = arith.addf %4, %7 : vector<128x128xf32>
    %9 = arith.truncf %8 : vector<128x128xf32> to vector<128x128xbf16>
    %c0_8 = arith.constant 0 : index
    %c0_9 = arith.constant 0 : index
    %c0_10 = arith.constant 0 : index
    %10 = vector.load %arg5[%c0_8, %c0_9, %c0_10] : memref<1x128x128xbf16, #tpu.memory_space<vmem>>, vector<1x128x128xbf16>
    %11 = vector.shape_cast %10 : vector<1x128x128xbf16> to vector<128x128xbf16>
    %12 = vector.shape_cast %9 : vector<128x128xbf16> to vector<1x128x128xbf16>
    tpu.vector_store %arg5[%c0_8, %c0_9, %c0_10], %12 {strides = array<i32>} : memref<1x128x128xbf16, #tpu.memory_space<vmem>>, vector<1x128x128xbf16>,
    return
  }
  func.func @transform_0(%arg0: i32, %arg1: i32) -> (i32, i32, i32) {
    %c0_i32 = arith.constant 0 : i32
    %c0_i32_0 = arith.constant 0 : i32
    return %arg0, %arg1, %c0_i32 : i32, i32, i32
  }
  func.func @transform_1(%arg0: i32, %arg1: i32) -> (i32, i32, i32) {
    %c0_i32 = arith.constant 0 : i32
    %c0_i32_0 = arith.constant 0 : i32
    %c0_i32_1 = arith.constant 0 : i32
    return %arg0, %c0_i32, %c0_i32_0 : i32, i32, i32
  }
  func.func @transform_2(%arg0: i32, %arg1: i32) -> (i32, i32, i32) {
    %c0_i32 = arith.constant 0 : i32
    %c0_i32_0 = arith.constant 0 : i32
    %c0_i32_1 = arith.constant 0 : i32
    return %arg0, %c0_i32, %c0_i32_0 : i32, i32, i32
  }
  func.func @transform_3(%arg0: i32, %arg1: i32) -> (i32, i32, i32) {
    %c0_i32 = arith.constant 0 : i32
    %c0_i32_0 = arith.constant 0 : i32
    return %arg0, %arg1, %c0_i32 : i32, i32, i32
  }
}

module attributes {stable_mosaic.version = 11 : i64} {
  func.func @_branch_kernel(%arg0: i32, %arg1: i32, %arg2: i32, %arg3: memref<1x128x128xbf16, #tpu.memory_space<vmem>>, %arg4: memref<1x128x128xbf16, #tpu.memory_space<vmem>>, %arg5: memref<128x128xbf16, #tpu.memory_space<vmem>>, %arg6: memref<1x128xf32, #tpu.memory_space<vmem>>, %arg7: memref<128x128xbf16, #tpu.memory_space<vmem>>, %arg8: memref<1x128xf32, #tpu.memory_space<vmem>>, %arg9: memref<1x128x128xf32, #tpu.memory_space<vmem>>, %arg10: memref<1x128x128xbf16, #tpu.memory_space<vmem>>, %arg11: memref<128x128xf32, #tpu.memory_space<vmem>>) attributes {dimension_semantics = [#tpu.dimension_semantics<parallel>, #tpu.dimension_semantics<parallel>, #tpu.dimension_semantics<arbitrary>], iteration_bounds = array<i64: 2, 2, 2>, scalar_prefetch = 0 : i64, scratch_operands = 1 : i64, tpu.core_type = #tpu.core_type<tc>, window_params = [{transform_indices = @transform_0, window_bounds = array<i64: 1, 128, 128>}, {transform_indices = @transform_1, window_bounds = array<i64: 1, 128, 128>}, {pipeline_mode = #tpu.pipeline_mode<synchronous>, transform_indices = @transform_2, window_bounds = array<i64: 128, 128>}, {pipeline_mode = #tpu.pipeline_mode<synchronous>, transform_indices = @transform_3, window_bounds = array<i64: 1, 128>}, {pipeline_mode = #tpu.pipeline_mode<synchronous>, transform_indices = @transform_4, window_bounds = array<i64: 128, 128>}, {pipeline_mode = #tpu.pipeline_mode<synchronous>, transform_indices = @transform_5, window_bounds = array<i64: 1, 128>}, {transform_indices = @transform_6, window_bounds = array<i64: 1, 128, 128>}, {transform_indices = @transform_7, window_bounds = array<i64: 1, 128, 128>}]} {
    %c0_i32 = arith.constant 0 : i32
    %0 = arith.cmpi eq, %arg2, %c0_i32 : i32
    %1 = arith.extui %0 : i1 to i32
    %c0_i32_0 = arith.constant 0 : i32
    %2 = arith.cmpi ne, %1, %c0_i32_0 : i32
    scf.if %2 {
      %cst_11 = arith.constant 0.000000e+00 : f32
      %14 = vector.broadcast %cst_11 : f32 to vector<128x128xf32>
      %c0_12 = arith.constant 0 : index
      %c0_13 = arith.constant 0 : index
      %15 = vector.load %arg11[%c0_12, %c0_13] : memref<128x128xf32, #tpu.memory_space<vmem>>, vector<128x128xf32>
      tpu.vector_store %arg11[%c0_12, %c0_13], %14 {strides = array<i32>} : memref<128x128xf32, #tpu.memory_space<vmem>>, vector<128x128xf32>,
    } else {
    }
    %c0 = arith.constant 0 : index
    %c0_1 = arith.constant 0 : index
    %3 = vector.load %arg11[%c0, %c0_1] : memref<128x128xf32, #tpu.memory_space<vmem>>, vector<128x128xf32>
    %c0_2 = arith.constant 0 : index
    %c0_3 = arith.constant 0 : index
    %c0_4 = arith.constant 0 : index
    %4 = vector.load %arg3[%c0_2, %c0_3, %c0_4] : memref<1x128x128xbf16, #tpu.memory_space<vmem>>, vector<1x128x128xbf16>
    %5 = vector.shape_cast %4 : vector<1x128x128xbf16> to vector<128x128xbf16>
    %c0_5 = arith.constant 0 : index
    %c0_6 = arith.constant 0 : index
    %c0_7 = arith.constant 0 : index
    %6 = vector.load %arg4[%c0_5, %c0_6, %c0_7] : memref<1x128x128xbf16, #tpu.memory_space<vmem>>, vector<1x128x128xbf16>
    %7 = vector.shape_cast %6 : vector<1x128x128xbf16> to vector<128x128xbf16>
    %cst = arith.constant dense<0.000000e+00> : vector<128x128xf32>
    %8 = tpu.matmul %5, %7, %cst {dimension_numbers = #tpu.dot_dimension_numbers<[1], [0], [0], [1], [0, 0, 1, 1], [], []>} : vector<128x128xbf16>, vector<128x128xbf16>, vector<128x128xf32> -> vector<128x128xf32>
    %9 = arith.addf %3, %8 : vector<128x128xf32>
    %c0_8 = arith.constant 0 : index
    %c0_9 = arith.constant 0 : index
    %10 = vector.load %arg11[%c0_8, %c0_9] : memref<128x128xf32, #tpu.memory_space<vmem>>, vector<128x128xf32>
    tpu.vector_store %arg11[%c0_8, %c0_9], %9 {strides = array<i32>} : memref<128x128xf32, #tpu.memory_space<vmem>>, vector<128x128xf32>,
    %c1_i32 = arith.constant 1 : i32
    %11 = arith.cmpi eq, %arg2, %c1_i32 : i32
    %12 = arith.extui %11 : i1 to i32
    %c0_i32_10 = arith.constant 0 : i32
    %13 = arith.cmpi ne, %12, %c0_i32_10 : i32
    scf.if %13 {
      %c0_11 = arith.constant 0 : index
      %c0_12 = arith.constant 0 : index
      %14 = vector.load %arg11[%c0_11, %c0_12] : memref<128x128xf32, #tpu.memory_space<vmem>>, vector<128x128xf32>
      %cst_13 = arith.constant 0.000000e+00 : f32
      %15 = vector.broadcast %cst_13 : f32 to vector<128x128xf32>
      %16 = arith.cmpf oge, %14, %15 : vector<128x128xf32>
      %cst_14 = arith.constant 2.500000e-01 : f32
      %17 = vector.broadcast %cst_14 : f32 to vector<128x128xf32>
      %18 = arith.mulf %17, %14 : vector<128x128xf32>
      %19 = arith.select %16, %14, %18 : vector<128x128xi1>, vector<128x128xf32>
      %c0_15 = arith.constant 0 : index
      %c0_16 = arith.constant 0 : index
      %c0_17 = arith.constant 0 : index
      %20 = vector.load %arg9[%c0_15, %c0_16, %c0_17] : memref<1x128x128xf32, #tpu.memory_space<vmem>>, vector<1x128x128xf32>
      %21 = vector.shape_cast %20 : vector<1x128x128xf32> to vector<128x128xf32>
      %22 = vector.shape_cast %19 : vector<128x128xf32> to vector<1x128x128xf32>
      tpu.vector_store %arg9[%c0_15, %c0_16, %c0_17], %22 {strides = array<i32>} : memref<1x128x128xf32, #tpu.memory_space<vmem>>, vector<1x128x128xf32>,
      %23 = arith.truncf %19 : vector<128x128xf32> to vector<128x128xbf16>
      %c0_18 = arith.constant 0 : index
      %c0_19 = arith.constant 0 : index
      %24 = vector.load %arg5[%c0_18, %c0_19] : memref<128x128xbf16, #tpu.memory_space<vmem>>, vector<128x128xbf16>
      %cst_20 = arith.constant dense<0.000000e+00> : vector<128x128xf32>
      %25 = tpu.matmul %23, %24, %cst_20 {dimension_numbers = #tpu.dot_dimension_numbers<[1], [0], [0], [1], [0, 0, 1, 1], [], []>} : vector<128x128xbf16>, vector<128x128xbf16>, vector<128x128xf32> -> vector<128x128xf32>
      %c0_21 = arith.constant 0 : index
      %c0_22 = arith.constant 0 : index
      %26 = vector.load %arg6[%c0_21, %c0_22] : memref<1x128xf32, #tpu.memory_space<vmem>>, vector<1x128xf32>
      %27 = vector.broadcast %26 : vector<1x128xf32> to vector<128x128xf32>
      %28 = arith.addf %25, %27 : vector<128x128xf32>
      %cst_23 = arith.constant 0.000000e+00 : f32
      %29 = vector.broadcast %cst_23 : f32 to vector<128x128xf32>
      %30 = arith.cmpf ogt, %28, %29 : vector<128x128xf32>
      %cst_24 = arith.constant 0.000000e+00 : f32
      %31 = vector.broadcast %cst_24 : f32 to vector<128x128xf32>
      %32 = arith.minimumf %28, %31 : vector<128x128xf32>
      %33 = math.exp %32 : vector<128x128xf32>
      %cst_25 = arith.constant 1.000000e+00 : f32
      %34 = vector.broadcast %cst_25 : f32 to vector<128x128xf32>
      %35 = arith.subf %33, %34 : vector<128x128xf32>
      %36 = arith.select %30, %28, %35 : vector<128x128xi1>, vector<128x128xf32>
      %37 = arith.truncf %36 : vector<128x128xf32> to vector<128x128xbf16>
      %c0_26 = arith.constant 0 : index
      %c0_27 = arith.constant 0 : index
      %38 = vector.load %arg7[%c0_26, %c0_27] : memref<128x128xbf16, #tpu.memory_space<vmem>>, vector<128x128xbf16>
      %cst_28 = arith.constant dense<0.000000e+00> : vector<128x128xf32>
      %39 = tpu.matmul %37, %38, %cst_28 {dimension_numbers = #tpu.dot_dimension_numbers<[1], [0], [0], [1], [0, 0, 1, 1], [], []>} : vector<128x128xbf16>, vector<128x128xbf16>, vector<128x128xf32> -> vector<128x128xf32>
      %c0_29 = arith.constant 0 : index
      %c0_30 = arith.constant 0 : index
      %40 = vector.load %arg8[%c0_29, %c0_30] : memref<1x128xf32, #tpu.memory_space<vmem>>, vector<1x128xf32>
      %41 = vector.broadcast %40 : vector<1x128xf32> to vector<128x128xf32>
      %42 = arith.addf %39, %41 : vector<128x128xf32>
      %43 = arith.mulf %42, %42 : vector<128x128xf32>
      %cst_31 = arith.constant dense<0.000000e+00> : vector<128xf32>
      %44 = vector.multi_reduction <add>, %43, %cst_31 [1] : vector<128x128xf32> to vector<128xf32>
      %45 = vector.shape_cast %44 : vector<128xf32> to vector<128x1xf32>
      %cst_32 = arith.constant 1.000000e-24 : f32
      %46 = vector.broadcast %cst_32 : f32 to vector<128x1xf32>
      %47 = arith.maximumf %45, %46 : vector<128x1xf32>
      %48 = math.rsqrt %47 : vector<128x1xf32>
      %49 = vector.broadcast %48 : vector<128x1xf32> to vector<128x128xf32>
      %50 = arith.mulf %42, %49 : vector<128x128xf32>
      %51 = arith.truncf %50 : vector<128x128xf32> to vector<128x128xbf16>
      %c0_33 = arith.constant 0 : index
      %c0_34 = arith.constant 0 : index
      %c0_35 = arith.constant 0 : index
      %52 = vector.load %arg10[%c0_33, %c0_34, %c0_35] : memref<1x128x128xbf16, #tpu.memory_space<vmem>>, vector<1x128x128xbf16>
      %53 = vector.shape_cast %52 : vector<1x128x128xbf16> to vector<128x128xbf16>
      %54 = vector.shape_cast %51 : vector<128x128xbf16> to vector<1x128x128xbf16>
      tpu.vector_store %arg10[%c0_33, %c0_34, %c0_35], %54 {strides = array<i32>} : memref<1x128x128xbf16, #tpu.memory_space<vmem>>, vector<1x128x128xbf16>,
    } else {
    }
    return
  }
  func.func @transform_0(%arg0: i32, %arg1: i32, %arg2: i32) -> (i32, i32, i32) {
    %c0_i32 = arith.constant 0 : i32
    return %arg0, %arg1, %arg2 : i32, i32, i32
  }
  func.func @transform_1(%arg0: i32, %arg1: i32, %arg2: i32) -> (i32, i32, i32) {
    %c0_i32 = arith.constant 0 : i32
    %c0_i32_0 = arith.constant 0 : i32
    return %arg0, %arg2, %c0_i32 : i32, i32, i32
  }
  func.func @transform_2(%arg0: i32, %arg1: i32, %arg2: i32) -> (i32, i32) {
    %c0_i32 = arith.constant 0 : i32
    %c0_i32_0 = arith.constant 0 : i32
    %c0_i32_1 = arith.constant 0 : i32
    return %c0_i32, %c0_i32_0 : i32, i32
  }
  func.func @transform_3(%arg0: i32, %arg1: i32, %arg2: i32) -> (i32, i32) {
    %c0_i32 = arith.constant 0 : i32
    %c0_i32_0 = arith.constant 0 : i32
    %c0_i32_1 = arith.constant 0 : i32
    return %c0_i32, %c0_i32_0 : i32, i32
  }
  func.func @transform_4(%arg0: i32, %arg1: i32, %arg2: i32) -> (i32, i32) {
    %c0_i32 = arith.constant 0 : i32
    %c0_i32_0 = arith.constant 0 : i32
    %c0_i32_1 = arith.constant 0 : i32
    return %c0_i32, %c0_i32_0 : i32, i32
  }
  func.func @transform_5(%arg0: i32, %arg1: i32, %arg2: i32) -> (i32, i32) {
    %c0_i32 = arith.constant 0 : i32
    %c0_i32_0 = arith.constant 0 : i32
    %c0_i32_1 = arith.constant 0 : i32
    return %c0_i32, %c0_i32_0 : i32, i32
  }
  func.func @transform_6(%arg0: i32, %arg1: i32, %arg2: i32) -> (i32, i32, i32) {
    %c0_i32 = arith.constant 0 : i32
    %c0_i32_0 = arith.constant 0 : i32
    return %arg0, %arg1, %c0_i32 : i32, i32, i32
  }
  func.func @transform_7(%arg0: i32, %arg1: i32, %arg2: i32) -> (i32, i32, i32) {
    %c0_i32 = arith.constant 0 : i32
    %c0_i32_0 = arith.constant 0 : i32
    return %arg0, %arg1, %c0_i32 : i32, i32, i32
  }
}

module attributes {stable_mosaic.version = 11 : i64} {
  func.func @_loss_kernel(%arg0: i32, %arg1: memref<1x128x128xbf16, #tpu.memory_space<vmem>>, %arg2: memref<1x128x128xbf16, #tpu.memory_space<vmem>>, %arg3: memref<1x256x128xbf16, #tpu.memory_space<vmem>>, %arg4: memref<1x256x128xbf16, #tpu.memory_space<vmem>>, %arg5: memref<1x1xf32, #tpu.memory_space<smem>>, %arg6: memref<1xf32, #tpu.memory_space<smem>>) attributes {dimension_semantics = [#tpu.dimension_semantics<arbitrary>], iteration_bounds = array<i64: 2>, scalar_prefetch = 0 : i64, scratch_operands = 1 : i64, tpu.core_type = #tpu.core_type<tc>, window_params = [{transform_indices = @transform_0, window_bounds = array<i64: 1, 128, 128>}, {transform_indices = @transform_1, window_bounds = array<i64: 1, 128, 128>}, {transform_indices = @transform_2, window_bounds = array<i64: 1, 256, 128>}, {transform_indices = @transform_3, window_bounds = array<i64: 1, 256, 128>}, {transform_indices = @transform_4, window_bounds = array<i64: 1, 1>}]} {
    %c0_i32 = arith.constant 0 : i32
    %0 = arith.cmpi eq, %arg0, %c0_i32 : i32
    %1 = arith.extui %0 : i1 to i32
    %c0_i32_0 = arith.constant 0 : i32
    %2 = arith.cmpi ne, %1, %c0_i32_0 : i32
    scf.if %2 {
      %cst_40 = arith.constant 0.000000e+00 : f32
      %c0_41 = arith.constant 0 : index
      %73 = memref.load %arg6[%c0_41] : memref<1xf32, #tpu.memory_space<smem>>
      memref.store %cst_40, %arg6[%c0_41] : memref<1xf32, #tpu.memory_space<smem>>
    } else {
    }
    %c0 = arith.constant 0 : index
    %c0_1 = arith.constant 0 : index
    %c0_2 = arith.constant 0 : index
    %3 = vector.load %arg1[%c0, %c0_1, %c0_2] : memref<1x128x128xbf16, #tpu.memory_space<vmem>>, vector<1x128x128xbf16>
    %4 = vector.shape_cast %3 : vector<1x128x128xbf16> to vector<128x128xbf16>
    %c0_3 = arith.constant 0 : index
    %c0_4 = arith.constant 0 : index
    %c0_5 = arith.constant 0 : index
    %5 = vector.load %arg2[%c0_3, %c0_4, %c0_5] : memref<1x128x128xbf16, #tpu.memory_space<vmem>>, vector<1x128x128xbf16>
    %6 = vector.shape_cast %5 : vector<1x128x128xbf16> to vector<128x128xbf16>
    %c0_6 = arith.constant 0 : index
    %c0_7 = arith.constant 0 : index
    %c0_8 = arith.constant 0 : index
    %7 = vector.load %arg3[%c0_6, %c0_7, %c0_8] : memref<1x256x128xbf16, #tpu.memory_space<vmem>>, vector<1x256x128xbf16>
    %8 = vector.shape_cast %7 : vector<1x256x128xbf16> to vector<256x128xbf16>
    %cst = arith.constant dense<0.000000e+00> : vector<128x256xf32>
    %9 = tpu.matmul %4, %8, %cst {dimension_numbers = #tpu.dot_dimension_numbers<[1], [1], [0], [0], [0, 0, 1, 0], [], []>} : vector<128x128xbf16>, vector<256x128xbf16>, vector<128x256xf32> -> vector<128x256xf32>
    %c0_9 = arith.constant 0 : index
    %c0_10 = arith.constant 0 : index
    %c0_11 = arith.constant 0 : index
    %10 = vector.load %arg4[%c0_9, %c0_10, %c0_11] : memref<1x256x128xbf16, #tpu.memory_space<vmem>>, vector<1x256x128xbf16>
    %11 = vector.shape_cast %10 : vector<1x256x128xbf16> to vector<256x128xbf16>
    %cst_12 = arith.constant dense<0.000000e+00> : vector<128x256xf32>
    %12 = tpu.matmul %4, %11, %cst_12 {dimension_numbers = #tpu.dot_dimension_numbers<[1], [1], [0], [0], [0, 0, 1, 0], [], []>} : vector<128x128xbf16>, vector<256x128xbf16>, vector<128x256xf32> -> vector<128x256xf32>
    %c0_13 = arith.constant 0 : index
    %c0_14 = arith.constant 0 : index
    %c0_15 = arith.constant 0 : index
    %13 = vector.load %arg4[%c0_13, %c0_14, %c0_15] : memref<1x256x128xbf16, #tpu.memory_space<vmem>>, vector<1x256x128xbf16>
    %14 = vector.shape_cast %13 : vector<1x256x128xbf16> to vector<256x128xbf16>
    %cst_16 = arith.constant dense<0.000000e+00> : vector<128x256xf32>
    %15 = tpu.matmul %6, %14, %cst_16 {dimension_numbers = #tpu.dot_dimension_numbers<[1], [1], [0], [0], [0, 0, 1, 0], [], []>} : vector<128x128xbf16>, vector<256x128xbf16>, vector<128x256xf32> -> vector<128x256xf32>
    %c0_17 = arith.constant 0 : index
    %c0_18 = arith.constant 0 : index
    %c0_19 = arith.constant 0 : index
    %16 = vector.load %arg3[%c0_17, %c0_18, %c0_19] : memref<1x256x128xbf16, #tpu.memory_space<vmem>>, vector<1x256x128xbf16>
    %17 = vector.shape_cast %16 : vector<1x256x128xbf16> to vector<256x128xbf16>
    %cst_20 = arith.constant dense<0.000000e+00> : vector<128x256xf32>
    %18 = tpu.matmul %6, %17, %cst_20 {dimension_numbers = #tpu.dot_dimension_numbers<[1], [1], [0], [0], [0, 0, 1, 0], [], []>} : vector<128x128xbf16>, vector<256x128xbf16>, vector<128x256xf32> -> vector<128x256xf32>
    %cst_21 = arith.constant 2.000000e+00 : f32
    %19 = vector.broadcast %cst_21 : f32 to vector<128x256xf32>
    %20 = arith.mulf %9, %19 : vector<128x256xf32>
    %21 = math.exp %20 : vector<128x256xf32>
    %cst_22 = arith.constant dense<0.000000e+00> : vector<128xf32>
    %22 = vector.multi_reduction <add>, %21, %cst_22 [1] : vector<128x256xf32> to vector<128xf32>
    %23 = vector.shape_cast %22 : vector<128xf32> to vector<128x1xf32>
    %cst_23 = arith.constant 2.000000e+00 : f32
    %24 = vector.broadcast %cst_23 : f32 to vector<128x256xf32>
    %25 = arith.mulf %12, %24 : vector<128x256xf32>
    %26 = math.exp %25 : vector<128x256xf32>
    %cst_24 = arith.constant dense<0.000000e+00> : vector<128xf32>
    %27 = vector.multi_reduction <add>, %26, %cst_24 [1] : vector<128x256xf32> to vector<128xf32>
    %28 = vector.shape_cast %27 : vector<128xf32> to vector<128x1xf32>
    %cst_25 = arith.constant 2.000000e+00 : f32
    %29 = vector.broadcast %cst_25 : f32 to vector<128x256xf32>
    %30 = arith.mulf %15, %29 : vector<128x256xf32>
    %31 = math.exp %30 : vector<128x256xf32>
    %cst_26 = arith.constant dense<0.000000e+00> : vector<128xf32>
    %32 = vector.multi_reduction <add>, %31, %cst_26 [1] : vector<128x256xf32> to vector<128xf32>
    %33 = vector.shape_cast %32 : vector<128xf32> to vector<128x1xf32>
    %cst_27 = arith.constant 2.000000e+00 : f32
    %34 = vector.broadcast %cst_27 : f32 to vector<128x256xf32>
    %35 = arith.mulf %18, %34 : vector<128x256xf32>
    %36 = math.exp %35 : vector<128x256xf32>
    %cst_28 = arith.constant dense<0.000000e+00> : vector<128xf32>
    %37 = vector.multi_reduction <add>, %36, %cst_28 [1] : vector<128x256xf32> to vector<128xf32>
    %38 = vector.shape_cast %37 : vector<128xf32> to vector<128x1xf32>
    %39 = arith.extf %4 : vector<128x128xbf16> to vector<128x128xf32>
    %40 = arith.extf %6 : vector<128x128xbf16> to vector<128x128xf32>
    %41 = arith.mulf %39, %40 : vector<128x128xf32>
    %cst_29 = arith.constant dense<0.000000e+00> : vector<128xf32>
    %42 = vector.multi_reduction <add>, %41, %cst_29 [1] : vector<128x128xf32> to vector<128xf32>
    %43 = vector.shape_cast %42 : vector<128xf32> to vector<128x1xf32>
    %cst_30 = arith.constant 2.000000e+00 : f32
    %44 = vector.broadcast %cst_30 : f32 to vector<128x1xf32>
    %45 = arith.mulf %43, %44 : vector<128x1xf32>
    %46 = arith.addf %23, %28 : vector<128x1xf32>
    %cst_31 = arith.constant 7.3890562 : f32
    %47 = vector.broadcast %cst_31 : f32 to vector<128x1xf32>
    %48 = arith.subf %46, %47 : vector<128x1xf32>
    %49 = math.log %48 : vector<128x1xf32>
    %50 = arith.subf %49, %45 : vector<128x1xf32>
    %51 = arith.addf %33, %38 : vector<128x1xf32>
    %cst_32 = arith.constant 7.3890562 : f32
    %52 = vector.broadcast %cst_32 : f32 to vector<128x1xf32>
    %53 = arith.subf %51, %52 : vector<128x1xf32>
    %54 = math.log %53 : vector<128x1xf32>
    %55 = arith.subf %54, %45 : vector<128x1xf32>
    %c0_33 = arith.constant 0 : index
    %56 = memref.load %arg6[%c0_33] : memref<1xf32, #tpu.memory_space<smem>>
    %57 = vector.shape_cast %50 : vector<128x1xf32> to vector<1x128x1xf32>
    %cst_34 = arith.constant dense<0.000000e+00> : vector<1xf32>
    %58 = vector.multi_reduction <add>, %57, %cst_34 [1, 2] : vector<1x128x1xf32> to vector<1xf32>
    %59 = vector.shape_cast %58 : vector<1xf32> to vector<1x1x1xf32>
    %60 = vector.extract %59[0, 0, 0] : f32 from vector<1x1x1xf32>
    %cst_35 = arith.constant 5.000000e-01 : f32
    %61 = arith.mulf %cst_35, %60 : f32
    %62 = vector.shape_cast %55 : vector<128x1xf32> to vector<1x128x1xf32>
    %cst_36 = arith.constant dense<0.000000e+00> : vector<1xf32>
    %63 = vector.multi_reduction <add>, %62, %cst_36 [1, 2] : vector<1x128x1xf32> to vector<1xf32>
    %64 = vector.shape_cast %63 : vector<1xf32> to vector<1x1x1xf32>
    %65 = vector.extract %64[0, 0, 0] : f32 from vector<1x1x1xf32>
    %cst_37 = arith.constant 5.000000e-01 : f32
    %66 = arith.mulf %cst_37, %65 : f32
    %67 = arith.addf %61, %66 : f32
    %68 = arith.addf %56, %67 : f32
    %c0_38 = arith.constant 0 : index
    %69 = memref.load %arg6[%c0_38] : memref<1xf32, #tpu.memory_space<smem>>
    memref.store %68, %arg6[%c0_38] : memref<1xf32, #tpu.memory_space<smem>>
    %c1_i32 = arith.constant 1 : i32
    %70 = arith.cmpi eq, %arg0, %c1_i32 : i32
    %71 = arith.extui %70 : i1 to i32
    %c0_i32_39 = arith.constant 0 : i32
    %72 = arith.cmpi ne, %71, %c0_i32_39 : i32
    scf.if %72 {
      %c0_40 = arith.constant 0 : index
      %73 = memref.load %arg6[%c0_40] : memref<1xf32, #tpu.memory_space<smem>>
      %c0_41 = arith.constant 0 : index
      %c0_42 = arith.constant 0 : index
      %74 = memref.load %arg5[%c0_41, %c0_42] : memref<1x1xf32, #tpu.memory_space<smem>>
      memref.store %73, %arg5[%c0_41, %c0_42] : memref<1x1xf32, #tpu.memory_space<smem>>
    } else {
    }
    return
  }
  func.func @transform_0(%arg0: i32) -> (i32, i32, i32) {
    %c0_i32 = arith.constant 0 : i32
    %c0_i32_0 = arith.constant 0 : i32
    %c0_i32_1 = arith.constant 0 : i32
    return %c0_i32, %arg0, %c0_i32_0 : i32, i32, i32
  }
  func.func @transform_1(%arg0: i32) -> (i32, i32, i32) {
    %c1_i32 = arith.constant 1 : i32
    %c0_i32 = arith.constant 0 : i32
    %c0_i32_0 = arith.constant 0 : i32
    return %c1_i32, %arg0, %c0_i32 : i32, i32, i32
  }
  func.func @transform_2(%arg0: i32) -> (i32, i32, i32) {
    %c0_i32 = arith.constant 0 : i32
    %c0_i32_0 = arith.constant 0 : i32
    %c0_i32_1 = arith.constant 0 : i32
    %c0_i32_2 = arith.constant 0 : i32
    return %c0_i32, %c0_i32_0, %c0_i32_1 : i32, i32, i32
  }
  func.func @transform_3(%arg0: i32) -> (i32, i32, i32) {
    %c1_i32 = arith.constant 1 : i32
    %c0_i32 = arith.constant 0 : i32
    %c0_i32_0 = arith.constant 0 : i32
    %c0_i32_1 = arith.constant 0 : i32
    return %c1_i32, %c0_i32, %c0_i32_0 : i32, i32, i32
  }
  func.func @transform_4(%arg0: i32) -> (i32, i32) {
    %c0_i32 = arith.constant 0 : i32
    %c0_i32_0 = arith.constant 0 : i32
    %c0_i32_1 = arith.constant 0 : i32
    return %c0_i32, %c0_i32_0 : i32, i32
  }
}

</mosaic_0001>

<llo_original>
// kernel: cl_hgcn_forward.3
$region0: #{cl_hgcn_forward.3}
  #allocation0 [shape = 'u32[]', space=smem, size = 0x4, offset = 0x4, fixed_abs, tag = 'smem constant byte address 0x4 - core index']
  #allocation1 [shape = 'u32[144,128]{1,0:T(1,128)}', space=vmem, size = 0x12000, scoped, tag = 'internal scratch']
  %s0 = inlined_call_operand.vmem [shape: bf16[2,256,128], index: 0, kind: input, shape index: {}]
  %s1 = inlined_call_operand.vmem [shape: bf16[2,128,128], index: 1, kind: input, shape index: {}]
  %s2 = inlined_call_operand.vmem [shape: f32[2,1,128], index: 2, kind: input, shape index: {}]
  %s3 = inlined_call_operand.vmem [shape: bf16[2,256,128], index: 3, kind: output, shape index: {}]
  %s4 = sld [smem:[#allocation0]]
  $region45: #{cl_hgcn_forward.3} parent=0
    _
  %s6 = ssub.s32 1, %s4
  %s7 = scalar_select 0, %s6, %s4
  loop: start=0, step=1, limit=6
  $region2: #{cl_hgcn_forward.3} parent=0 // loop_pre_header
    _
  $region3: #{cl_hgcn_forward.3} parent=0 // loop_header
    %s9 = sphi 0, %s13
    %p10 = scmp.ge.s32.totalorder %s9, 6
    %s16 = sphi 0, %s28
    %s17 = sphi 0, %s24
    %s18 = sphi 0, %s16
    %s19 = sphi 0, %s17
    %s20 = sphi 0, %s18
    %s21 = sphi 0, %s19
    %s33 = sphi 0, %s35
    %s36 = sphi 0, %s33
    %s37 = sphi 0, %s36
    %s53 = sphi 0, %s37
    %s59 = sphi 0, %s61
    %s62 = sphi 0, %s59
    %s63 = sphi 0, %s62
    %s79 = sphi 0, %s63
    %s85 = sphi 0, %s87
    %s88 = sphi 0, %s85
    %s89 = sphi 0, %s88
    %s105 = sphi 0, %s89
    %s113 = sphi 0, %s115
    %s116 = sphi 0, %s113
    %s117 = sphi 0, %s116
    %s133 = sphi 0, %s117
  $region4: #{cl_hgcn_forward.3} parent=0 // loop_header_branch
    %12 = sbr.rel (%p10) target = $region8
  $region5: #{cl_hgcn_forward.3} parent=0 // loop_body
    %s14 = ssub.s32 %s9, 1
    %s15 = ssub.s32 %s9, 2
    %s22 = sadd.s32 1, %s17
    %p23 = scmp.ge.s32.totalorder %s22, 2
    %s24 = scalar_select %p23, 0, %s22
    %s25 = sadd.s32 1, %s16
    %s26 = scalar_select %p23, %s25, %s16
    %p27 = scmp.ge.s32.totalorder %s26, 2
    %s28 = scalar_select %p27, 0, %s26
    %s29 = ssub.s32 %s16, %s28
    %s30 = ssub.s32 %s17, %s24
    %s31 = sor.u32 %s29, %s30
    %p32 = scmp.eq.s32.totalorder %s31, 0
    %s34 = sadd.s32 %s33, 1
    %s35 = scalar_select %p32, %s33, %s34
    %p38 = pneg %p32
    %p39 = scmp.eq.s32.totalorder %s9, 3
    %p40 = por %p38, %p39
    %p41 = scmp.ne.s32.totalorder %s33, %s36
    %p42 = scmp.eq.s32.totalorder %s9, 0
    %p43 = por %p41, %p42
    %p44 = scmp.ne.s32.totalorder %s33, %s36
    %p45 = scmp.eq.s32.totalorder %s14, 3
    %p46 = por %p44, %p45
    %p47 = scmp.ne.s32.totalorder %s36, %s37
    %p48 = scmp.eq.s32.totalorder %s14, 0
    %p49 = por %p47, %p48
    %p50 = scmp.ne.s32.totalorder %s36, %s37
    %p51 = scmp.eq.s32.totalorder %s15, 3
    %p52 = por %p50, %p51
    %p54 = scmp.ne.s32.totalorder %s37, %s53
    %p55 = scmp.eq.s32.totalorder %s15, 0
    %p56 = por %p54, %p55
    %s57 = ssub.s32 %s16, %s28
    %p58 = scmp.eq.s32.totalorder %s57, 0
    %s60 = sadd.s32 %s59, 1
    %s61 = scalar_select %p58, %s59, %s60
    %p64 = pneg %p58
    %p65 = scmp.eq.s32.totalorder %s9, 3
    %p66 = por %p64, %p65
    %p67 = scmp.ne.s32.totalorder %s59, %s62
    %p68 = scmp.eq.s32.totalorder %s9, 0
    %p69 = por %p67, %p68
    %p70 = scmp.ne.s32.totalorder %s59, %s62
    %p71 = scmp.eq.s32.totalorder %s14, 3
    %p72 = por %p70, %p71
    %p73 = scmp.ne.s32.totalorder %s62, %s63
    %p74 = scmp.eq.s32.totalorder %s14, 0
    %p75 = por %p73, %p74
    %p76 = scmp.ne.s32.totalorder %s62, %s63
    %p77 = scmp.eq.s32.totalorder %s15, 3
    %p78 = por %p76, %p77
    %p80 = scmp.ne.s32.totalorder %s63, %s79
    %p81 = scmp.eq.s32.totalorder %s15, 0
    %p82 = por %p80, %p81
    %s83 = ssub.s32 %s16, %s28
    %p84 = scmp.eq.s32.totalorder %s83, 0
    %s86 = sadd.s32 %s85, 1
    %s87 = scalar_select %p84, %s85, %s86
    %p90 = pneg %p84
    %p91 = scmp.eq.s32.totalorder %s9, 3
    %p92 = por %p90, %p91
    %p93 = scmp.ne.s32.totalorder %s85, %s88
    %p94 = scmp.eq.s32.totalorder %s9, 0
    %p95 = por %p93, %p94
    %p96 = scmp.ne.s32.totalorder %s85, %s88
    %p97 = scmp.eq.s32.totalorder %s14, 3
    %p98 = por %p96, %p97
    %p99 = scmp.ne.s32.totalorder %s88, %s89
    %p100 = scmp.eq.s32.totalorder %s14, 0
    %p101 = por %p99, %p100
    %p102 = scmp.ne.s32.totalorder %s88, %s89
    %p103 = scmp.eq.s32.totalorder %s15, 3
    %p104 = por %p102, %p103
    %p106 = scmp.ne.s32.totalorder %s89, %s105
    %p107 = scmp.eq.s32.totalorder %s15, 0
    %p108 = por %p106, %p107
    %s109 = ssub.s32 %s16, %s28
    %s110 = ssub.s32 %s17, %s24
    %s111 = sor.u32 %s109, %s110
    %p112 = scmp.eq.s32.totalorder %s111, 0
    %s114 = sadd.s32 %s113, 1
    %s115 = scalar_select %p112, %s113, %s114
    %p118 = pneg %p112
    %p119 = scmp.eq.s32.totalorder %s9, 3
    %p120 = por %p118, %p119
    %p121 = scmp.ne.s32.totalorder %s113, %s116
    %p122 = scmp.eq.s32.totalorder %s9, 0
    %p123 = por %p121, %p122
    %p124 = scmp.ne.s32.totalorder %s113, %s116
    %p125 = scmp.eq.s32.totalorder %s14, 3
    %p126 = por %p124, %p125
    %p127 = scmp.ne.s32.totalorder %s116, %s117
    %p128 = scmp.eq.s32.totalorder %s14, 0
    %p129 = por %p127, %p128
    %p130 = scmp.ne.s32.totalorder %s116, %s117
    %p131 = scmp.eq.s32.totalorder %s15, 3
    %p132 = por %p130, %p131
    %p134 = scmp.ne.s32.totalorder %s117, %s133
    %p135 = scmp.eq.s32.totalorder %s15, 0
    %p136 = por %p134, %p135
    %p137 = scmp.le.s32.totalorder 1, %s9
    %p138 = scmp.lt.s32.totalorder %s9, 5
    %p139 = pnand %p137, %p138
    %p140 = pneg %p139
    // Predicated region
    $region9: #{cl_hgcn_forward.3} parent=5 // pred_check
      _
    $region10: #{cl_hgcn_forward.3} parent=5 // pred_check_branch
      %142 = sbr.rel (%p139) target = $region12
    $region11: #{cl_hgcn_forward.3} parent=5 // pred_region
      %s143 = ssub.s32 %s9, 1
    $region12: #{cl_hgcn_forward.3} parent=5 // pred_fallthru
      _
    %p144 = scmp.lt.s32.totalorder %s9, 4
    // Predicated region
    $region13: #{cl_hgcn_forward.3} parent=5 // pred_check
      %p145 = pneg %p144
    $region14: #{cl_hgcn_forward.3} parent=5 // pred_check_branch
      %147 = sbr.rel (%p145) target = $region16
    $region15: #{cl_hgcn_forward.3} parent=5 // pred_region
      // Predicated region
      $region17: #{cl_hgcn_forward.3} parent=15 // pred_check
        %p148 = pneg %p43
      $region18: #{cl_hgcn_forward.3} parent=15 // pred_check_branch
        %150 = sbr.rel (%p148) target = $region20
      $region19: #{cl_hgcn_forward.3} parent=15 // pred_region
        %s151 = smul.u32 16, %s17
        %p152 = scmp.lt.s32.totalorder %s16, 1
        %s153 = scalar_select %p152, %s16, 1
        %p154 = scmp.lt.s32.totalorder %s151, 31
        %s155 = scalar_select %p154, %s151, 31
        %s156 = smul.addr %s153, 32
        %s157 = sadd.s32 %s155, %s156
        %s158 = smul.addr %s157, 4
        %s159 = scalar_lea.vmem %s0, %s158
        %s160 = smul.u32 16, %s17
      $region20: #{cl_hgcn_forward.3} parent=15 // pred_fallthru
        _
      // Predicated region
      $region21: #{cl_hgcn_forward.3} parent=15 // pred_check
        %p161 = pneg %p69
      $region22: #{cl_hgcn_forward.3} parent=15 // pred_check_branch
        %163 = sbr.rel (%p161) target = $region24
      $region23: #{cl_hgcn_forward.3} parent=15 // pred_region
        %p164 = scmp.lt.s32.totalorder %s16, 1
        %s165 = scalar_select %p164, %s16, 1
        %s166 = smul.addr %s165, 16
        %s167 = smul.addr %s166, 4
        %s168 = scalar_lea.vmem %s1, %s167
      $region24: #{cl_hgcn_forward.3} parent=15 // pred_fallthru
        _
      // Predicated region
      $region25: #{cl_hgcn_forward.3} parent=15 // pred_check
        %p169 = pneg %p95
      $region26: #{cl_hgcn_forward.3} parent=15 // pred_check_branch
        %171 = sbr.rel (%p169) target = $region28
      $region27: #{cl_hgcn_forward.3} parent=15 // pred_region
        %p172 = scmp.lt.s32.totalorder %s16, 1
        %s173 = scalar_select %p172, %s16, 1
        %s174 = scalar_lea.vmem %s2, %s173
      $region28: #{cl_hgcn_forward.3} parent=15 // pred_fallthru
        _
    $region16: #{cl_hgcn_forward.3} parent=5 // pred_fallthru
      _
    %p175 = scmp.le.s32.totalorder 1, %s9
    %p176 = scmp.lt.s32.totalorder %s9, 5
    %p177 = pnand %p175, %p176
    %p178 = pneg %p177
    // Predicated region
    $region29: #{cl_hgcn_forward.3} parent=5 // pred_check
      _
    $region30: #{cl_hgcn_forward.3} parent=5 // pred_check_branch
      %180 = sbr.rel (%p177) target = $region32
    $region31: #{cl_hgcn_forward.3} parent=5 // pred_region
      %s181 = ssub.s32 %s9, 1
      %s182 = smul.u32 16, %s19
      %p183 = scmp.lt.s32.totalorder %s18, 1
      %s184 = scalar_select %p183, %s18, 1
      %p185 = scmp.lt.s32.totalorder %s182, 31
      %s186 = scalar_select %p185, %s182, 31
      %s187 = smul.addr %s184, 32
      %s188 = sadd.s32 %s186, %s187
      %s189 = smul.addr %s188, 4
      %s190 = scalar_lea.vmem %s0, %s189
      %p191 = pneg %p49
      %p192 = pneg %p46
      %p193 = scmp.lt.s32.totalorder %s18, 1
      %s194 = scalar_select %p193, %s18, 1
      %s195 = smul.addr %s194, 16
      %s196 = smul.addr %s195, 4
      %s197 = scalar_lea.vmem %s1, %s196
      %p198 = pneg %p75
      %p199 = pneg %p72
      %p200 = scmp.lt.s32.totalorder %s18, 1
      %s201 = scalar_select %p200, %s18, 1
      %s202 = scalar_lea.vmem %s2, %s201
      %p203 = pneg %p101
      %p204 = pneg %p98
      %p205 = pneg %p129
      %p206 = pneg %p126
      %s207 = smul.u32 16, %s19
      %p208 = scmp.lt.s32.totalorder %s18, 1
      %s209 = scalar_select %p208, %s18, 1
      %p210 = scmp.lt.s32.totalorder %s207, 31
      %s211 = scalar_select %p210, %s207, 31
      %s212 = smul.addr %s209, 32
      %s213 = sadd.s32 %s211, %s212
      %s214 = smul.addr %s213, 4
      %s215 = scalar_lea.vmem %s3, %s214
      %s216 = smul.u32 16, %s19
      %p217 = scmp.lt.s32.totalorder %s18, 1
      %s218 = scalar_select %p217, %s18, 1
      %p219 = scmp.lt.s32.totalorder %s216, 31
      %s220 = scalar_select %p219, %s216, 31
      %s221 = smul.addr %s218, 32
      %s222 = sadd.s32 %s220, %s221
      %s223 = smul.addr %s222, 4
      %s224 = scalar_lea.vmem %s0, %s223
      %s225 = smul.u32 16, %s19
      %p226 = scmp.lt.s32.totalorder %s18, 1
      %s227 = scalar_select %p226, %s18, 1
      %s228 = smul.addr %s227, 16
      %s229 = smul.addr %s228, 4
      %s230 = scalar_lea.vmem %s1, %s229
      %p231 = scmp.lt.s32.totalorder %s18, 1
      %s232 = scalar_select %p231, %s18, 1
      %s233 = scalar_lea.vmem %s2, %s232
      %s234 = smul.u32 16, %s19
      %p235 = scmp.lt.s32.totalorder %s18, 1
      %s236 = scalar_select %p235, %s18, 1
      %p237 = scmp.lt.s32.totalorder %s234, 31
      %s238 = scalar_select %p237, %s234, 31
      %s239 = smul.addr %s236, 32
      %s240 = sadd.s32 %s238, %s239
      %s241 = smul.addr %s240, 4
      %s242 = scalar_lea.vmem %s3, %s241
      %s243 = smul.u32 16, %s19
      %v245 = vld [vmem:[%s224] sm:$0xf]
      %v246 = vld [vmem:[%s224 + $0x4] sm:$0xf]
      %v247 = vld [vmem:[%s224 + $0x8] sm:$0xf]
      %v248 = vld [vmem:[%s224 + $0xc] sm:$0xf]
      %v249 = vld [vmem:[%s224 + $0x10] sm:$0xf]
      %v250 = vld [vmem:[%s224 + $0x14] sm:$0xf]
      %v251 = vld [vmem:[%s224 + $0x18] sm:$0xf]
      %v252 = vld [vmem:[%s224 + $0x1c] sm:$0xf]
      %v253 = vld [vmem:[%s224 + $0x20] sm:$0xf]
      %v254 = vld [vmem:[%s224 + $0x24] sm:$0xf]
      %v255 = vld [vmem:[%s224 + $0x28] sm:$0xf]
      %v256 = vld [vmem:[%s224 + $0x2c] sm:$0xf]
      %v257 = vld [vmem:[%s224 + $0x30] sm:$0xf]
      %v258 = vld [vmem:[%s224 + $0x34] sm:$0xf]
      %v259 = vld [vmem:[%s224 + $0x38] sm:$0xf]
      %v260 = vld [vmem:[%s224 + $0x3c] sm:$0xf]
      %v261 = vld [vmem:[%s230] sm:$0xf]
      %v262 = vld [vmem:[%s230 + $0x4] sm:$0xf]
      %v263 = vld [vmem:[%s230 + $0x8] sm:$0xf]
      %v264 = vld [vmem:[%s230 + $0xc] sm:$0xf]
      %v265 = vld [vmem:[%s230 + $0x10] sm:$0xf]
      %v266 = vld [vmem:[%s230 + $0x14] sm:$0xf]
      %v267 = vld [vmem:[%s230 + $0x18] sm:$0xf]
      %v268 = vld [vmem:[%s230 + $0x1c] sm:$0xf]
      %v269 = vld [vmem:[%s230 + $0x20] sm:$0xf]
      %v270 = vld [vmem:[%s230 + $0x24] sm:$0xf]
      %v271 = vld [vmem:[%s230 + $0x28] sm:$0xf]
      %v272 = vld [vmem:[%s230 + $0x2c] sm:$0xf]
      %v273 = vld [vmem:[%s230 + $0x30] sm:$0xf]
      %v274 = vld [vmem:[%s230 + $0x34] sm:$0xf]
      %v275 = vld [vmem:[%s230 + $0x38] sm:$0xf]
      %v276 = vld [vmem:[%s230 + $0x3c] sm:$0xf]
      %v277 = vld [vmem:[%s233] sm:$0x1]
      %v279 = vlaneseq
      %v280 = vshrl.u32 %v279, 7
      %v281 = vsub.s32 0, %v280
      %v282 = vrot.slane %v277, %v281
      %v300 = vunpack.c.l.b16 %v245
      %v301 = vunpack.c.l.b16 %v246
      %v302 = vunpack.c.l.b16 %v247
      %v303 = vunpack.c.l.b16 %v248
      %v304 = vunpack.c.l.b16 %v249
      %v305 = vunpack.c.l.b16 %v250
      %v306 = vunpack.c.l.b16 %v251
      %v307 = vunpack.c.l.b16 %v252
      %v308 = vunpack.c.l.b16 %v253
      %v309 = vunpack.c.l.b16 %v254
      %v310 = vunpack.c.l.b16 %v255
      %v311 = vunpack.c.l.b16 %v256
      %v312 = vunpack.c.l.b16 %v257
      %v313 = vunpack.c.l.b16 %v258
      %v314 = vunpack.c.l.b16 %v259
      %v315 = vunpack.c.l.b16 %v260
      %v316 = vpack.c.b16 %v301, %v300
      %v317 = vpack.c.b16 %v303, %v302
      %v318 = vpack.c.b16 %v305, %v304
      %v319 = vpack.c.b16 %v307, %v306
      %v320 = vpack.c.b16 %v309, %v308
      %v321 = vpack.c.b16 %v311, %v310
      %v322 = vpack.c.b16 %v313, %v312
      %v323 = vpack.c.b16 %v315, %v314
      %v348 = vunpack.c.l.b16 %v261
      %v349 = vunpack.c.l.b16 %v262
      %v350 = vunpack.c.l.b16 %v263
      %v351 = vunpack.c.l.b16 %v264
      %v352 = vunpack.c.l.b16 %v265
      %v353 = vunpack.c.l.b16 %v266
      %v354 = vunpack.c.l.b16 %v267
      %v355 = vunpack.c.l.b16 %v268
      %v356 = vunpack.c.l.b16 %v269
      %v357 = vunpack.c.l.b16 %v270
      %v358 = vunpack.c.l.b16 %v271
      %v359 = vunpack.c.l.b16 %v272
      %v360 = vunpack.c.l.b16 %v273
      %v361 = vunpack.c.l.b16 %v274
      %v362 = vunpack.c.l.b16 %v275
      %v363 = vunpack.c.l.b16 %v276
      %v364 = vpack.c.b16 %v349, %v348
      %v365 = vpack.c.b16 %v351, %v350
      %v366 = vpack.c.b16 %v353, %v352
      %v367 = vpack.c.b16 %v355, %v354
      %v368 = vpack.c.b16 %v357, %v356
      %v369 = vpack.c.b16 %v359, %v358
      %v370 = vpack.c.b16 %v361, %v360
      %v371 = vpack.c.b16 %v363, %v362
      %380 = vmatprep.subr.bf16.mxu0 0
      %381 = vmatpush1.bf16.msra.mxu0 %v371
      %382 = vmatprep.subr.bf16.mxu0 0
      %383 = vmatpush1.bf16.msra.mxu0 %v370
      %384 = vmatprep.subr.bf16.mxu0 0
      %385 = vmatpush1.bf16.msra.mxu0 %v369
      %386 = vmatprep.subr.bf16.mxu0 0
      %387 = vmatpush1.bf16.msra.mxu0 %v368
      %388 = vmatprep.subr.bf16.mxu0 0
      %389 = vmatpush1.bf16.msra.mxu0 %v367
      %390 = vmatprep.subr.bf16.mxu0 0
      %391 = vmatpush1.bf16.msra.mxu0 %v366
      %392 = vmatprep.subr.bf16.mxu0 0
      %393 = vmatpush1.bf16.msra.mxu0 %v365
      %394 = vmatprep.subr.bf16.mxu0 0
      %395 = vmatpush1.bf16.msra.mxu0 %v364
      %396 = vmatprep.subr.bf16.mxu0 0
      %397 = vmatpush2.bf16.msra.mxu0 0
      %398 = vmatprep.subr.bf16.mxu0 0
      %399 = vmatpush2.bf16.msra.mxu0 0
      %400 = vmatprep.subr.bf16.mxu0 0
      %401 = vmatpush2.bf16.msra.mxu0 0
      %402 = vmatprep.subr.bf16.mxu0 0
      %403 = vmatpush2.bf16.msra.mxu0 0
      %404 = vmatprep.subr.bf16.mxu0 0
      %405 = vmatpush2.bf16.msra.mxu0 0
      %406 = vmatprep.subr.bf16.mxu0 0
      %407 = vmatpush2.bf16.msra.mxu0 0
      %408 = vmatprep.subr.bf16.mxu0 0
      %409 = vmatpush2.bf16.msra.mxu0 0
      %410 = vmatprep.subr.bf16.mxu0 0
      %411 = vmatpush2.bf16.msra.mxu0 0
      %412 = vmatprep.mubr.bf16.mxu0 0
      %413 = vmatmul.mubr.bf16.gmra.mxu0 %v316
      %v414 = vpop.f32.mrf.mxu0
      %v415 = vadd.f32 %v282, %v414
      %v416 = vpop.f32.mrf.mxu0
      %v417 = vpop.f32.mrf.mxu0
      %v418 = vadd.f32 %v282, %v417
      %v419 = vpop.f32.mrf.mxu0
      %420 = vmatprep.mubr.bf16.mxu0 0
      %421 = vmatmul.mubr.bf16.gmra.mxu0 %v317
      %v422 = vpop.f32.mrf.mxu0
      %v423 = vadd.f32 %v282, %v422
      %v424 = vpop.f32.mrf.mxu0
      %v425 = vpop.f32.mrf.mxu0
      %v426 = vadd.f32 %v282, %v425
      %v427 = vpop.f32.mrf.mxu0
      %428 = vmatprep.mubr.bf16.mxu0 0
      %429 = vmatmul.mubr.bf16.gmra.mxu0 %v318
      %v430 = vpop.f32.mrf.mxu0
      %v431 = vadd.f32 %v282, %v430
      %v432 = vpop.f32.mrf.mxu0
      %v433 = vpop.f32.mrf.mxu0
      %v434 = vadd.f32 %v282, %v433
      %v435 = vpop.f32.mrf.mxu0
      %436 = vmatprep.mubr.bf16.mxu0 0
      %437 = vmatmul.mubr.bf16.gmra.mxu0 %v319
      %v438 = vpop.f32.mrf.mxu0
      %v439 = vadd.f32 %v282, %v438
      %v440 = vpop.f32.mrf.mxu0
      %v441 = vpop.f32.mrf.mxu0
      %v442 = vadd.f32 %v282, %v441
      %v443 = vpop.f32.mrf.mxu0
      %444 = vmatprep.mubr.bf16.mxu0 0
      %445 = vmatmul.mubr.bf16.gmra.mxu0 %v320
      %v446 = vpop.f32.mrf.mxu0
      %v447 = vadd.f32 %v282, %v446
      %v448 = vpop.f32.mrf.mxu0
      %v449 = vpop.f32.mrf.mxu0
      %v450 = vadd.f32 %v282, %v449
      %v451 = vpop.f32.mrf.mxu0
      %452 = vmatprep.mubr.bf16.mxu0 0
      %453 = vmatmul.mubr.bf16.gmra.mxu0 %v321
      %v454 = vpop.f32.mrf.mxu0
      %v455 = vadd.f32 %v282, %v454
      %v456 = vpop.f32.mrf.mxu0
      %v457 = vpop.f32.mrf.mxu0
      %v458 = vadd.f32 %v282, %v457
      %v459 = vpop.f32.mrf.mxu0
      %460 = vmatprep.mubr.bf16.mxu0 0
      %461 = vmatmul.mubr.bf16.gmra.mxu0 %v322
      %v462 = vpop.f32.mrf.mxu0
      %v463 = vadd.f32 %v282, %v462
      %v464 = vpop.f32.mrf.mxu0
      %v465 = vpop.f32.mrf.mxu0
      %v466 = vadd.f32 %v282, %v465
      %v467 = vpop.f32.mrf.mxu0
      %468 = vmatprep.mubr.bf16.mxu0 0
      %469 = vmatmul.mubr.bf16.gmra.mxu0 %v323
      %v470 = vpop.f32.mrf.mxu0
      %v471 = vadd.f32 %v282, %v470
      %v472 = vpop.f32.mrf.mxu0
      %v473 = vpop.f32.mrf.mxu0
      %v474 = vadd.f32 %v282, %v473
      %v475 = vpop.f32.mrf.mxu0
      %476 = vdwg.mxu0
      %v477 = vpack.c.bf16 %v418, %v415
      %v478 = vpack.c.bf16 %v426, %v423
      %v479 = vpack.c.bf16 %v434, %v431
      %v480 = vpack.c.bf16 %v442, %v439
      %v481 = vpack.c.bf16 %v450, %v447
      %v482 = vpack.c.bf16 %v458, %v455
      %v483 = vpack.c.bf16 %v466, %v463
      %v484 = vpack.c.bf16 %v474, %v471
      %v493 = vunpack.c.l.b16 %v477
      %v494 = vunpack.c.h.b16 %v477
      %v495 = vunpack.c.l.b16 %v478
      %v496 = vunpack.c.h.b16 %v478
      %v497 = vunpack.c.l.b16 %v479
      %v498 = vunpack.c.h.b16 %v479
      %v499 = vunpack.c.l.b16 %v480
      %v500 = vunpack.c.h.b16 %v480
      %v501 = vunpack.c.l.b16 %v481
      %v502 = vunpack.c.h.b16 %v481
      %v503 = vunpack.c.l.b16 %v482
      %v504 = vunpack.c.h.b16 %v482
      %v505 = vunpack.c.l.b16 %v483
      %v506 = vunpack.c.h.b16 %v483
      %v507 = vunpack.c.l.b16 %v484
      %v508 = vunpack.c.h.b16 %v484
      %v509 = vpack.c.b16 %v493, %v493
      %v510 = vpack.c.b16 %v494, %v494
      %v511 = vpack.c.b16 %v495, %v495
      %v512 = vpack.c.b16 %v496, %v496
      %v513 = vpack.c.b16 %v497, %v497
      %v514 = vpack.c.b16 %v498, %v498
      %v515 = vpack.c.b16 %v499, %v499
      %v516 = vpack.c.b16 %v500, %v500
      %v517 = vpack.c.b16 %v501, %v501
      %v518 = vpack.c.b16 %v502, %v502
      %v519 = vpack.c.b16 %v503, %v503
      %v520 = vpack.c.b16 %v504, %v504
      %v521 = vpack.c.b16 %v505, %v505
      %v522 = vpack.c.b16 %v506, %v506
      %v523 = vpack.c.b16 %v507, %v507
      %v524 = vpack.c.b16 %v508, %v508
      %541 = vst [vmem:[%s242] sm:$0xf] %v509
      %542 = vst [vmem:[%s242 + $0x4] sm:$0xf] %v510
      %543 = vst [vmem:[%s242 + $0x8] sm:$0xf] %v511
      %544 = vst [vmem:[%s242 + $0xc] sm:$0xf] %v512
      %545 = vst [vmem:[%s242 + $0x10] sm:$0xf] %v513
      %546 = vst [vmem:[%s242 + $0x14] sm:$0xf] %v514
      %547 = vst [vmem:[%s242 + $0x18] sm:$0xf] %v515
      %548 = vst [vmem:[%s242 + $0x1c] sm:$0xf] %v516
      %549 = vst [vmem:[%s242 + $0x20] sm:$0xf] %v517
      %550 = vst [vmem:[%s242 + $0x24] sm:$0xf] %v518
      %551 = vst [vmem:[%s242 + $0x28] sm:$0xf] %v519
      %552 = vst [vmem:[%s242 + $0x2c] sm:$0xf] %v520
      %553 = vst [vmem:[%s242 + $0x30] sm:$0xf] %v521
      %554 = vst [vmem:[%s242 + $0x34] sm:$0xf] %v522
      %555 = vst [vmem:[%s242 + $0x38] sm:$0xf] %v523
      %556 = vst [vmem:[%s242 + $0x3c] sm:$0xf] %v524
      %s557 = smul.u32 16, %s19
      %p558 = scmp.lt.s32.totalorder %s18, 1
      %s559 = scalar_select %p558, %s18, 1
      %p560 = scmp.lt.s32.totalorder %s557, 31
      %s561 = scalar_select %p560, %s557, 31
      %s562 = smul.addr %s559, 32
      %s563 = sadd.s32 %s561, %s562
      %s564 = smul.addr %s563, 4
      %s565 = scalar_lea.vmem %s3, %s564
      // Predicated region
      $region33: #{cl_hgcn_forward.3} parent=31 // pred_check
        %p566 = pneg %p126
      $region34: #{cl_hgcn_forward.3} parent=31 // pred_check_branch
        %568 = sbr.rel (%p566) target = $region36
      $region35: #{cl_hgcn_forward.3} parent=31 // pred_region
        %s569 = smul.u32 16, %s19
      $region36: #{cl_hgcn_forward.3} parent=31 // pred_fallthru
        _
    $region32: #{cl_hgcn_forward.3} parent=5 // pred_fallthru
      _
    %p570 = scmp.le.s32.totalorder 2, %s9
    // Predicated region
    $region37: #{cl_hgcn_forward.3} parent=5 // pred_check
      %p571 = pneg %p570
    $region38: #{cl_hgcn_forward.3} parent=5 // pred_check_branch
      %573 = sbr.rel (%p571) target = $region40
    $region39: #{cl_hgcn_forward.3} parent=5 // pred_region
      %s574 = ssub.s32 %s9, 2
      // Predicated region
      $region41: #{cl_hgcn_forward.3} parent=39 // pred_check
        %p575 = pneg %p132
      $region42: #{cl_hgcn_forward.3} parent=39 // pred_check_branch
        %577 = sbr.rel (%p575) target = $region44
      $region43: #{cl_hgcn_forward.3} parent=39 // pred_region
        %s578 = smul.u32 16, %s21
        %p579 = scmp.lt.s32.totalorder %s20, 1
        %s580 = scalar_select %p579, %s20, 1
        %p581 = scmp.lt.s32.totalorder %s578, 31
        %s582 = scalar_select %p581, %s578, 31
        %s583 = smul.addr %s580, 32
        %s584 = sadd.s32 %s582, %s583
        %s585 = smul.addr %s584, 4
        %s586 = scalar_lea.vmem %s3, %s585
      $region44: #{cl_hgcn_forward.3} parent=39 // pred_fallthru
        _
    $region40: #{cl_hgcn_forward.3} parent=5 // pred_fallthru
      _
  $region6: #{cl_hgcn_forward.3} parent=0 // loop_footer
    %s13 = sadd.s32 1, %s9
  $region7: #{cl_hgcn_forward.3} parent=0 // loop_footer_branch
    %8 = sbr.rel target = $region3
  $region8: #{cl_hgcn_forward.3} parent=0 // loop_exit
    _

// kernel: cl_hgcn_forward.4
$region0: #{cl_hgcn_forward.4}
  #allocation0 [shape = 'u32[]', space=smem, size = 0x4, offset = 0x4, fixed_abs, tag = 'smem constant byte address 0x4 - core index']
  #allocation1 [shape = 'u32[144,128]{1,0:T(1,128)}', space=vmem, size = 0x12000, scoped, tag = 'internal scratch']
  #allocation2 [shape = 'f32[128,128]{1,0:T(8,128)}', space=vmem, size = 0x10000, scoped, tag = 'scratch operand']
  %s0 = inlined_call_operand.vmem [shape: bf16[2,256,256], index: 0, kind: input, shape index: {}]
  %s1 = inlined_call_operand.vmem [shape: bf16[2,256,128], index: 1, kind: input, shape index: {}]
  %s2 = inlined_call_operand.vmem [shape: bf16[128,128], index: 2, kind: input, shape index: {}]
  %s3 = inlined_call_operand.vmem [shape: f32[1,128], index: 3, kind: input, shape index: {}]
  %s4 = inlined_call_operand.vmem [shape: bf16[128,128], index: 4, kind: input, shape index: {}]
  %s5 = inlined_call_operand.vmem [shape: f32[1,128], index: 5, kind: input, shape index: {}]
  %s6 = inlined_call_operand.vmem [shape: f32[2,256,128], index: 6, kind: output, shape index: {0}]
  %s7 = inlined_call_operand.vmem [shape: bf16[2,256,128], index: 7, kind: output, shape index: {1}]
  %8 = xla_tuple %s6, %s7
  %s9 = sld [smem:[#allocation0]]
  $region114: #{cl_hgcn_forward.4} parent=0
    _
  %s11 = ssub.s32 1, %s9
  %s12 = scalar_select 0, %s11, %s9
  $region1: #{cl_hgcn_forward.4} parent=0
    #allocation3 [shape = 'u8[65536]{0}', space=vmem, size = 0x10000, scoped, tag = 'input window, operand 0']
    loop: start=0, step=1, limit=10
    $region2: #{cl_hgcn_forward.4} parent=1 // loop_pre_header
      _
    $region3: #{cl_hgcn_forward.4} parent=1 // loop_header
      %s14 = sphi 0, %s18
      %p15 = scmp.ge.s32.totalorder %s14, 10
      %s21 = sphi 0, %s40
      %s22 = sphi 0, %s36
      %s23 = sphi 0, %s32
      %s24 = sphi 0, %s21
      %s25 = sphi 0, %s22
      %s26 = sphi 0, %s23
      %s27 = sphi 0, %s24
      %s28 = sphi 0, %s25
      %s29 = sphi 0, %s26
      %s47 = sphi 0, %s49
      %s50 = sphi 0, %s47
      %s51 = sphi 0, %s50
      %s67 = sphi 0, %s51
      %s75 = sphi 0, %s77
      %s78 = sphi 0, %s75
      %s79 = sphi 0, %s78
      %s95 = sphi 0, %s79
      %s99 = sphi 0, %s99
      %s101 = sphi 0, %s99
      %s102 = sphi 0, %s101
      %s116 = sphi 0, %s102
      %s120 = sphi 0, %s120
      %s122 = sphi 0, %s120
      %s123 = sphi 0, %s122
      %s137 = sphi 0, %s123
      %s141 = sphi 0, %s141
      %s143 = sphi 0, %s141
      %s144 = sphi 0, %s143
      %s158 = sphi 0, %s144
      %s162 = sphi 0, %s162
      %s164 = sphi 0, %s162
      %s165 = sphi 0, %s164
      %s179 = sphi 0, %s165
      %s187 = sphi 0, %s189
      %s190 = sphi 0, %s187
      %s191 = sphi 0, %s190
      %s207 = sphi 0, %s191
      %s215 = sphi 0, %s217
      %s218 = sphi 0, %s215
      %s219 = sphi 0, %s218
      %s235 = sphi 0, %s219
    $region4: #{cl_hgcn_forward.4} parent=1 // loop_header_branch
      %17 = sbr.rel (%p15) target = $region8
    $region5: #{cl_hgcn_forward.4} parent=1 // loop_body
      %s19 = ssub.s32 %s14, 1
      %s20 = ssub.s32 %s14, 2
      %s30 = sadd.s32 1, %s23
      %p31 = scmp.ge.s32.totalorder %s30, 2
      %s32 = scalar_select %p31, 0, %s30
      %s33 = sadd.s32 1, %s22
      %s34 = scalar_select %p31, %s33, %s22
      %p35 = scmp.ge.s32.totalorder %s34, 2
      %s36 = scalar_select %p35, 0, %s34
      %s37 = sadd.s32 1, %s21
      %s38 = scalar_select %p35, %s37, %s21
      %p39 = scmp.ge.s32.totalorder %s38, 2
      %s40 = scalar_select %p39, 0, %s38
      %s41 = ssub.s32 %s21, %s40
      %s42 = ssub.s32 %s22, %s36
      %s43 = sor.u32 %s41, %s42
      %s44 = ssub.s32 %s23, %s32
      %s45 = sor.u32 %s43, %s44
      %p46 = scmp.eq.s32.totalorder %s45, 0
      %s48 = sadd.s32 %s47, 1
      %s49 = scalar_select %p46, %s47, %s48
      %p52 = pneg %p46
      %p53 = scmp.eq.s32.totalorder %s14, 7
      %p54 = por %p52, %p53
      %p55 = scmp.ne.s32.totalorder %s47, %s50
      %p56 = scmp.eq.s32.totalorder %s14, 0
      %p57 = por %p55, %p56
      %p58 = scmp.ne.s32.totalorder %s47, %s50
      %p59 = scmp.eq.s32.totalorder %s19, 7
      %p60 = por %p58, %p59
      %p61 = scmp.ne.s32.totalorder %s50, %s51
      %p62 = scmp.eq.s32.totalorder %s19, 0
      %p63 = por %p61, %p62
      %p64 = scmp.ne.s32.totalorder %s50, %s51
      %p65 = scmp.eq.s32.totalorder %s20, 7
      %p66 = por %p64, %p65
      %p68 = scmp.ne.s32.totalorder %s51, %s67
      %p69 = scmp.eq.s32.totalorder %s20, 0
      %p70 = por %p68, %p69
      %s71 = ssub.s32 %s21, %s40
      %s72 = ssub.s32 %s23, %s32
      %s73 = sor.u32 %s71, %s72
      %p74 = scmp.eq.s32.totalorder %s73, 0
      %s76 = sadd.s32 %s75, 1
      %s77 = scalar_select %p74, %s75, %s76
      %p80 = pneg %p74
      %p81 = scmp.eq.s32.totalorder %s14, 7
      %p82 = por %p80, %p81
      %p83 = scmp.ne.s32.totalorder %s75, %s78
      %p84 = scmp.eq.s32.totalorder %s14, 0
      %p85 = por %p83, %p84
      %p86 = scmp.ne.s32.totalorder %s75, %s78
      %p87 = scmp.eq.s32.totalorder %s19, 7
      %p88 = por %p86, %p87
      %p89 = scmp.ne.s32.totalorder %s78, %s79
      %p90 = scmp.eq.s32.totalorder %s19, 0
      %p91 = por %p89, %p90
      %p92 = scmp.ne.s32.totalorder %s78, %s79
      %p93 = scmp.eq.s32.totalorder %s20, 7
      %p94 = por %p92, %p93
      %p96 = scmp.ne.s32.totalorder %s79, %s95
      %p97 = scmp.eq.s32.totalorder %s20, 0
      %p98 = por %p96, %p97
      %s100 = sadd.s32 %s99, 1
      %p103 = scmp.eq.s32.totalorder %s14, 7
      %p104 = scmp.ne.s32.totalorder %s99, %s101
      %p105 = scmp.eq.s32.totalorder %s14, 0
      %p106 = por %p104, %p105
      %p107 = scmp.ne.s32.totalorder %s99, %s101
      %p108 = scmp.eq.s32.totalorder %s19, 7
      %p109 = por %p107, %p108
      %p110 = scmp.ne.s32.totalorder %s101, %s102
      %p111 = scmp.eq.s32.totalorder %s19, 0
      %p112 = por %p110, %p111
      %p113 = scmp.ne.s32.totalorder %s101, %s102
      %p114 = scmp.eq.s32.totalorder %s20, 7
      %p115 = por %p113, %p114
      %p117 = scmp.ne.s32.totalorder %s102, %s116
      %p118 = scmp.eq.s32.totalorder %s20, 0
      %p119 = por %p117, %p118
      %s121 = sadd.s32 %s120, 1
      %p124 = scmp.eq.s32.totalorder %s14, 7
      %p125 = scmp.ne.s32.totalorder %s120, %s122
      %p126 = scmp.eq.s32.totalorder %s14, 0
      %p127 = por %p125, %p126
      %p128 = scmp.ne.s32.totalorder %s120, %s122
      %p129 = scmp.eq.s32.totalorder %s19, 7
      %p130 = por %p128, %p129
      %p131 = scmp.ne.s32.totalorder %s122, %s123
      %p132 = scmp.eq.s32.totalorder %s19, 0
      %p133 = por %p131, %p132
      %p134 = scmp.ne.s32.totalorder %s122, %s123
      %p135 = scmp.eq.s32.totalorder %s20, 7
      %p136 = por %p134, %p135
      %p138 = scmp.ne.s32.totalorder %s123, %s137
      %p139 = scmp.eq.s32.totalorder %s20, 0
      %p140 = por %p138, %p139
      %s142 = sadd.s32 %s141, 1
      %p145 = scmp.eq.s32.totalorder %s14, 7
      %p146 = scmp.ne.s32.totalorder %s141, %s143
      %p147 = scmp.eq.s32.totalorder %s14, 0
      %p148 = por %p146, %p147
      %p149 = scmp.ne.s32.totalorder %s141, %s143
      %p150 = scmp.eq.s32.totalorder %s19, 7
      %p151 = por %p149, %p150
      %p152 = scmp.ne.s32.totalorder %s143, %s144
      %p153 = scmp.eq.s32.totalorder %s19, 0
      %p154 = por %p152, %p153
      %p155 = scmp.ne.s32.totalorder %s143, %s144
      %p156 = scmp.eq.s32.totalorder %s20, 7
      %p157 = por %p155, %p156
      %p159 = scmp.ne.s32.totalorder %s144, %s158
      %p160 = scmp.eq.s32.totalorder %s20, 0
      %p161 = por %p159, %p160
      %s163 = sadd.s32 %s162, 1
      %p166 = scmp.eq.s32.totalorder %s14, 7
      %p167 = scmp.ne.s32.totalorder %s162, %s164
      %p168 = scmp.eq.s32.totalorder %s14, 0
      %p169 = por %p167, %p168
      %p170 = scmp.ne.s32.totalorder %s162, %s164
      %p171 = scmp.eq.s32.totalorder %s19, 7
      %p172 = por %p170, %p171
      %p173 = scmp.ne.s32.totalorder %s164, %s165
      %p174 = scmp.eq.s32.totalorder %s19, 0
      %p175 = por %p173, %p174
      %p176 = scmp.ne.s32.totalorder %s164, %s165
      %p177 = scmp.eq.s32.totalorder %s20, 7
      %p178 = por %p176, %p177
      %p180 = scmp.ne.s32.totalorder %s165, %s179
      %p181 = scmp.eq.s32.totalorder %s20, 0
      %p182 = por %p180, %p181
      %s183 = ssub.s32 %s21, %s40
      %s184 = ssub.s32 %s22, %s36
      %s185 = sor.u32 %s183, %s184
      %p186 = scmp.eq.s32.totalorder %s185, 0
      %s188 = sadd.s32 %s187, 1
      %s189 = scalar_select %p186, %s187, %s188
      %p192 = pneg %p186
      %p193 = scmp.eq.s32.totalorder %s14, 7
      %p194 = por %p192, %p193
      %p195 = scmp.ne.s32.totalorder %s187, %s190
      %p196 = scmp.eq.s32.totalorder %s14, 0
      %p197 = por %p195, %p196
      %p198 = scmp.ne.s32.totalorder %s187, %s190
      %p199 = scmp.eq.s32.totalorder %s19, 7
      %p200 = por %p198, %p199
      %p201 = scmp.ne.s32.totalorder %s190, %s191
      %p202 = scmp.eq.s32.totalorder %s19, 0
      %p203 = por %p201, %p202
      %p204 = scmp.ne.s32.totalorder %s190, %s191
      %p205 = scmp.eq.s32.totalorder %s20, 7
      %p206 = por %p204, %p205
      %p208 = scmp.ne.s32.totalorder %s191, %s207
      %p209 = scmp.eq.s32.totalorder %s20, 0
      %p210 = por %p208, %p209
      %s211 = ssub.s32 %s21, %s40
      %s212 = ssub.s32 %s22, %s36
      %s213 = sor.u32 %s211, %s212
      %p214 = scmp.eq.s32.totalorder %s213, 0
      %s216 = sadd.s32 %s215, 1
      %s217 = scalar_select %p214, %s215, %s216
      %p220 = pneg %p214
      %p221 = scmp.eq.s32.totalorder %s14, 7
      %p222 = por %p220, %p221
      %p223 = scmp.ne.s32.totalorder %s215, %s218
      %p224 = scmp.eq.s32.totalorder %s14, 0
      %p225 = por %p223, %p224
      %p226 = scmp.ne.s32.totalorder %s215, %s218
      %p227 = scmp.eq.s32.totalorder %s19, 7
      %p228 = por %p226, %p227
      %p229 = scmp.ne.s32.totalorder %s218, %s219
      %p230 = scmp.eq.s32.totalorder %s19, 0
      %p231 = por %p229, %p230
      %p232 = scmp.ne.s32.totalorder %s218, %s219
      %p233 = scmp.eq.s32.totalorder %s20, 7
      %p234 = por %p232, %p233
      %p236 = scmp.ne.s32.totalorder %s219, %s235
      %p237 = scmp.eq.s32.totalorder %s20, 0
      %p238 = por %p236, %p237
      %p239 = scmp.le.s32.totalorder 1, %s14
      %p240 = scmp.lt.s32.totalorder %s14, 9
      %p241 = pnand %p239, %p240
      %p242 = pneg %p241
      // Predicated region
      $region9: #{cl_hgcn_forward.4} parent=5 // pred_check
        _
      $region10: #{cl_hgcn_forward.4} parent=5 // pred_check_branch
        %244 = sbr.rel (%p241) target = $region12
      $region11: #{cl_hgcn_forward.4} parent=5 // pred_region
        %s245 = ssub.s32 %s14, 1
        // Predicated region
        $region13: #{cl_hgcn_forward.4} parent=11 // pred_check
          %p246 = pneg %p112
        $region14: #{cl_hgcn_forward.4} parent=11 // pred_check_branch
          %248 = sbr.rel (%p246) target = $region16
        $region15: #{cl_hgcn_forward.4} parent=11 // pred_region
          _
        $region16: #{cl_hgcn_forward.4} parent=11 // pred_fallthru
          _
        // Predicated region
        $region17: #{cl_hgcn_forward.4} parent=11 // pred_check
          %p249 = pneg %p133
        $region18: #{cl_hgcn_forward.4} parent=11 // pred_check_branch
          %251 = sbr.rel (%p249) target = $region20
        $region19: #{cl_hgcn_forward.4} parent=11 // pred_region
          _
        $region20: #{cl_hgcn_forward.4} parent=11 // pred_fallthru
          _
        // Predicated region
        $region21: #{cl_hgcn_forward.4} parent=11 // pred_check
          %p252 = pneg %p154
        $region22: #{cl_hgcn_forward.4} parent=11 // pred_check_branch
          %254 = sbr.rel (%p252) target = $region24
        $region23: #{cl_hgcn_forward.4} parent=11 // pred_region
          _
        $region24: #{cl_hgcn_forward.4} parent=11 // pred_fallthru
          _
        // Predicated region
        $region25: #{cl_hgcn_forward.4} parent=11 // pred_check
          %p255 = pneg %p175
        $region26: #{cl_hgcn_forward.4} parent=11 // pred_check_branch
          %257 = sbr.rel (%p255) target = $region28
        $region27: #{cl_hgcn_forward.4} parent=11 // pred_region
          _
        $region28: #{cl_hgcn_forward.4} parent=11 // pred_fallthru
          _
      $region12: #{cl_hgcn_forward.4} parent=5 // pred_fallthru
        _
      %p258 = scmp.lt.s32.totalorder %s14, 8
      // Predicated region
      $region29: #{cl_hgcn_forward.4} parent=5 // pred_check
        %p259 = pneg %p258
      $region30: #{cl_hgcn_forward.4} parent=5 // pred_check_branch
        %261 = sbr.rel (%p259) target = $region32
      $region31: #{cl_hgcn_forward.4} parent=5 // pred_region
        // Predicated region
        $region33: #{cl_hgcn_forward.4} parent=31 // pred_check
          %p262 = pneg %p57
        $region34: #{cl_hgcn_forward.4} parent=31 // pred_check_branch
          %264 = sbr.rel (%p262) target = $region36
        $region35: #{cl_hgcn_forward.4} parent=31 // pred_region
          %s265 = sand.u32 %s47, 1
          %s266 = sand.u32 %s47, 1
          %s267 = smul.addr %s266, 64
          %s268 = scalar_lea.vmem [#allocation3], %s267
          %s269 = smul.u32 16, %s22
          %s270 = smul.addr %s269, 2
          %s271 = sadd.s32 %s23, %s270
          %s272 = smul.addr %s21, 64
          %s273 = sadd.s32 %s271, %s272
          %s274 = smul.addr %s273, 4
          %s275 = scalar_lea.vmem %s0, %s274
          // Predicated region
          $region37: #{cl_hgcn_forward.4} parent=35 // pred_check
            _
          $region38: #{cl_hgcn_forward.4} parent=35 // pred_check_branch
            %277 = sbr.rel (0) target = $region40
          $region39: #{cl_hgcn_forward.4} parent=35 // pred_region
            // Predicated region
            $region41: #{cl_hgcn_forward.4} parent=39 // pred_check
              _
            $region42: #{cl_hgcn_forward.4} parent=39 // pred_check_branch
              %279 = sbr.rel target = $region44
            $region43: #{cl_hgcn_forward.4} parent=39 // pred_region
              // Predicated region
              $region56: #{cl_hgcn_forward.4} parent=43 // pred_check
                _
              $region57: #{cl_hgcn_forward.4} parent=43 // pred_check_branch
                %325 = sbr.rel (0) target = $region59
              $region58: #{cl_hgcn_forward.4} parent=43 // pred_region
                loop: start=0, step=1, limit=1
                $region60: #{cl_hgcn_forward.4} parent=58 // loop_pre_header
                  _
                $region61: #{cl_hgcn_forward.4} parent=58 // loop_header
                  %s327 = sphi 0, %s331
                  %p328 = scmp.ge.s32.totalorder %s327, 1
                  %s332 = sphi %s275, %s275
                  %s333 = sphi %s268, %s268
                $region62: #{cl_hgcn_forward.4} parent=58 // loop_header_branch
                  %330 = sbr.rel (%p328) target = $region66
                $region63: #{cl_hgcn_forward.4} parent=58 // loop_body
                  _
                $region64: #{cl_hgcn_forward.4} parent=58 // loop_footer
                  %s331 = sadd.s32 1, %s327
                $region65: #{cl_hgcn_forward.4} parent=58 // loop_footer_branch
                  %326 = sbr.rel target = $region61
                $region66: #{cl_hgcn_forward.4} parent=58 // loop_exit
                  _
                %s335 = ssub.s32 16, 1
                loop: start=0, step=1, limit=1
                $region67: #{cl_hgcn_forward.4} parent=58 // loop_pre_header
                  _
                $region68: #{cl_hgcn_forward.4} parent=58 // loop_header
                  %s337 = sphi 0, %s341
                  %p338 = scmp.ge.s32.totalorder %s337, 1
                  %s342 = sphi %s275, %s275
                  %s343 = sphi %s268, %s268
                $region69: #{cl_hgcn_forward.4} parent=58 // loop_header_branch
                  %340 = sbr.rel (%p338) target = $region73
                $region70: #{cl_hgcn_forward.4} parent=58 // loop_body
                  %v344 = vld [vmem:[%s342] sm:%s335]
                  %345 = vst [vmem:[%s343] sm:%s335] %v344
                  %v346 = vld [vmem:[%s342 + $0x8] sm:%s335]
                  %347 = vst [vmem:[%s343 + $0x4] sm:%s335] %v346
                  %v348 = vld [vmem:[%s342 + $0x10] sm:%s335]
                  %349 = vst [vmem:[%s343 + $0x8] sm:%s335] %v348
                  %v350 = vld [vmem:[%s342 + $0x18] sm:%s335]
                  %351 = vst [vmem:[%s343 + $0xc] sm:%s335] %v350
                  %v352 = vld [vmem:[%s342 + $0x20] sm:%s335]
                  %353 = vst [vmem:[%s343 + $0x10] sm:%s335] %v352
                  %v354 = vld [vmem:[%s342 + $0x28] sm:%s335]
                  %355 = vst [vmem:[%s343 + $0x14] sm:%s335] %v354
                  %v356 = vld [vmem:[%s342 + $0x30] sm:%s335]
                  %357 = vst [vmem:[%s343 + $0x18] sm:%s335] %v356
                  %v358 = vld [vmem:[%s342 + $0x38] sm:%s335]
                  %359 = vst [vmem:[%s343 + $0x1c] sm:%s335] %v358
                  %v360 = vld [vmem:[%s342 + $0x40] sm:%s335]
                  %361 = vst [vmem:[%s343 + $0x20] sm:%s335] %v360
                  %v362 = vld [vmem:[%s342 + $0x48] sm:%s335]
                  %363 = vst [vmem:[%s343 + $0x24] sm:%s335] %v362
                  %v364 = vld [vmem:[%s342 + $0x50] sm:%s335]
                  %365 = vst [vmem:[%s343 + $0x28] sm:%s335] %v364
                  %v366 = vld [vmem:[%s342 + $0x58] sm:%s335]
                  %367 = vst [vmem:[%s343 + $0x2c] sm:%s335] %v366
                  %v368 = vld [vmem:[%s342 + $0x60] sm:%s335]
                  %369 = vst [vmem:[%s343 + $0x30] sm:%s335] %v368
                  %v370 = vld [vmem:[%s342 + $0x68] sm:%s335]
                  %371 = vst [vmem:[%s343 + $0x34] sm:%s335] %v370
                  %v372 = vld [vmem:[%s342 + $0x70] sm:%s335]
                  %373 = vst [vmem:[%s343 + $0x38] sm:%s335] %v372
                  %v374 = vld [vmem:[%s342 + $0x78] sm:%s335]
                  %375 = vst [vmem:[%s343 + $0x3c] sm:%s335] %v374
                $region71: #{cl_hgcn_forward.4} parent=58 // loop_footer
                  %s341 = sadd.s32 1, %s337
                $region72: #{cl_hgcn_forward.4} parent=58 // loop_footer_branch
                  %336 = sbr.rel target = $region68
                $region73: #{cl_hgcn_forward.4} parent=58 // loop_exit
                  _
              $region59: #{cl_hgcn_forward.4} parent=43 // pred_fallthru
                _
            $region44: #{cl_hgcn_forward.4} parent=39 // pred_fallthru
              _
            // Predicated region
            $region45: #{cl_hgcn_forward.4} parent=39 // pred_check
              _
            $region46: #{cl_hgcn_forward.4} parent=39 // pred_check_branch
              %281 = sbr.rel (0) target = $region48
            $region47: #{cl_hgcn_forward.4} parent=39 // pred_region
              %s283 = ssub.s32 16, 1
              loop: start=0, step=1, limit=1
              $region49: #{cl_hgcn_forward.4} parent=47 // loop_pre_header
                _
              $region50: #{cl_hgcn_forward.4} parent=47 // loop_header
                %s285 = sphi 0, %s289
                %p286 = scmp.ge.s32.totalorder %s285, 1
                %s290 = sphi %s275, %s275
                %s291 = sphi %s268, %s268
              $region51: #{cl_hgcn_forward.4} parent=47 // loop_header_branch
                %288 = sbr.rel (%p286) target = $region55
              $region52: #{cl_hgcn_forward.4} parent=47 // loop_body
                %v292 = vld [vmem:[%s290] sm:%s283]
                %293 = vst [vmem:[%s291] sm:%s283] %v292
                %v294 = vld [vmem:[%s290 + $0x8] sm:%s283]
                %295 = vst [vmem:[%s291 + $0x4] sm:%s283] %v294
                %v296 = vld [vmem:[%s290 + $0x10] sm:%s283]
                %297 = vst [vmem:[%s291 + $0x8] sm:%s283] %v296
                %v298 = vld [vmem:[%s290 + $0x18] sm:%s283]
                %299 = vst [vmem:[%s291 + $0xc] sm:%s283] %v298
                %v300 = vld [vmem:[%s290 + $0x20] sm:%s283]
                %301 = vst [vmem:[%s291 + $0x10] sm:%s283] %v300
                %v302 = vld [vmem:[%s290 + $0x28] sm:%s283]
                %303 = vst [vmem:[%s291 + $0x14] sm:%s283] %v302
                %v304 = vld [vmem:[%s290 + $0x30] sm:%s283]
                %305 = vst [vmem:[%s291 + $0x18] sm:%s283] %v304
                %v306 = vld [vmem:[%s290 + $0x38] sm:%s283]
                %307 = vst [vmem:[%s291 + $0x1c] sm:%s283] %v306
                %v308 = vld [vmem:[%s290 + $0x40] sm:%s283]
                %309 = vst [vmem:[%s291 + $0x20] sm:%s283] %v308
                %v310 = vld [vmem:[%s290 + $0x48] sm:%s283]
                %311 = vst [vmem:[%s291 + $0x24] sm:%s283] %v310
                %v312 = vld [vmem:[%s290 + $0x50] sm:%s283]
                %313 = vst [vmem:[%s291 + $0x28] sm:%s283] %v312
                %v314 = vld [vmem:[%s290 + $0x58] sm:%s283]
                %315 = vst [vmem:[%s291 + $0x2c] sm:%s283] %v314
                %v316 = vld [vmem:[%s290 + $0x60] sm:%s283]
                %317 = vst [vmem:[%s291 + $0x30] sm:%s283] %v316
                %v318 = vld [vmem:[%s290 + $0x68] sm:%s283]
                %319 = vst [vmem:[%s291 + $0x34] sm:%s283] %v318
                %v320 = vld [vmem:[%s290 + $0x70] sm:%s283]
                %321 = vst [vmem:[%s291 + $0x38] sm:%s283] %v320
                %v322 = vld [vmem:[%s290 + $0x78] sm:%s283]
                %323 = vst [vmem:[%s291 + $0x3c] sm:%s283] %v322
              $region53: #{cl_hgcn_forward.4} parent=47 // loop_footer
                %s289 = sadd.s32 1, %s285
              $region54: #{cl_hgcn_forward.4} parent=47 // loop_footer_branch
                %284 = sbr.rel target = $region50
              $region55: #{cl_hgcn_forward.4} parent=47 // loop_exit
                _
            $region48: #{cl_hgcn_forward.4} parent=39 // pred_fallthru
              _
          $region40: #{cl_hgcn_forward.4} parent=35 // pred_fallthru
            _
          %376 = vnop
        $region36: #{cl_hgcn_forward.4} parent=31 // pred_fallthru
          _
        // Predicated region
        $region74: #{cl_hgcn_forward.4} parent=31 // pred_check
          %p377 = pneg %p85
        $region75: #{cl_hgcn_forward.4} parent=31 // pred_check_branch
          %379 = sbr.rel (%p377) target = $region77
        $region76: #{cl_hgcn_forward.4} parent=31 // pred_region
          %s380 = smul.u32 16, %s23
          %p381 = scmp.lt.s32.totalorder %s21, 1
          %s382 = scalar_select %p381, %s21, 1
          %p383 = scmp.lt.s32.totalorder %s380, 31
          %s384 = scalar_select %p383, %s380, 31
          %s385 = smul.addr %s382, 32
          %s386 = sadd.s32 %s384, %s385
          %s387 = smul.addr %s386, 4
          %s388 = scalar_lea.vmem %s1, %s387
          %s389 = smul.u32 16, %s23
        $region77: #{cl_hgcn_forward.4} parent=31 // pred_fallthru
          _
      $region32: #{cl_hgcn_forward.4} parent=5 // pred_fallthru
        _
      %p390 = scmp.le.s32.totalorder 1, %s14
      %p391 = scmp.lt.s32.totalorder %s14, 9
      %p392 = pnand %p390, %p391
      %p393 = pneg %p392
      // Predicated region
      $region78: #{cl_hgcn_forward.4} parent=5 // pred_check
        _
      $region79: #{cl_hgcn_forward.4} parent=5 // pred_check_branch
        %395 = sbr.rel (%p392) target = $region81
      $region80: #{cl_hgcn_forward.4} parent=5 // pred_region
        %s396 = ssub.s32 %s14, 1
        %s397 = sand.u32 %s50, 1
        %s398 = sand.u32 %s50, 1
        %s399 = smul.addr %s398, 64
        %s400 = scalar_lea.vmem [#allocation3], %s399
        // Predicated region
        $region82: #{cl_hgcn_forward.4} parent=80 // pred_check
          %p401 = pneg %p63
        $region83: #{cl_hgcn_forward.4} parent=80 // pred_check_branch
          %403 = sbr.rel (%p401) target = $region85
        $region84: #{cl_hgcn_forward.4} parent=80 // pred_region
          _
        $region85: #{cl_hgcn_forward.4} parent=80 // pred_fallthru
          _
        %s404 = sand.u32 %s50, 1
        %s405 = sand.u32 %s50, 1
        %s406 = smul.addr %s405, 64
        %s407 = scalar_lea.vmem [#allocation3], %s406
        %p408 = pneg %p63
        %p409 = pneg %p60
        %s410 = smul.u32 16, %s26
        %p411 = scmp.lt.s32.totalorder %s24, 1
        %s412 = scalar_select %p411, %s24, 1
        %p413 = scmp.lt.s32.totalorder %s410, 31
        %s414 = scalar_select %p413, %s410, 31
        %s415 = smul.addr %s412, 32
        %s416 = sadd.s32 %s414, %s415
        %s417 = smul.addr %s416, 4
        %s418 = scalar_lea.vmem %s1, %s417
        %p419 = pneg %p91
        %p420 = pneg %p88
        %p421 = pneg %p112
        %p422 = pneg %p109
        %p423 = pneg %p133
        %p424 = pneg %p130
        %p425 = pneg %p154
        %p426 = pneg %p151
        %p427 = pneg %p175
        %p428 = pneg %p172
        %p429 = pneg %p203
        %p430 = pneg %p200
        %s431 = smul.u32 16, %s25
        %p432 = scmp.lt.s32.totalorder %s24, 1
        %s433 = scalar_select %p432, %s24, 1
        %p434 = scmp.lt.s32.totalorder %s431, 31
        %s435 = scalar_select %p434, %s431, 31
        %s436 = smul.addr %s433, 32
        %s437 = sadd.s32 %s435, %s436
        %s438 = smul.addr %s437, 8
        %s439 = scalar_lea.vmem %s6, %s438
        %p440 = pneg %p231
        %p441 = pneg %p228
        %s442 = smul.u32 16, %s25
        %p443 = scmp.lt.s32.totalorder %s24, 1
        %s444 = scalar_select %p443, %s24, 1
        %p445 = scmp.lt.s32.totalorder %s442, 31
        %s446 = scalar_select %p445, %s442, 31
        %s447 = smul.addr %s444, 32
        %s448 = sadd.s32 %s446, %s447
        %s449 = smul.addr %s448, 4
        %s450 = scalar_lea.vmem %s7, %s449
        %s451 = smul.u32 16, %s25
        %s452 = smul.u32 16, %s26
        %p453 = scmp.lt.s32.totalorder %s24, 1
        %s454 = scalar_select %p453, %s24, 1
        %p455 = scmp.lt.s32.totalorder %s452, 31
        %s456 = scalar_select %p455, %s452, 31
        %s457 = smul.addr %s454, 32
        %s458 = sadd.s32 %s456, %s457
        %s459 = smul.addr %s458, 4
        %s460 = scalar_lea.vmem %s1, %s459
        %s461 = smul.u32 16, %s26
        %s462 = smul.u32 16, %s25
        %p463 = scmp.lt.s32.totalorder %s24, 1
        %s464 = scalar_select %p463, %s24, 1
        %p465 = scmp.lt.s32.totalorder %s462, 31
        %s466 = scalar_select %p465, %s462, 31
        %s467 = smul.addr %s464, 32
        %s468 = sadd.s32 %s466, %s467
        %s469 = smul.addr %s468, 8
        %s470 = scalar_lea.vmem %s6, %s469
        %s471 = smul.u32 16, %s25
        %s472 = smul.u32 16, %s25
        %p473 = scmp.lt.s32.totalorder %s24, 1
        %s474 = scalar_select %p473, %s24, 1
        %p475 = scmp.lt.s32.totalorder %s472, 31
        %s476 = scalar_select %p475, %s472, 31
        %s477 = smul.addr %s474, 32
        %s478 = sadd.s32 %s476, %s477
        %s479 = smul.addr %s478, 4
        %s480 = scalar_lea.vmem %s7, %s479
        %s481 = smul.u32 16, %s25
        %p483 = scmp.eq.s32.totalorder %s26, 0
        // Predicated region
        $region86: #{cl_hgcn_forward.4} parent=80 // pred_check
          %p484 = pneg %p483
        $region87: #{cl_hgcn_forward.4} parent=80 // pred_check_branch
          %486 = sbr.rel (%p484) target = $region89
        $region88: #{cl_hgcn_forward.4} parent=80 // pred_region
          %487 = vst [vmem:[#allocation2] sm:$0xff] 0.0
          %488 = vst [vmem:[#allocation2 + $0x8] sm:$0xff] 0.0
          %489 = vst [vmem:[#allocation2 + $0x10] sm:$0xff] 0.0
          %490 = vst [vmem:[#allocation2 + $0x18] sm:$0xff] 0.0
          %491 = vst [vmem:[#allocation2 + $0x20] sm:$0xff] 0.0
          %492 = vst [vmem:[#allocation2 + $0x28] sm:$0xff] 0.0
          %493 = vst [vmem:[#allocation2 + $0x30] sm:$0xff] 0.0
          %494 = vst [vmem:[#allocation2 + $0x38] sm:$0xff] 0.0
          %495 = vst [vmem:[#allocation2 + $0x40] sm:$0xff] 0.0
          %496 = vst [vmem:[#allocation2 + $0x48] sm:$0xff] 0.0
          %497 = vst [vmem:[#allocation2 + $0x50] sm:$0xff] 0.0
          %498 = vst [vmem:[#allocation2 + $0x58] sm:$0xff] 0.0
          %499 = vst [vmem:[#allocation2 + $0x60] sm:$0xff] 0.0
          %500 = vst [vmem:[#allocation2 + $0x68] sm:$0xff] 0.0
          %501 = vst [vmem:[#allocation2 + $0x70] sm:$0xff] 0.0
          %502 = vst [vmem:[#allocation2 + $0x78] sm:$0xff] 0.0
        $region89: #{cl_hgcn_forward.4} parent=80 // pred_fallthru
          _
        %v503 = vld [vmem:[#allocation2] sm:$0xff]
        %v504 = vld [vmem:[#allocation2 + $0x8] sm:$0xff]
        %v505 = vld [vmem:[#allocation2 + $0x10] sm:$0xff]
        %v506 = vld [vmem:[#allocation2 + $0x18] sm:$0xff]
        %v507 = vld [vmem:[#allocation2 + $0x20] sm:$0xff]
        %v508 = vld [vmem:[#allocation2 + $0x28] sm:$0xff]
        %v509 = vld [vmem:[#allocation2 + $0x30] sm:$0xff]
        %v510 = vld [vmem:[#allocation2 + $0x38] sm:$0xff]
        %v511 = vld [vmem:[#allocation2 + $0x40] sm:$0xff]
        %v512 = vld [vmem:[#allocation2 + $0x48] sm:$0xff]
        %v513 = vld [vmem:[#allocation2 + $0x50] sm:$0xff]
        %v514 = vld [vmem:[#allocation2 + $0x58] sm:$0xff]
        %v515 = vld [vmem:[#allocation2 + $0x60] sm:$0xff]
        %v516 = vld [vmem:[#allocation2 + $0x68] sm:$0xff]
        %v517 = vld [vmem:[#allocation2 + $0x70] sm:$0xff]
        %v518 = vld [vmem:[#allocation2 + $0x78] sm:$0xff]
        %v519 = vld [vmem:[%s400] sm:$0xf]
        %v520 = vld [vmem:[%s400 + $0x4] sm:$0xf]
        %v521 = vld [vmem:[%s400 + $0x8] sm:$0xf]
        %v522 = vld [vmem:[%s400 + $0xc] sm:$0xf]
        %v523 = vld [vmem:[%s400 + $0x10] sm:$0xf]
        %v524 = vld [vmem:[%s400 + $0x14] sm:$0xf]
        %v525 = vld [vmem:[%s400 + $0x18] sm:$0xf]
        %v526 = vld [vmem:[%s400 + $0x1c] sm:$0xf]
        %v527 = vld [vmem:[%s400 + $0x20] sm:$0xf]
        %v528 = vld [vmem:[%s400 + $0x24] sm:$0xf]
        %v529 = vld [vmem:[%s400 + $0x28] sm:$0xf]
        %v530 = vld [vmem:[%s400 + $0x2c] sm:$0xf]
        %v531 = vld [vmem:[%s400 + $0x30] sm:$0xf]
        %v532 = vld [vmem:[%s400 + $0x34] sm:$0xf]
        %v533 = vld [vmem:[%s400 + $0x38] sm:$0xf]
        %v534 = vld [vmem:[%s400 + $0x3c] sm:$0xf]
        %v535 = vld [vmem:[%s460] sm:$0xf]
        %v536 = vld [vmem:[%s460 + $0x4] sm:$0xf]
        %v537 = vld [vmem:[%s460 + $0x8] sm:$0xf]
        %v538 = vld [vmem:[%s460 + $0xc] sm:$0xf]
        %v539 = vld [vmem:[%s460 + $0x10] sm:$0xf]
        %v540 = vld [vmem:[%s460 + $0x14] sm:$0xf]
        %v541 = vld [vmem:[%s460 + $0x18] sm:$0xf]
        %v542 = vld [vmem:[%s460 + $0x1c] sm:$0xf]
        %v543 = vld [vmem:[%s460 + $0x20] sm:$0xf]
        %v544 = vld [vmem:[%s460 + $0x24] sm:$0xf]
        %v545 = vld [vmem:[%s460 + $0x28] sm:$0xf]
        %v546 = vld [vmem:[%s460 + $0x2c] sm:$0xf]
        %v547 = vld [vmem:[%s460 + $0x30] sm:$0xf]
        %v548 = vld [vmem:[%s460 + $0x34] sm:$0xf]
        %v549 = vld [vmem:[%s460 + $0x38] sm:$0xf]
        %v550 = vld [vmem:[%s460 + $0x3c] sm:$0xf]
        %v567 = vunpack.c.l.b16 %v519
        %v568 = vunpack.c.l.b16 %v520
        %v569 = vunpack.c.l.b16 %v521
        %v570 = vunpack.c.l.b16 %v522
        %v571 = vunpack.c.l.b16 %v523
        %v572 = vunpack.c.l.b16 %v524
        %v573 = vunpack.c.l.b16 %v525
        %v574 = vunpack.c.l.b16 %v526
        %v575 = vunpack.c.l.b16 %v527
        %v576 = vunpack.c.l.b16 %v528
        %v577 = vunpack.c.l.b16 %v529
        %v578 = vunpack.c.l.b16 %v530
        %v579 = vunpack.c.l.b16 %v531
        %v580 = vunpack.c.l.b16 %v532
        %v581 = vunpack.c.l.b16 %v533
        %v582 = vunpack.c.l.b16 %v534
        %v583 = vpack.c.b16 %v568, %v567
        %v584 = vpack.c.b16 %v570, %v569
        %v585 = vpack.c.b16 %v572, %v571
        %v586 = vpack.c.b16 %v574, %v573
        %v587 = vpack.c.b16 %v576, %v575
        %v588 = vpack.c.b16 %v578, %v577
        %v589 = vpack.c.b16 %v580, %v579
        %v590 = vpack.c.b16 %v582, %v581
        %v615 = vunpack.c.l.b16 %v535
        %v616 = vunpack.c.l.b16 %v536
        %v617 = vunpack.c.l.b16 %v537
        %v618 = vunpack.c.l.b16 %v538
        %v619 = vunpack.c.l.b16 %v539
        %v620 = vunpack.c.l.b16 %v540
        %v621 = vunpack.c.l.b16 %v541
        %v622 = vunpack.c.l.b16 %v542
        %v623 = vunpack.c.l.b16 %v543
        %v624 = vunpack.c.l.b16 %v544
        %v625 = vunpack.c.l.b16 %v545
        %v626 = vunpack.c.l.b16 %v546
        %v627 = vunpack.c.l.b16 %v547
        %v628 = vunpack.c.l.b16 %v548
        %v629 = vunpack.c.l.b16 %v549
        %v630 = vunpack.c.l.b16 %v550
        %v631 = vpack.c.b16 %v616, %v615
        %v632 = vpack.c.b16 %v618, %v617
        %v633 = vpack.c.b16 %v620, %v619
        %v634 = vpack.c.b16 %v622, %v621
        %v635 = vpack.c.b16 %v624, %v623
        %v636 = vpack.c.b16 %v626, %v625
        %v637 = vpack.c.b16 %v628, %v627
        %v638 = vpack.c.b16 %v630, %v629
        %647 = vmatprep.subr.bf16.mxu0 0
        %648 = vmatpush1.bf16.msra.mxu0 %v638
        %649 = vmatprep.subr.bf16.mxu0 0
        %650 = vmatpush1.bf16.msra.mxu0 %v637
        %651 = vmatprep.subr.bf16.mxu0 0
        %652 = vmatpush1.bf16.msra.mxu0 %v636
        %653 = vmatprep.subr.bf16.mxu0 0
        %654 = vmatpush1.bf16.msra.mxu0 %v635
        %655 = vmatprep.subr.bf16.mxu0 0
        %656 = vmatpush1.bf16.msra.mxu0 %v634
        %657 = vmatprep.subr.bf16.mxu0 0
        %658 = vmatpush1.bf16.msra.mxu0 %v633
        %659 = vmatprep.subr.bf16.mxu0 0
        %660 = vmatpush1.bf16.msra.mxu0 %v632
        %661 = vmatprep.subr.bf16.mxu0 0
        %662 = vmatpush1.bf16.msra.mxu0 %v631
        %663 = vmatprep.subr.bf16.mxu0 0
        %664 = vmatpush2.bf16.msra.mxu0 0
        %665 = vmatprep.subr.bf16.mxu0 0
        %666 = vmatpush2.bf16.msra.mxu0 0
        %667 = vmatprep.subr.bf16.mxu0 0
        %668 = vmatpush2.bf16.msra.mxu0 0
        %669 = vmatprep.subr.bf16.mxu0 0
        %670 = vmatpush2.bf16.msra.mxu0 0
        %671 = vmatprep.subr.bf16.mxu0 0
        %672 = vmatpush2.bf16.msra.mxu0 0
        %673 = vmatprep.subr.bf16.mxu0 0
        %674 = vmatpush2.bf16.msra.mxu0 0
        %675 = vmatprep.subr.bf16.mxu0 0
        %676 = vmatpush2.bf16.msra.mxu0 0
        %677 = vmatprep.subr.bf16.mxu0 0
        %678 = vmatpush2.bf16.msra.mxu0 0
        %679 = vmatprep.mubr.bf16.mxu0 0
        %680 = vmatmul.mubr.bf16.gmra.mxu0 %v583
        %v681 = vpop.f32.mrf.mxu0
        %v682 = vadd.f32 0.0, %v681
        %v683 = vpop.f32.mrf.mxu0
        %v684 = vpop.f32.mrf.mxu0
        %v685 = vadd.f32 0.0, %v684
        %v686 = vpop.f32.mrf.mxu0
        %687 = vmatprep.mubr.bf16.mxu0 0
        %688 = vmatmul.mubr.bf16.gmra.mxu0 %v584
        %v689 = vpop.f32.mrf.mxu0
        %v690 = vadd.f32 0.0, %v689
        %v691 = vpop.f32.mrf.mxu0
        %v692 = vpop.f32.mrf.mxu0
        %v693 = vadd.f32 0.0, %v692
        %v694 = vpop.f32.mrf.mxu0
        %695 = vmatprep.mubr.bf16.mxu0 0
        %696 = vmatmul.mubr.bf16.gmra.mxu0 %v585
        %v697 = vpop.f32.mrf.mxu0
        %v698 = vadd.f32 0.0, %v697
        %v699 = vpop.f32.mrf.mxu0
        %v700 = vpop.f32.mrf.mxu0
        %v701 = vadd.f32 0.0, %v700
        %v702 = vpop.f32.mrf.mxu0
        %703 = vmatprep.mubr.bf16.mxu0 0
        %704 = vmatmul.mubr.bf16.gmra.mxu0 %v586
        %v705 = vpop.f32.mrf.mxu0
        %v706 = vadd.f32 0.0, %v705
        %v707 = vpop.f32.mrf.mxu0
        %v708 = vpop.f32.mrf.mxu0
        %v709 = vadd.f32 0.0, %v708
        %v710 = vpop.f32.mrf.mxu0
        %711 = vmatprep.mubr.bf16.mxu0 0
        %712 = vmatmul.mubr.bf16.gmra.mxu0 %v587
        %v713 = vpop.f32.mrf.mxu0
        %v714 = vadd.f32 0.0, %v713
        %v715 = vpop.f32.mrf.mxu0
        %v716 = vpop.f32.mrf.mxu0
        %v717 = vadd.f32 0.0, %v716
        %v718 = vpop.f32.mrf.mxu0
        %719 = vmatprep.mubr.bf16.mxu0 0
        %720 = vmatmul.mubr.bf16.gmra.mxu0 %v588
        %v721 = vpop.f32.mrf.mxu0
        %v722 = vadd.f32 0.0, %v721
        %v723 = vpop.f32.mrf.mxu0
        %v724 = vpop.f32.mrf.mxu0
        %v725 = vadd.f32 0.0, %v724
        %v726 = vpop.f32.mrf.mxu0
        %727 = vmatprep.mubr.bf16.mxu0 0
        %728 = vmatmul.mubr.bf16.gmra.mxu0 %v589
        %v729 = vpop.f32.mrf.mxu0
        %v730 = vadd.f32 0.0, %v729
        %v731 = vpop.f32.mrf.mxu0
        %v732 = vpop.f32.mrf.mxu0
        %v733 = vadd.f32 0.0, %v732
        %v734 = vpop.f32.mrf.mxu0
        %735 = vmatprep.mubr.bf16.mxu0 0
        %736 = vmatmul.mubr.bf16.gmra.mxu0 %v590
        %v737 = vpop.f32.mrf.mxu0
        %v738 = vadd.f32 0.0, %v737
        %v739 = vpop.f32.mrf.mxu0
        %v740 = vpop.f32.mrf.mxu0
        %v741 = vadd.f32 0.0, %v740
        %v742 = vpop.f32.mrf.mxu0
        %743 = vdwg.mxu0
        %v744 = vadd.f32 %v503, %v682
        %v745 = vadd.f32 %v504, %v685
        %v746 = vadd.f32 %v505, %v690
        %v747 = vadd.f32 %v506, %v693
        %v748 = vadd.f32 %v507, %v698
        %v749 = vadd.f32 %v508, %v701
        %v750 = vadd.f32 %v509, %v706
        %v751 = vadd.f32 %v510, %v709
        %v752 = vadd.f32 %v511, %v714
        %v753 = vadd.f32 %v512, %v717
        %v754 = vadd.f32 %v513, %v722
        %v755 = vadd.f32 %v514, %v725
        %v756 = vadd.f32 %v515, %v730
        %v757 = vadd.f32 %v516, %v733
        %v758 = vadd.f32 %v517, %v738
        %v759 = vadd.f32 %v518, %v741
        %760 = vst [vmem:[#allocation2] sm:$0xff] %v744
        %761 = vst [vmem:[#allocation2 + $0x8] sm:$0xff] %v745
        %762 = vst [vmem:[#allocation2 + $0x10] sm:$0xff] %v746
        %763 = vst [vmem:[#allocation2 + $0x18] sm:$0xff] %v747
        %764 = vst [vmem:[#allocation2 + $0x20] sm:$0xff] %v748
        %765 = vst [vmem:[#allocation2 + $0x28] sm:$0xff] %v749
        %766 = vst [vmem:[#allocation2 + $0x30] sm:$0xff] %v750
        %767 = vst [vmem:[#allocation2 + $0x38] sm:$0xff] %v751
        %768 = vst [vmem:[#allocation2 + $0x40] sm:$0xff] %v752
        %769 = vst [vmem:[#allocation2 + $0x48] sm:$0xff] %v753
        %770 = vst [vmem:[#allocation2 + $0x50] sm:$0xff] %v754
        %771 = vst [vmem:[#allocation2 + $0x58] sm:$0xff] %v755
        %772 = vst [vmem:[#allocation2 + $0x60] sm:$0xff] %v756
        %773 = vst [vmem:[#allocation2 + $0x68] sm:$0xff] %v757
        %774 = vst [vmem:[#allocation2 + $0x70] sm:$0xff] %v758
        %775 = vst [vmem:[#allocation2 + $0x78] sm:$0xff] %v759
        %p776 = scmp.eq.s32.totalorder %s26, 1
        // Predicated region
        $region90: #{cl_hgcn_forward.4} parent=80 // pred_check
          %p777 = pneg %p776
        $region91: #{cl_hgcn_forward.4} parent=80 // pred_check_branch
          %779 = sbr.rel (%p777) target = $region93
        $region92: #{cl_hgcn_forward.4} parent=80 // pred_region
          %v780 = vld [vmem:[#allocation2] sm:$0xff]
          %v781 = vld [vmem:[#allocation2 + $0x8] sm:$0xff]
          %v782 = vld [vmem:[#allocation2 + $0x10] sm:$0xff]
          %v783 = vld [vmem:[#allocation2 + $0x18] sm:$0xff]
          %v784 = vld [vmem:[#allocation2 + $0x20] sm:$0xff]
          %v785 = vld [vmem:[#allocation2 + $0x28] sm:$0xff]
          %v786 = vld [vmem:[#allocation2 + $0x30] sm:$0xff]
          %v787 = vld [vmem:[#allocation2 + $0x38] sm:$0xff]
          %v788 = vld [vmem:[#allocation2 + $0x40] sm:$0xff]
          %v789 = vld [vmem:[#allocation2 + $0x48] sm:$0xff]
          %v790 = vld [vmem:[#allocation2 + $0x50] sm:$0xff]
          %v791 = vld [vmem:[#allocation2 + $0x58] sm:$0xff]
          %v792 = vld [vmem:[#allocation2 + $0x60] sm:$0xff]
          %v793 = vld [vmem:[#allocation2 + $0x68] sm:$0xff]
          %v794 = vld [vmem:[#allocation2 + $0x70] sm:$0xff]
          %v795 = vld [vmem:[#allocation2 + $0x78] sm:$0xff]
          %vm796 = vcmp.ge.f32.partialorder %v780, 0.0
          %vm797 = vcmp.ge.f32.partialorder %v781, 0.0
          %vm798 = vcmp.ge.f32.partialorder %v782, 0.0
          %vm799 = vcmp.ge.f32.partialorder %v783, 0.0
          %vm800 = vcmp.ge.f32.partialorder %v784, 0.0
          %vm801 = vcmp.ge.f32.partialorder %v785, 0.0
          %vm802 = vcmp.ge.f32.partialorder %v786, 0.0
          %vm803 = vcmp.ge.f32.partialorder %v787, 0.0
          %vm804 = vcmp.ge.f32.partialorder %v788, 0.0
          %vm805 = vcmp.ge.f32.partialorder %v789, 0.0
          %vm806 = vcmp.ge.f32.partialorder %v790, 0.0
          %vm807 = vcmp.ge.f32.partialorder %v791, 0.0
          %vm808 = vcmp.ge.f32.partialorder %v792, 0.0
          %vm809 = vcmp.ge.f32.partialorder %v793, 0.0
          %vm810 = vcmp.ge.f32.partialorder %v794, 0.0
          %vm811 = vcmp.ge.f32.partialorder %v795, 0.0
          %v812 = vmul.f32 %v780, 0.25
          %v813 = vmul.f32 %v781, 0.25
          %v814 = vmul.f32 %v782, 0.25
          %v815 = vmul.f32 %v783, 0.25
          %v816 = vmul.f32 %v784, 0.25
          %v817 = vmul.f32 %v785, 0.25
          %v818 = vmul.f32 %v786, 0.25
          %v819 = vmul.f32 %v787, 0.25
          %v820 = vmul.f32 %v788, 0.25
          %v821 = vmul.f32 %v789, 0.25
          %v822 = vmul.f32 %v790, 0.25
          %v823 = vmul.f32 %v791, 0.25
          %v824 = vmul.f32 %v792, 0.25
          %v825 = vmul.f32 %v793, 0.25
          %v826 = vmul.f32 %v794, 0.25
          %v827 = vmul.f32 %v795, 0.25
          %v828 = vsel %vm796, %v780, %v812
          %v829 = vsel %vm797, %v781, %v813
          %v830 = vsel %vm798, %v782, %v814
          %v831 = vsel %vm799, %v783, %v815
          %v832 = vsel %vm800, %v784, %v816
          %v833 = vsel %vm801, %v785, %v817
          %v834 = vsel %vm802, %v786, %v818
          %v835 = vsel %vm803, %v787, %v819
          %v836 = vsel %vm804, %v788, %v820
          %v837 = vsel %vm805, %v789, %v821
          %v838 = vsel %vm806, %v790, %v822
          %v839 = vsel %vm807, %v791, %v823
          %v840 = vsel %vm808, %v792, %v824
          %v841 = vsel %vm809, %v793, %v825
          %v842 = vsel %vm810, %v794, %v826
          %v843 = vsel %vm811, %v795, %v827
          %844 = vst [vmem:[%s470] sm:$0xff] %v828
          %845 = vst [vmem:[%s470 + $0x8] sm:$0xff] %v829
          %846 = vst [vmem:[%s470 + $0x10] sm:$0xff] %v830
          %847 = vst [vmem:[%s470 + $0x18] sm:$0xff] %v831
          %848 = vst [vmem:[%s470 + $0x20] sm:$0xff] %v832
          %849 = vst [vmem:[%s470 + $0x28] sm:$0xff] %v833
          %850 = vst [vmem:[%s470 + $0x30] sm:$0xff] %v834
          %851 = vst [vmem:[%s470 + $0x38] sm:$0xff] %v835
          %852 = vst [vmem:[%s470 + $0x40] sm:$0xff] %v836
          %853 = vst [vmem:[%s470 + $0x48] sm:$0xff] %v837
          %854 = vst [vmem:[%s470 + $0x50] sm:$0xff] %v838
          %855 = vst [vmem:[%s470 + $0x58] sm:$0xff] %v839
          %856 = vst [vmem:[%s470 + $0x60] sm:$0xff] %v840
          %857 = vst [vmem:[%s470 + $0x68] sm:$0xff] %v841
          %858 = vst [vmem:[%s470 + $0x70] sm:$0xff] %v842
          %859 = vst [vmem:[%s470 + $0x78] sm:$0xff] %v843
          %v860 = vpack.c.bf16 %v829, %v828
          %v861 = vpack.c.bf16 %v831, %v830
          %v862 = vpack.c.bf16 %v833, %v832
          %v863 = vpack.c.bf16 %v835, %v834
          %v864 = vpack.c.bf16 %v837, %v836
          %v865 = vpack.c.bf16 %v839, %v838
          %v866 = vpack.c.bf16 %v841, %v840
          %v867 = vpack.c.bf16 %v843, %v842
          %v868 = vld [vmem:[%s2] sm:$0xf]
          %v869 = vld [vmem:[%s2 + $0x4] sm:$0xf]
          %v870 = vld [vmem:[%s2 + $0x8] sm:$0xf]
          %v871 = vld [vmem:[%s2 + $0xc] sm:$0xf]
          %v872 = vld [vmem:[%s2 + $0x10] sm:$0xf]
          %v873 = vld [vmem:[%s2 + $0x14] sm:$0xf]
          %v874 = vld [vmem:[%s2 + $0x18] sm:$0xf]
          %v875 = vld [vmem:[%s2 + $0x1c] sm:$0xf]
          %v876 = vld [vmem:[%s2 + $0x20] sm:$0xf]
          %v877 = vld [vmem:[%s2 + $0x24] sm:$0xf]
          %v878 = vld [vmem:[%s2 + $0x28] sm:$0xf]
          %v879 = vld [vmem:[%s2 + $0x2c] sm:$0xf]
          %v880 = vld [vmem:[%s2 + $0x30] sm:$0xf]
          %v881 = vld [vmem:[%s2 + $0x34] sm:$0xf]
          %v882 = vld [vmem:[%s2 + $0x38] sm:$0xf]
          %v883 = vld [vmem:[%s2 + $0x3c] sm:$0xf]
          %v884 = vld [vmem:[%s3] sm:$0x1]
          %v886 = vlaneseq
          %v887 = vshrl.u32 %v886, 7
          %v888 = vsub.s32 0, %v887
          %v889 = vrot.slane %v884, %v888
          %v907 = vunpack.c.l.b16 %v868
          %v908 = vunpack.c.l.b16 %v869
          %v909 = vunpack.c.l.b16 %v870
          %v910 = vunpack.c.l.b16 %v871
          %v911 = vunpack.c.l.b16 %v872
          %v912 = vunpack.c.l.b16 %v873
          %v913 = vunpack.c.l.b16 %v874
          %v914 = vunpack.c.l.b16 %v875
          %v915 = vunpack.c.l.b16 %v876
          %v916 = vunpack.c.l.b16 %v877
          %v917 = vunpack.c.l.b16 %v878
          %v918 = vunpack.c.l.b16 %v879
          %v919 = vunpack.c.l.b16 %v880
          %v920 = vunpack.c.l.b16 %v881
          %v921 = vunpack.c.l.b16 %v882
          %v922 = vunpack.c.l.b16 %v883
          %v923 = vpack.c.b16 %v908, %v907
          %v924 = vpack.c.b16 %v910, %v909
          %v925 = vpack.c.b16 %v912, %v911
          %v926 = vpack.c.b16 %v914, %v913
          %v927 = vpack.c.b16 %v916, %v915
          %v928 = vpack.c.b16 %v918, %v917
          %v929 = vpack.c.b16 %v920, %v919
          %v930 = vpack.c.b16 %v922, %v921
          %939 = vmatprep.subr.bf16.mxu0 0
          %940 = vmatpush1.bf16.msra.mxu0 %v930
          %941 = vmatprep.subr.bf16.mxu0 0
          %942 = vmatpush1.bf16.msra.mxu0 %v929
          %943 = vmatprep.subr.bf16.mxu0 0
          %944 = vmatpush1.bf16.msra.mxu0 %v928
          %945 = vmatprep.subr.bf16.mxu0 0
          %946 = vmatpush1.bf16.msra.mxu0 %v927
          %947 = vmatprep.subr.bf16.mxu0 0
          %948 = vmatpush1.bf16.msra.mxu0 %v926
          %949 = vmatprep.subr.bf16.mxu0 0
          %950 = vmatpush1.bf16.msra.mxu0 %v925
          %951 = vmatprep.subr.bf16.mxu0 0
          %952 = vmatpush1.bf16.msra.mxu0 %v924
          %953 = vmatprep.subr.bf16.mxu0 0
          %954 = vmatpush1.bf16.msra.mxu0 %v923
          %955 = vmatprep.subr.bf16.mxu0 0
          %956 = vmatpush2.bf16.msra.mxu0 0
          %957 = vmatprep.subr.bf16.mxu0 0
          %958 = vmatpush2.bf16.msra.mxu0 0
          %959 = vmatprep.subr.bf16.mxu0 0
          %960 = vmatpush2.bf16.msra.mxu0 0
          %961 = vmatprep.subr.bf16.mxu0 0
          %962 = vmatpush2.bf16.msra.mxu0 0
          %963 = vmatprep.subr.bf16.mxu0 0
          %964 = vmatpush2.bf16.msra.mxu0 0
          %965 = vmatprep.subr.bf16.mxu0 0
          %966 = vmatpush2.bf16.msra.mxu0 0
          %967 = vmatprep.subr.bf16.mxu0 0
          %968 = vmatpush2.bf16.msra.mxu0 0
          %969 = vmatprep.subr.bf16.mxu0 0
          %970 = vmatpush2.bf16.msra.mxu0 0
          %971 = vmatprep.mubr.bf16.mxu0 0
          %972 = vmatmul.mubr.bf16.gmra.mxu0 %v860
          %v973 = vpop.f32.mrf.mxu0
          %v974 = vadd.f32 %v889, %v973
          %v975 = vpop.f32.mrf.mxu0
          %v976 = vpop.f32.mrf.mxu0
          %v977 = vadd.f32 %v889, %v976
          %v978 = vpop.f32.mrf.mxu0
          %979 = vmatprep.mubr.bf16.mxu0 0
          %980 = vmatmul.mubr.bf16.gmra.mxu0 %v861
          %v981 = vpop.f32.mrf.mxu0
          %v982 = vadd.f32 %v889, %v981
          %v983 = vpop.f32.mrf.mxu0
          %v984 = vpop.f32.mrf.mxu0
          %v985 = vadd.f32 %v889, %v984
          %v986 = vpop.f32.mrf.mxu0
          %987 = vmatprep.mubr.bf16.mxu0 0
          %988 = vmatmul.mubr.bf16.gmra.mxu0 %v862
          %v989 = vpop.f32.mrf.mxu0
          %v990 = vadd.f32 %v889, %v989
          %v991 = vpop.f32.mrf.mxu0
          %v992 = vpop.f32.mrf.mxu0
          %v993 = vadd.f32 %v889, %v992
          %v994 = vpop.f32.mrf.mxu0
          %995 = vmatprep.mubr.bf16.mxu0 0
          %996 = vmatmul.mubr.bf16.gmra.mxu0 %v863
          %v997 = vpop.f32.mrf.mxu0
          %v998 = vadd.f32 %v889, %v997
          %v999 = vpop.f32.mrf.mxu0
          %v1000 = vpop.f32.mrf.mxu0
          %v1001 = vadd.f32 %v889, %v1000
          %v1002 = vpop.f32.mrf.mxu0
          %1003 = vmatprep.mubr.bf16.mxu0 0
          %1004 = vmatmul.mubr.bf16.gmra.mxu0 %v864
          %v1005 = vpop.f32.mrf.mxu0
          %v1006 = vadd.f32 %v889, %v1005
          %v1007 = vpop.f32.mrf.mxu0
          %v1008 = vpop.f32.mrf.mxu0
          %v1009 = vadd.f32 %v889, %v1008
          %v1010 = vpop.f32.mrf.mxu0
          %1011 = vmatprep.mubr.bf16.mxu0 0
          %1012 = vmatmul.mubr.bf16.gmra.mxu0 %v865
          %v1013 = vpop.f32.mrf.mxu0
          %v1014 = vadd.f32 %v889, %v1013
          %v1015 = vpop.f32.mrf.mxu0
          %v1016 = vpop.f32.mrf.mxu0
          %v1017 = vadd.f32 %v889, %v1016
          %v1018 = vpop.f32.mrf.mxu0
          %1019 = vmatprep.mubr.bf16.mxu0 0
          %1020 = vmatmul.mubr.bf16.gmra.mxu0 %v866
          %v1021 = vpop.f32.mrf.mxu0
          %v1022 = vadd.f32 %v889, %v1021
          %v1023 = vpop.f32.mrf.mxu0
          %v1024 = vpop.f32.mrf.mxu0
          %v1025 = vadd.f32 %v889, %v1024
          %v1026 = vpop.f32.mrf.mxu0
          %1027 = vmatprep.mubr.bf16.mxu0 0
          %1028 = vmatmul.mubr.bf16.gmra.mxu0 %v867
          %v1029 = vpop.f32.mrf.mxu0
          %v1030 = vadd.f32 %v889, %v1029
          %v1031 = vpop.f32.mrf.mxu0
          %v1032 = vpop.f32.mrf.mxu0
          %v1033 = vadd.f32 %v889, %v1032
          %v1034 = vpop.f32.mrf.mxu0
          %1035 = vdwg.mxu0
          %vm1036 = vcmp.gt.f32.partialorder %v974, 0.0
          %vm1037 = vcmp.gt.f32.partialorder %v977, 0.0
          %vm1038 = vcmp.gt.f32.partialorder %v982, 0.0
          %vm1039 = vcmp.gt.f32.partialorder %v985, 0.0
          %vm1040 = vcmp.gt.f32.partialorder %v990, 0.0
          %vm1041 = vcmp.gt.f32.partialorder %v993, 0.0
          %vm1042 = vcmp.gt.f32.partialorder %v998, 0.0
          %vm1043 = vcmp.gt.f32.partialorder %v1001, 0.0
          %vm1044 = vcmp.gt.f32.partialorder %v1006, 0.0
          %vm1045 = vcmp.gt.f32.partialorder %v1009, 0.0
          %vm1046 = vcmp.gt.f32.partialorder %v1014, 0.0
          %vm1047 = vcmp.gt.f32.partialorder %v1017, 0.0
          %vm1048 = vcmp.gt.f32.partialorder %v1022, 0.0
          %vm1049 = vcmp.gt.f32.partialorder %v1025, 0.0
          %vm1050 = vcmp.gt.f32.partialorder %v1030, 0.0
          %vm1051 = vcmp.gt.f32.partialorder %v1033, 0.0
          %v1052 = vmin.f32 %v974, 0.0
          %v1053 = vmin.f32 %v977, 0.0
          %v1054 = vmin.f32 %v982, 0.0
          %v1055 = vmin.f32 %v985, 0.0
          %v1056 = vmin.f32 %v990, 0.0
          %v1057 = vmin.f32 %v993, 0.0
          %v1058 = vmin.f32 %v998, 0.0
          %v1059 = vmin.f32 %v1001, 0.0
          %v1060 = vmin.f32 %v1006, 0.0
          %v1061 = vmin.f32 %v1009, 0.0
          %v1062 = vmin.f32 %v1014, 0.0
          %v1063 = vmin.f32 %v1017, 0.0
          %v1064 = vmin.f32 %v1022, 0.0
          %v1065 = vmin.f32 %v1025, 0.0
          %v1066 = vmin.f32 %v1030, 0.0
          %v1067 = vmin.f32 %v1033, 0.0
          %v1068 = vmul.f32 %v1052, 1.442695
          %v1069 = vpow.pop %v1068
          %v1070 = vmul.f32 %v1053, 1.442695
          %v1071 = vpow.pop %v1070
          %v1072 = vmul.f32 %v1054, 1.442695
          %v1073 = vpow.pop %v1072
          %v1074 = vmul.f32 %v1055, 1.442695
          %v1075 = vpow.pop %v1074
          %v1076 = vmul.f32 %v1056, 1.442695
          %v1077 = vpow.pop %v1076
          %v1078 = vmul.f32 %v1057, 1.442695
          %v1079 = vpow.pop %v1078
          %v1080 = vmul.f32 %v1058, 1.442695
          %v1081 = vpow.pop %v1080
          %v1082 = vmul.f32 %v1059, 1.442695
          %v1083 = vpow.pop %v1082
          %v1084 = vmul.f32 %v1060, 1.442695
          %v1085 = vpow.pop %v1084
          %v1086 = vmul.f32 %v1061, 1.442695
          %v1087 = vpow.pop %v1086
          %v1088 = vmul.f32 %v1062, 1.442695
          %v1089 = vpow.pop %v1088
          %v1090 = vmul.f32 %v1063, 1.442695
          %v1091 = vpow.pop %v1090
          %v1092 = vmul.f32 %v1064, 1.442695
          %v1093 = vpow.pop %v1092
          %v1094 = vmul.f32 %v1065, 1.442695
          %v1095 = vpow.pop %v1094
          %v1096 = vmul.f32 %v1066, 1.442695
          %v1097 = vpow.pop %v1096
          %v1098 = vmul.f32 %v1067, 1.442695
          %v1099 = vpow.pop %v1098
          %v1100 = vsub.f32 %v1069, 1.0
          %v1101 = vsub.f32 %v1071, 1.0
          %v1102 = vsub.f32 %v1073, 1.0
          %v1103 = vsub.f32 %v1075, 1.0
          %v1104 = vsub.f32 %v1077, 1.0
          %v1105 = vsub.f32 %v1079, 1.0
          %v1106 = vsub.f32 %v1081, 1.0
          %v1107 = vsub.f32 %v1083, 1.0
          %v1108 = vsub.f32 %v1085, 1.0
          %v1109 = vsub.f32 %v1087, 1.0
          %v1110 = vsub.f32 %v1089, 1.0
          %v1111 = vsub.f32 %v1091, 1.0
          %v1112 = vsub.f32 %v1093, 1.0
          %v1113 = vsub.f32 %v1095, 1.0
          %v1114 = vsub.f32 %v1097, 1.0
          %v1115 = vsub.f32 %v1099, 1.0
          %v1116 = vsel %vm1036, %v974, %v1100
          %v1117 = vsel %vm1037, %v977, %v1101
          %v1118 = vsel %vm1038, %v982, %v1102
          %v1119 = vsel %vm1039, %v985, %v1103
          %v1120 = vsel %vm1040, %v990, %v1104
          %v1121 = vsel %vm1041, %v993, %v1105
          %v1122 = vsel %vm1042, %v998, %v1106
          %v1123 = vsel %vm1043, %v1001, %v1107
          %v1124 = vsel %vm1044, %v1006, %v1108
          %v1125 = vsel %vm1045, %v1009, %v1109
          %v1126 = vsel %vm1046, %v1014, %v1110
          %v1127 = vsel %vm1047, %v1017, %v1111
          %v1128 = vsel %vm1048, %v1022, %v1112
          %v1129 = vsel %vm1049, %v1025, %v1113
          %v1130 = vsel %vm1050, %v1030, %v1114
          %v1131 = vsel %vm1051, %v1033, %v1115
          %v1132 = vpack.c.bf16 %v1117, %v1116
          %v1133 = vpack.c.bf16 %v1119, %v1118
          %v1134 = vpack.c.bf16 %v1121, %v1120
          %v1135 = vpack.c.bf16 %v1123, %v1122
          %v1136 = vpack.c.bf16 %v1125, %v1124
          %v1137 = vpack.c.bf16 %v1127, %v1126
          %v1138 = vpack.c.bf16 %v1129, %v1128
          %v1139 = vpack.c.bf16 %v1131, %v1130
          %v1140 = vld [vmem:[%s4] sm:$0xf]
          %v1141 = vld [vmem:[%s4 + $0x4] sm:$0xf]
          %v1142 = vld [vmem:[%s4 + $0x8] sm:$0xf]
          %v1143 = vld [vmem:[%s4 + $0xc] sm:$0xf]
          %v1144 = vld [vmem:[%s4 + $0x10] sm:$0xf]
          %v1145 = vld [vmem:[%s4 + $0x14] sm:$0xf]
          %v1146 = vld [vmem:[%s4 + $0x18] sm:$0xf]
          %v1147 = vld [vmem:[%s4 + $0x1c] sm:$0xf]
          %v1148 = vld [vmem:[%s4 + $0x20] sm:$0xf]
          %v1149 = vld [vmem:[%s4 + $0x24] sm:$0xf]
          %v1150 = vld [vmem:[%s4 + $0x28] sm:$0xf]
          %v1151 = vld [vmem:[%s4 + $0x2c] sm:$0xf]
          %v1152 = vld [vmem:[%s4 + $0x30] sm:$0xf]
          %v1153 = vld [vmem:[%s4 + $0x34] sm:$0xf]
          %v1154 = vld [vmem:[%s4 + $0x38] sm:$0xf]
          %v1155 = vld [vmem:[%s4 + $0x3c] sm:$0xf]
          %v1156 = vld [vmem:[%s5] sm:$0x1]
          %v1158 = vlaneseq
          %v1159 = vshrl.u32 %v1158, 7
          %v1160 = vsub.s32 0, %v1159
          %v1161 = vrot.slane %v1156, %v1160
          %v1179 = vunpack.c.l.b16 %v1140
          %v1180 = vunpack.c.l.b16 %v1141
          %v1181 = vunpack.c.l.b16 %v1142
          %v1182 = vunpack.c.l.b16 %v1143
          %v1183 = vunpack.c.l.b16 %v1144
          %v1184 = vunpack.c.l.b16 %v1145
          %v1185 = vunpack.c.l.b16 %v1146
          %v1186 = vunpack.c.l.b16 %v1147
          %v1187 = vunpack.c.l.b16 %v1148
          %v1188 = vunpack.c.l.b16 %v1149
          %v1189 = vunpack.c.l.b16 %v1150
          %v1190 = vunpack.c.l.b16 %v1151
          %v1191 = vunpack.c.l.b16 %v1152
          %v1192 = vunpack.c.l.b16 %v1153
          %v1193 = vunpack.c.l.b16 %v1154
          %v1194 = vunpack.c.l.b16 %v1155
          %v1195 = vpack.c.b16 %v1180, %v1179
          %v1196 = vpack.c.b16 %v1182, %v1181
          %v1197 = vpack.c.b16 %v1184, %v1183
          %v1198 = vpack.c.b16 %v1186, %v1185
          %v1199 = vpack.c.b16 %v1188, %v1187
          %v1200 = vpack.c.b16 %v1190, %v1189
          %v1201 = vpack.c.b16 %v1192, %v1191
          %v1202 = vpack.c.b16 %v1194, %v1193
          %1211 = vmatprep.subr.bf16.mxu0 0
          %1212 = vmatpush1.bf16.msra.mxu0 %v1202
          %1213 = vmatprep.subr.bf16.mxu0 0
          %1214 = vmatpush1.bf16.msra.mxu0 %v1201
          %1215 = vmatprep.subr.bf16.mxu0 0
          %1216 = vmatpush1.bf16.msra.mxu0 %v1200
          %1217 = vmatprep.subr.bf16.mxu0 0
          %1218 = vmatpush1.bf16.msra.mxu0 %v1199
          %1219 = vmatprep.subr.bf16.mxu0 0
          %1220 = vmatpush1.bf16.msra.mxu0 %v1198
          %1221 = vmatprep.subr.bf16.mxu0 0
          %1222 = vmatpush1.bf16.msra.mxu0 %v1197
          %1223 = vmatprep.subr.bf16.mxu0 0
          %1224 = vmatpush1.bf16.msra.mxu0 %v1196
          %1225 = vmatprep.subr.bf16.mxu0 0
          %1226 = vmatpush1.bf16.msra.mxu0 %v1195
          %1227 = vmatprep.subr.bf16.mxu0 0
          %1228 = vmatpush2.bf16.msra.mxu0 0
          %1229 = vmatprep.subr.bf16.mxu0 0
          %1230 = vmatpush2.bf16.msra.mxu0 0
          %1231 = vmatprep.subr.bf16.mxu0 0
          %1232 = vmatpush2.bf16.msra.mxu0 0
          %1233 = vmatprep.subr.bf16.mxu0 0
          %1234 = vmatpush2.bf16.msra.mxu0 0
          %1235 = vmatprep.subr.bf16.mxu0 0
          %1236 = vmatpush2.bf16.msra.mxu0 0
          %1237 = vmatprep.subr.bf16.mxu0 0
          %1238 = vmatpush2.bf16.msra.mxu0 0
          %1239 = vmatprep.subr.bf16.mxu0 0
          %1240 = vmatpush2.bf16.msra.mxu0 0
          %1241 = vmatprep.subr.bf16.mxu0 0
          %1242 = vmatpush2.bf16.msra.mxu0 0
          %1243 = vmatprep.mubr.bf16.mxu0 0
          %1244 = vmatmul.mubr.bf16.gmra.mxu0 %v1132
          %v1245 = vpop.f32.mrf.mxu0
          %v1246 = vadd.f32 %v1161, %v1245
          %v1247 = vpop.f32.mrf.mxu0
          %v1248 = vpop.f32.mrf.mxu0
          %v1249 = vadd.f32 %v1161, %v1248
          %v1250 = vpop.f32.mrf.mxu0
          %1251 = vmatprep.mubr.bf16.mxu0 0
          %1252 = vmatmul.mubr.bf16.gmra.mxu0 %v1133
          %v1253 = vpop.f32.mrf.mxu0
          %v1254 = vadd.f32 %v1161, %v1253
          %v1255 = vpop.f32.mrf.mxu0
          %v1256 = vpop.f32.mrf.mxu0
          %v1257 = vadd.f32 %v1161, %v1256
          %v1258 = vpop.f32.mrf.mxu0
          %1259 = vmatprep.mubr.bf16.mxu0 0
          %1260 = vmatmul.mubr.bf16.gmra.mxu0 %v1134
          %v1261 = vpop.f32.mrf.mxu0
          %v1262 = vadd.f32 %v1161, %v1261
          %v1263 = vpop.f32.mrf.mxu0
          %v1264 = vpop.f32.mrf.mxu0
          %v1265 = vadd.f32 %v1161, %v1264
          %v1266 = vpop.f32.mrf.mxu0
          %1267 = vmatprep.mubr.bf16.mxu0 0
          %1268 = vmatmul.mubr.bf16.gmra.mxu0 %v1135
          %v1269 = vpop.f32.mrf.mxu0
          %v1270 = vadd.f32 %v1161, %v1269
          %v1271 = vpop.f32.mrf.mxu0
          %v1272 = vpop.f32.mrf.mxu0
          %v1273 = vadd.f32 %v1161, %v1272
          %v1274 = vpop.f32.mrf.mxu0
          %1275 = vmatprep.mubr.bf16.mxu0 0
          %1276 = vmatmul.mubr.bf16.gmra.mxu0 %v1136
          %v1277 = vpop.f32.mrf.mxu0
          %v1278 = vadd.f32 %v1161, %v1277
          %v1279 = vpop.f32.mrf.mxu0
          %v1280 = vpop.f32.mrf.mxu0
          %v1281 = vadd.f32 %v1161, %v1280
          %v1282 = vpop.f32.mrf.mxu0
          %1283 = vmatprep.mubr.bf16.mxu0 0
          %1284 = vmatmul.mubr.bf16.gmra.mxu0 %v1137
          %v1285 = vpop.f32.mrf.mxu0
          %v1286 = vadd.f32 %v1161, %v1285
          %v1287 = vpop.f32.mrf.mxu0
          %v1288 = vpop.f32.mrf.mxu0
          %v1289 = vadd.f32 %v1161, %v1288
          %v1290 = vpop.f32.mrf.mxu0
          %1291 = vmatprep.mubr.bf16.mxu0 0
          %1292 = vmatmul.mubr.bf16.gmra.mxu0 %v1138
          %v1293 = vpop.f32.mrf.mxu0
          %v1294 = vadd.f32 %v1161, %v1293
          %v1295 = vpop.f32.mrf.mxu0
          %v1296 = vpop.f32.mrf.mxu0
          %v1297 = vadd.f32 %v1161, %v1296
          %v1298 = vpop.f32.mrf.mxu0
          %1299 = vmatprep.mubr.bf16.mxu0 0
          %1300 = vmatmul.mubr.bf16.gmra.mxu0 %v1139
          %v1301 = vpop.f32.mrf.mxu0
          %v1302 = vadd.f32 %v1161, %v1301
          %v1303 = vpop.f32.mrf.mxu0
          %v1304 = vpop.f32.mrf.mxu0
          %v1305 = vadd.f32 %v1161, %v1304
          %v1306 = vpop.f32.mrf.mxu0
          %1307 = vdwg.mxu0
          %v1308 = vmul.f32 %v1246, %v1246
          %v1309 = vmul.f32 %v1249, %v1249
          %v1310 = vmul.f32 %v1254, %v1254
          %v1311 = vmul.f32 %v1257, %v1257
          %v1312 = vmul.f32 %v1262, %v1262
          %v1313 = vmul.f32 %v1265, %v1265
          %v1314 = vmul.f32 %v1270, %v1270
          %v1315 = vmul.f32 %v1273, %v1273
          %v1316 = vmul.f32 %v1278, %v1278
          %v1317 = vmul.f32 %v1281, %v1281
          %v1318 = vmul.f32 %v1286, %v1286
          %v1319 = vmul.f32 %v1289, %v1289
          %v1320 = vmul.f32 %v1294, %v1294
          %v1321 = vmul.f32 %v1297, %v1297
          %v1322 = vmul.f32 %v1302, %v1302
          %v1323 = vmul.f32 %v1305, %v1305
          %1324 = vadd.xlane.f32.xlu0 %v1308
          %v1325 = vpop.xlane.xlu0 %1324
          %1326 = vadd.xlane.f32.xlu0 %v1309
          %v1327 = vpop.xlane.xlu0 %1326
          %1328 = vadd.xlane.f32.xlu0 %v1310
          %v1329 = vpop.xlane.xlu0 %1328
          %1330 = vadd.xlane.f32.xlu0 %v1311
          %v1331 = vpop.xlane.xlu0 %1330
          %1332 = vadd.xlane.f32.xlu0 %v1312
          %v1333 = vpop.xlane.xlu0 %1332
          %1334 = vadd.xlane.f32.xlu0 %v1313
          %v1335 = vpop.xlane.xlu0 %1334
          %1336 = vadd.xlane.f32.xlu0 %v1314
          %v1337 = vpop.xlane.xlu0 %1336
          %1338 = vadd.xlane.f32.xlu0 %v1315
          %v1339 = vpop.xlane.xlu0 %1338
          %1340 = vadd.xlane.f32.xlu0 %v1316
          %v1341 = vpop.xlane.xlu0 %1340
          %1342 = vadd.xlane.f32.xlu0 %v1317
          %v1343 = vpop.xlane.xlu0 %1342
          %1344 = vadd.xlane.f32.xlu0 %v1318
          %v1345 = vpop.xlane.xlu0 %1344
          %1346 = vadd.xlane.f32.xlu0 %v1319
          %v1347 = vpop.xlane.xlu0 %1346
          %1348 = vadd.xlane.f32.xlu0 %v1320
          %v1349 = vpop.xlane.xlu0 %1348
          %1350 = vadd.xlane.f32.xlu0 %v1321
          %v1351 = vpop.xlane.xlu0 %1350
          %1352 = vadd.xlane.f32.xlu0 %v1322
          %v1353 = vpop.xlane.xlu0 %1352
          %1354 = vadd.xlane.f32.xlu0 %v1323
          %v1355 = vpop.xlane.xlu0 %1354
          %v1356 = vmax.f32 %v1325, 1e-24
          %v1357 = vmax.f32 %v1327, 1e-24
          %v1358 = vmax.f32 %v1329, 1e-24
          %v1359 = vmax.f32 %v1331, 1e-24
          %v1360 = vmax.f32 %v1333, 1e-24
          %v1361 = vmax.f32 %v1335, 1e-24
          %v1362 = vmax.f32 %v1337, 1e-24
          %v1363 = vmax.f32 %v1339, 1e-24
          %v1364 = vmax.f32 %v1341, 1e-24
          %v1365 = vmax.f32 %v1343, 1e-24
          %v1366 = vmax.f32 %v1345, 1e-24
          %v1367 = vmax.f32 %v1347, 1e-24
          %v1368 = vmax.f32 %v1349, 1e-24
          %v1369 = vmax.f32 %v1351, 1e-24
          %v1370 = vmax.f32 %v1353, 1e-24
          %v1371 = vmax.f32 %v1355, 1e-24
          %v1372 = vrsqrt.pop %v1356
          %v1373 = vrsqrt.pop %v1357
          %v1374 = vrsqrt.pop %v1358
          %v1375 = vrsqrt.pop %v1359
          %v1376 = vrsqrt.pop %v1360
          %v1377 = vrsqrt.pop %v1361
          %v1378 = vrsqrt.pop %v1362
          %v1379 = vrsqrt.pop %v1363
          %v1380 = vrsqrt.pop %v1364
          %v1381 = vrsqrt.pop %v1365
          %v1382 = vrsqrt.pop %v1366
          %v1383 = vrsqrt.pop %v1367
          %v1384 = vrsqrt.pop %v1368
          %v1385 = vrsqrt.pop %v1369
          %v1386 = vrsqrt.pop %v1370
          %v1387 = vrsqrt.pop %v1371
          %v1388 = vmul.f32 %v1246, %v1372
          %v1389 = vmul.f32 %v1249, %v1373
          %v1390 = vmul.f32 %v1254, %v1374
          %v1391 = vmul.f32 %v1257, %v1375
          %v1392 = vmul.f32 %v1262, %v1376
          %v1393 = vmul.f32 %v1265, %v1377
          %v1394 = vmul.f32 %v1270, %v1378
          %v1395 = vmul.f32 %v1273, %v1379
          %v1396 = vmul.f32 %v1278, %v1380
          %v1397 = vmul.f32 %v1281, %v1381
          %v1398 = vmul.f32 %v1286, %v1382
          %v1399 = vmul.f32 %v1289, %v1383
          %v1400 = vmul.f32 %v1294, %v1384
          %v1401 = vmul.f32 %v1297, %v1385
          %v1402 = vmul.f32 %v1302, %v1386
          %v1403 = vmul.f32 %v1305, %v1387
          %v1404 = vpack.c.bf16 %v1389, %v1388
          %v1405 = vpack.c.bf16 %v1391, %v1390
          %v1406 = vpack.c.bf16 %v1393, %v1392
          %v1407 = vpack.c.bf16 %v1395, %v1394
          %v1408 = vpack.c.bf16 %v1397, %v1396
          %v1409 = vpack.c.bf16 %v1399, %v1398
          %v1410 = vpack.c.bf16 %v1401, %v1400
          %v1411 = vpack.c.bf16 %v1403, %v1402
          %v1420 = vunpack.c.l.b16 %v1404
          %v1421 = vunpack.c.h.b16 %v1404
          %v1422 = vunpack.c.l.b16 %v1405
          %v1423 = vunpack.c.h.b16 %v1405
          %v1424 = vunpack.c.l.b16 %v1406
          %v1425 = vunpack.c.h.b16 %v1406
          %v1426 = vunpack.c.l.b16 %v1407
          %v1427 = vunpack.c.h.b16 %v1407
          %v1428 = vunpack.c.l.b16 %v1408
          %v1429 = vunpack.c.h.b16 %v1408
          %v1430 = vunpack.c.l.b16 %v1409
          %v1431 = vunpack.c.h.b16 %v1409
          %v1432 = vunpack.c.l.b16 %v1410
          %v1433 = vunpack.c.h.b16 %v1410
          %v1434 = vunpack.c.l.b16 %v1411
          %v1435 = vunpack.c.h.b16 %v1411
          %v1436 = vpack.c.b16 %v1420, %v1420
          %v1437 = vpack.c.b16 %v1421, %v1421
          %v1438 = vpack.c.b16 %v1422, %v1422
          %v1439 = vpack.c.b16 %v1423, %v1423
          %v1440 = vpack.c.b16 %v1424, %v1424
          %v1441 = vpack.c.b16 %v1425, %v1425
          %v1442 = vpack.c.b16 %v1426, %v1426
          %v1443 = vpack.c.b16 %v1427, %v1427
          %v1444 = vpack.c.b16 %v1428, %v1428
          %v1445 = vpack.c.b16 %v1429, %v1429
          %v1446 = vpack.c.b16 %v1430, %v1430
          %v1447 = vpack.c.b16 %v1431, %v1431
          %v1448 = vpack.c.b16 %v1432, %v1432
          %v1449 = vpack.c.b16 %v1433, %v1433
          %v1450 = vpack.c.b16 %v1434, %v1434
          %v1451 = vpack.c.b16 %v1435, %v1435
          %1468 = vst [vmem:[%s480] sm:$0xf] %v1436
          %1469 = vst [vmem:[%s480 + $0x4] sm:$0xf] %v1437
          %1470 = vst [vmem:[%s480 + $0x8] sm:$0xf] %v1438
          %1471 = vst [vmem:[%s480 + $0xc] sm:$0xf] %v1439
          %1472 = vst [vmem:[%s480 + $0x10] sm:$0xf] %v1440
          %1473 = vst [vmem:[%s480 + $0x14] sm:$0xf] %v1441
          %1474 = vst [vmem:[%s480 + $0x18] sm:$0xf] %v1442
          %1475 = vst [vmem:[%s480 + $0x1c] sm:$0xf] %v1443
          %1476 = vst [vmem:[%s480 + $0x20] sm:$0xf] %v1444
          %1477 = vst [vmem:[%s480 + $0x24] sm:$0xf] %v1445
          %1478 = vst [vmem:[%s480 + $0x28] sm:$0xf] %v1446
          %1479 = vst [vmem:[%s480 + $0x2c] sm:$0xf] %v1447
          %1480 = vst [vmem:[%s480 + $0x30] sm:$0xf] %v1448
          %1481 = vst [vmem:[%s480 + $0x34] sm:$0xf] %v1449
          %1482 = vst [vmem:[%s480 + $0x38] sm:$0xf] %v1450
          %1483 = vst [vmem:[%s480 + $0x3c] sm:$0xf] %v1451
        $region93: #{cl_hgcn_forward.4} parent=80 // pred_fallthru
          _
        %s1484 = smul.u32 16, %s25
        %p1485 = scmp.lt.s32.totalorder %s24, 1
        %s1486 = scalar_select %p1485, %s24, 1
        %p1487 = scmp.lt.s32.totalorder %s1484, 31
        %s1488 = scalar_select %p1487, %s1484, 31
        %s1489 = smul.addr %s1486, 32
        %s1490 = sadd.s32 %s1488, %s1489
        %s1491 = smul.addr %s1490, 8
        %s1492 = scalar_lea.vmem %s6, %s1491
        %s1493 = smul.u32 16, %s25
        %p1494 = scmp.lt.s32.totalorder %s24, 1
        %s1495 = scalar_select %p1494, %s24, 1
        %p1496 = scmp.lt.s32.totalorder %s1493, 31
        %s1497 = scalar_select %p1496, %s1493, 31
        %s1498 = smul.addr %s1495, 32
        %s1499 = sadd.s32 %s1497, %s1498
        %s1500 = smul.addr %s1499, 4
        %s1501 = scalar_lea.vmem %s7, %s1500
        // Predicated region
        $region94: #{cl_hgcn_forward.4} parent=80 // pred_check
          %p1502 = pneg %p200
        $region95: #{cl_hgcn_forward.4} parent=80 // pred_check_branch
          %1504 = sbr.rel (%p1502) target = $region97
        $region96: #{cl_hgcn_forward.4} parent=80 // pred_region
          %s1505 = smul.u32 16, %s25
        $region97: #{cl_hgcn_forward.4} parent=80 // pred_fallthru
          _
        // Predicated region
        $region98: #{cl_hgcn_forward.4} parent=80 // pred_check
          %p1506 = pneg %p228
        $region99: #{cl_hgcn_forward.4} parent=80 // pred_check_branch
          %1508 = sbr.rel (%p1506) target = $region101
        $region100: #{cl_hgcn_forward.4} parent=80 // pred_region
          %s1509 = smul.u32 16, %s25
        $region101: #{cl_hgcn_forward.4} parent=80 // pred_fallthru
          _
      $region81: #{cl_hgcn_forward.4} parent=5 // pred_fallthru
        _
      %p1510 = scmp.le.s32.totalorder 2, %s14
      // Predicated region
      $region102: #{cl_hgcn_forward.4} parent=5 // pred_check
        %p1511 = pneg %p1510
      $region103: #{cl_hgcn_forward.4} parent=5 // pred_check_branch
        %1513 = sbr.rel (%p1511) target = $region105
      $region104: #{cl_hgcn_forward.4} parent=5 // pred_region
        %s1514 = ssub.s32 %s14, 2
        // Predicated region
        $region106: #{cl_hgcn_forward.4} parent=104 // pred_check
          %p1515 = pneg %p206
        $region107: #{cl_hgcn_forward.4} parent=104 // pred_check_branch
          %1517 = sbr.rel (%p1515) target = $region109
        $region108: #{cl_hgcn_forward.4} parent=104 // pred_region
          %s1518 = smul.u32 16, %s28
          %p1519 = scmp.lt.s32.totalorder %s27, 1
          %s1520 = scalar_select %p1519, %s27, 1
          %p1521 = scmp.lt.s32.totalorder %s1518, 31
          %s1522 = scalar_select %p1521, %s1518, 31
          %s1523 = smul.addr %s1520, 32
          %s1524 = sadd.s32 %s1522, %s1523
          %s1525 = smul.addr %s1524, 8
          %s1526 = scalar_lea.vmem %s6, %s1525
        $region109: #{cl_hgcn_forward.4} parent=104 // pred_fallthru
          _
        // Predicated region
        $region110: #{cl_hgcn_forward.4} parent=104 // pred_check
          %p1527 = pneg %p234
        $region111: #{cl_hgcn_forward.4} parent=104 // pred_check_branch
          %1529 = sbr.rel (%p1527) target = $region113
        $region112: #{cl_hgcn_forward.4} parent=104 // pred_region
          %s1530 = smul.u32 16, %s28
          %p1531 = scmp.lt.s32.totalorder %s27, 1
          %s1532 = scalar_select %p1531, %s27, 1
          %p1533 = scmp.lt.s32.totalorder %s1530, 31
          %s1534 = scalar_select %p1533, %s1530, 31
          %s1535 = smul.addr %s1532, 32
          %s1536 = sadd.s32 %s1534, %s1535
          %s1537 = smul.addr %s1536, 4
          %s1538 = scalar_lea.vmem %s7, %s1537
        $region113: #{cl_hgcn_forward.4} parent=104 // pred_fallthru
          _
      $region105: #{cl_hgcn_forward.4} parent=5 // pred_fallthru
        _
    $region6: #{cl_hgcn_forward.4} parent=1 // loop_footer
      %s18 = sadd.s32 1, %s14
    $region7: #{cl_hgcn_forward.4} parent=1 // loop_footer_branch
      %13 = sbr.rel target = $region3
    $region8: #{cl_hgcn_forward.4} parent=1 // loop_exit
      _

// kernel: cl_hgcn_forward.5
$region0: #{cl_hgcn_forward.5}
  #allocation0 [shape = 'u32[]', space=smem, size = 0x4, offset = 0x4, fixed_abs, tag = 'smem constant byte address 0x4 - core index']
  #allocation1 [shape = 'u32[144,128]{1,0:T(1,128)}', space=vmem, size = 0x12000, scoped, tag = 'internal scratch']
  #allocation2 [shape = 'f32[1]{0:T(128)}', space=smem, size = 0x200, scoped, tag = 'scratch operand']
  %s0 = inlined_call_operand.vmem [shape: bf16[2,256,128], index: 0, kind: input, shape index: {}, may-alias: {0,1,2,3}]
  %s1 = inlined_call_operand.vmem [shape: bf16[2,256,128], index: 1, kind: input, shape index: {}, may-alias: {0,1,2,3}]
  %s2 = inlined_call_operand.vmem [shape: bf16[2,256,128], index: 2, kind: input, shape index: {}, may-alias: {0,1,2,3}]
  %s3 = inlined_call_operand.vmem [shape: bf16[2,256,128], index: 3, kind: input, shape index: {}, may-alias: {0,1,2,3}]
  %s4 = inlined_call_operand.hbm [shape: f32[1,1], index: 4, kind: output, shape index: {}]
  %s5 = sld [smem:[#allocation0]]
  $region57: #{cl_hgcn_forward.5} parent=0
    _
  %s7 = ssub.s32 1, %s5
  %s8 = scalar_select 0, %s7, %s5
  $region1: #{cl_hgcn_forward.5} parent=0
    #allocation3 [shape = 'u8[512]{0}', space=smem, size = 0x200, scoped, tag = 'output window, operand 0, single buffered']
    #allocation4 [shape = 's32[2]{0}', space=sflag, size = 0x8, scoped, tag = 'scoped memory for cl_hgcn_forward.5']
    %9 = vsyncpa [#allocation4], 0
    loop: start=0, step=1, limit=4
    $region2: #{cl_hgcn_forward.5} parent=1 // loop_pre_header
      _
    $region3: #{cl_hgcn_forward.5} parent=1 // loop_header
      %s11 = sphi 0, %s15
      %p12 = scmp.ge.s32.totalorder %s11, 4
      %s21 = sphi 0, %s23
      %s24 = sphi 0, %s21
      %s25 = sphi 0, %s24
      %s41 = sphi 0, %s25
      %s47 = sphi 0, %s49
      %s50 = sphi 0, %s47
      %s51 = sphi 0, %s50
      %s67 = sphi 0, %s51
      %s71 = sphi 0, %s71
      %s73 = sphi 0, %s71
      %s74 = sphi 0, %s73
      %s88 = sphi 0, %s74
      %s92 = sphi 0, %s92
      %s94 = sphi 0, %s92
      %s95 = sphi 0, %s94
      %s109 = sphi 0, %s95
      %s113 = sphi 0, %s113
      %s115 = sphi 0, %s113
      %s116 = sphi 0, %s115
      %s130 = sphi 0, %s116
    $region4: #{cl_hgcn_forward.5} parent=1 // loop_header_branch
      %14 = sbr.rel (%p12) target = $region8
    $region5: #{cl_hgcn_forward.5} parent=1 // loop_body
      %s16 = ssub.s32 %s11, 1
      %s17 = ssub.s32 %s11, 2
      %s18 = sadd.s32 %s11, 1
      %s19 = ssub.s32 %s11, %s18
      %p20 = scmp.eq.s32.totalorder %s19, 0
      %s22 = sadd.s32 %s21, 1
      %s23 = scalar_select %p20, %s21, %s22
      %p26 = pneg %p20
      %p27 = scmp.eq.s32.totalorder %s11, 1
      %p28 = por %p26, %p27
      %p29 = scmp.ne.s32.totalorder %s21, %s24
      %p30 = scmp.eq.s32.totalorder %s11, 0
      %p31 = por %p29, %p30
      %p32 = scmp.ne.s32.totalorder %s21, %s24
      %p33 = scmp.eq.s32.totalorder %s16, 1
      %p34 = por %p32, %p33
      %p35 = scmp.ne.s32.totalorder %s24, %s25
      %p36 = scmp.eq.s32.totalorder %s16, 0
      %p37 = por %p35, %p36
      %p38 = scmp.ne.s32.totalorder %s24, %s25
      %p39 = scmp.eq.s32.totalorder %s17, 1
      %p40 = por %p38, %p39
      %p42 = scmp.ne.s32.totalorder %s25, %s41
      %p43 = scmp.eq.s32.totalorder %s17, 0
      %p44 = por %p42, %p43
      %s45 = ssub.s32 %s11, %s18
      %p46 = scmp.eq.s32.totalorder %s45, 0
      %s48 = sadd.s32 %s47, 1
      %s49 = scalar_select %p46, %s47, %s48
      %p52 = pneg %p46
      %p53 = scmp.eq.s32.totalorder %s11, 1
      %p54 = por %p52, %p53
      %p55 = scmp.ne.s32.totalorder %s47, %s50
      %p56 = scmp.eq.s32.totalorder %s11, 0
      %p57 = por %p55, %p56
      %p58 = scmp.ne.s32.totalorder %s47, %s50
      %p59 = scmp.eq.s32.totalorder %s16, 1
      %p60 = por %p58, %p59
      %p61 = scmp.ne.s32.totalorder %s50, %s51
      %p62 = scmp.eq.s32.totalorder %s16, 0
      %p63 = por %p61, %p62
      %p64 = scmp.ne.s32.totalorder %s50, %s51
      %p65 = scmp.eq.s32.totalorder %s17, 1
      %p66 = por %p64, %p65
      %p68 = scmp.ne.s32.totalorder %s51, %s67
      %p69 = scmp.eq.s32.totalorder %s17, 0
      %p70 = por %p68, %p69
      %s72 = sadd.s32 %s71, 1
      %p75 = scmp.eq.s32.totalorder %s11, 1
      %p76 = scmp.ne.s32.totalorder %s71, %s73
      %p77 = scmp.eq.s32.totalorder %s11, 0
      %p78 = por %p76, %p77
      %p79 = scmp.ne.s32.totalorder %s71, %s73
      %p80 = scmp.eq.s32.totalorder %s16, 1
      %p81 = por %p79, %p80
      %p82 = scmp.ne.s32.totalorder %s73, %s74
      %p83 = scmp.eq.s32.totalorder %s16, 0
      %p84 = por %p82, %p83
      %p85 = scmp.ne.s32.totalorder %s73, %s74
      %p86 = scmp.eq.s32.totalorder %s17, 1
      %p87 = por %p85, %p86
      %p89 = scmp.ne.s32.totalorder %s74, %s88
      %p90 = scmp.eq.s32.totalorder %s17, 0
      %p91 = por %p89, %p90
      %s93 = sadd.s32 %s92, 1
      %p96 = scmp.eq.s32.totalorder %s11, 1
      %p97 = scmp.ne.s32.totalorder %s92, %s94
      %p98 = scmp.eq.s32.totalorder %s11, 0
      %p99 = por %p97, %p98
      %p100 = scmp.ne.s32.totalorder %s92, %s94
      %p101 = scmp.eq.s32.totalorder %s16, 1
      %p102 = por %p100, %p101
      %p103 = scmp.ne.s32.totalorder %s94, %s95
      %p104 = scmp.eq.s32.totalorder %s16, 0
      %p105 = por %p103, %p104
      %p106 = scmp.ne.s32.totalorder %s94, %s95
      %p107 = scmp.eq.s32.totalorder %s17, 1
      %p108 = por %p106, %p107
      %p110 = scmp.ne.s32.totalorder %s95, %s109
      %p111 = scmp.eq.s32.totalorder %s17, 0
      %p112 = por %p110, %p111
      %s114 = sadd.s32 %s113, 1
      %p117 = scmp.eq.s32.totalorder %s11, 1
      %p118 = scmp.ne.s32.totalorder %s113, %s115
      %p119 = scmp.eq.s32.totalorder %s11, 0
      %p120 = por %p118, %p119
      %p121 = scmp.ne.s32.totalorder %s113, %s115
      %p122 = scmp.eq.s32.totalorder %s16, 1
      %p123 = por %p121, %p122
      %p124 = scmp.ne.s32.totalorder %s115, %s116
      %p125 = scmp.eq.s32.totalorder %s16, 0
      %p126 = por %p124, %p125
      %p127 = scmp.ne.s32.totalorder %s115, %s116
      %p128 = scmp.eq.s32.totalorder %s17, 1
      %p129 = por %p127, %p128
      %p131 = scmp.ne.s32.totalorder %s116, %s130
      %p132 = scmp.eq.s32.totalorder %s17, 0
      %p133 = por %p131, %p132
      %p134 = scmp.le.s32.totalorder 1, %s11
      %p135 = scmp.lt.s32.totalorder %s11, 3
      %p136 = pnand %p134, %p135
      %p137 = pneg %p136
      // Predicated region
      $region9: #{cl_hgcn_forward.5} parent=5 // pred_check
        _
      $region10: #{cl_hgcn_forward.5} parent=5 // pred_check_branch
        %139 = sbr.rel (%p136) target = $region12
      $region11: #{cl_hgcn_forward.5} parent=5 // pred_region
        %s140 = ssub.s32 %s11, 1
        // Predicated region
        $region13: #{cl_hgcn_forward.5} parent=11 // pred_check
          %p141 = pneg %p84
        $region14: #{cl_hgcn_forward.5} parent=11 // pred_check_branch
          %143 = sbr.rel (%p141) target = $region16
        $region15: #{cl_hgcn_forward.5} parent=11 // pred_region
          _
        $region16: #{cl_hgcn_forward.5} parent=11 // pred_fallthru
          _
        // Predicated region
        $region17: #{cl_hgcn_forward.5} parent=11 // pred_check
          %p144 = pneg %p105
        $region18: #{cl_hgcn_forward.5} parent=11 // pred_check_branch
          %146 = sbr.rel (%p144) target = $region20
        $region19: #{cl_hgcn_forward.5} parent=11 // pred_region
          %s147 = scalar_lea.vmem %s3, 128
        $region20: #{cl_hgcn_forward.5} parent=11 // pred_fallthru
          _
      $region12: #{cl_hgcn_forward.5} parent=5 // pred_fallthru
        _
      %p148 = scmp.lt.s32.totalorder %s11, 2
      // Predicated region
      $region21: #{cl_hgcn_forward.5} parent=5 // pred_check
        %p149 = pneg %p148
      $region22: #{cl_hgcn_forward.5} parent=5 // pred_check_branch
        %151 = sbr.rel (%p149) target = $region24
      $region23: #{cl_hgcn_forward.5} parent=5 // pred_region
        // Predicated region
        $region25: #{cl_hgcn_forward.5} parent=23 // pred_check
          %p152 = pneg %p31
        $region26: #{cl_hgcn_forward.5} parent=23 // pred_check_branch
          %154 = sbr.rel (%p152) target = $region28
        $region27: #{cl_hgcn_forward.5} parent=23 // pred_region
          %s155 = smul.u32 16, %s11
          %p156 = scmp.lt.s32.totalorder %s155, 31
          %s157 = scalar_select %p156, %s155, 31
          %s158 = smul.addr %s157, 4
          %s159 = scalar_lea.vmem %s0, %s158
          %s160 = smul.u32 16, %s11
        $region28: #{cl_hgcn_forward.5} parent=23 // pred_fallthru
          _
        // Predicated region
        $region29: #{cl_hgcn_forward.5} parent=23 // pred_check
          %p161 = pneg %p57
        $region30: #{cl_hgcn_forward.5} parent=23 // pred_check_branch
          %163 = sbr.rel (%p161) target = $region32
        $region31: #{cl_hgcn_forward.5} parent=23 // pred_region
          %s164 = smul.u32 16, %s11
          %p165 = scmp.lt.s32.totalorder %s164, 31
          %s166 = scalar_select %p165, %s164, 31
          %s167 = sadd.s32 %s166, 32
          %s168 = smul.addr %s167, 4
          %s169 = scalar_lea.vmem %s1, %s168
          %s170 = smul.u32 16, %s11
        $region32: #{cl_hgcn_forward.5} parent=23 // pred_fallthru
          _
      $region24: #{cl_hgcn_forward.5} parent=5 // pred_fallthru
        _
      %p171 = scmp.le.s32.totalorder 1, %s11
      %p172 = scmp.lt.s32.totalorder %s11, 3
      %p173 = pnand %p171, %p172
      %p174 = pneg %p173
      // Predicated region
      $region33: #{cl_hgcn_forward.5} parent=5 // pred_check
        _
      $region34: #{cl_hgcn_forward.5} parent=5 // pred_check_branch
        %176 = sbr.rel (%p173) target = $region36
      $region35: #{cl_hgcn_forward.5} parent=5 // pred_region
        %s177 = ssub.s32 %s11, 1
        %s178 = smul.u32 16, %s16
        %p179 = scmp.lt.s32.totalorder %s178, 31
        %s180 = scalar_select %p179, %s178, 31
        %s181 = smul.addr %s180, 4
        %s182 = scalar_lea.vmem %s0, %s181
        %p183 = pneg %p37
        %p184 = pneg %p34
        %s185 = smul.u32 16, %s16
        %p186 = scmp.lt.s32.totalorder %s185, 31
        %s187 = scalar_select %p186, %s185, 31
        %s188 = sadd.s32 %s187, 32
        %s189 = smul.addr %s188, 4
        %s190 = scalar_lea.vmem %s1, %s189
        %p191 = pneg %p63
        %p192 = pneg %p60
        %p193 = pneg %p84
        %p194 = pneg %p81
        %s195 = scalar_lea.vmem %s3, 128
        %p196 = pneg %p105
        %p197 = pneg %p102
        %p198 = pneg %p126
        %p199 = pneg %p123
        %s200 = smul.u32 16, %s16
        %p201 = scmp.lt.s32.totalorder %s200, 31
        %s202 = scalar_select %p201, %s200, 31
        %s203 = smul.addr %s202, 4
        %s204 = scalar_lea.vmem %s0, %s203
        %s205 = smul.u32 16, %s16
        %s206 = smul.u32 16, %s16
        %p207 = scmp.lt.s32.totalorder %s206, 31
        %s208 = scalar_select %p207, %s206, 31
        %s209 = sadd.s32 %s208, 32
        %s210 = smul.addr %s209, 4
        %s211 = scalar_lea.vmem %s1, %s210
        %s212 = smul.u32 16, %s16
        %s213 = scalar_lea.vmem %s3, 128
        %p215 = scmp.eq.s32.totalorder %s16, 0
        // Predicated region
        $region37: #{cl_hgcn_forward.5} parent=35 // pred_check
          %p216 = pneg %p215
        $region38: #{cl_hgcn_forward.5} parent=35 // pred_check_branch
          %218 = sbr.rel (%p216) target = $region40
        $region39: #{cl_hgcn_forward.5} parent=35 // pred_region
          %s219 = scalar_lea.smem [#allocation2], 0
          %220 = sst [smem:[%s219]] 0.0
        $region40: #{cl_hgcn_forward.5} parent=35 // pred_fallthru
          _
        %v221 = vld [vmem:[%s204] sm:$0xf]
        %v222 = vld [vmem:[%s204 + $0x4] sm:$0xf]
        %v223 = vld [vmem:[%s204 + $0x8] sm:$0xf]
        %v224 = vld [vmem:[%s204 + $0xc] sm:$0xf]
        %v225 = vld [vmem:[%s204 + $0x10] sm:$0xf]
        %v226 = vld [vmem:[%s204 + $0x14] sm:$0xf]
        %v227 = vld [vmem:[%s204 + $0x18] sm:$0xf]
        %v228 = vld [vmem:[%s204 + $0x1c] sm:$0xf]
        %v229 = vld [vmem:[%s204 + $0x20] sm:$0xf]
        %v230 = vld [vmem:[%s204 + $0x24] sm:$0xf]
        %v231 = vld [vmem:[%s204 + $0x28] sm:$0xf]
        %v232 = vld [vmem:[%s204 + $0x2c] sm:$0xf]
        %v233 = vld [vmem:[%s204 + $0x30] sm:$0xf]
        %v234 = vld [vmem:[%s204 + $0x34] sm:$0xf]
        %v235 = vld [vmem:[%s204 + $0x38] sm:$0xf]
        %v236 = vld [vmem:[%s204 + $0x3c] sm:$0xf]
        %v237 = vld [vmem:[%s211] sm:$0xf]
        %v238 = vld [vmem:[%s211 + $0x4] sm:$0xf]
        %v239 = vld [vmem:[%s211 + $0x8] sm:$0xf]
        %v240 = vld [vmem:[%s211 + $0xc] sm:$0xf]
        %v241 = vld [vmem:[%s211 + $0x10] sm:$0xf]
        %v242 = vld [vmem:[%s211 + $0x14] sm:$0xf]
        %v243 = vld [vmem:[%s211 + $0x18] sm:$0xf]
        %v244 = vld [vmem:[%s211 + $0x1c] sm:$0xf]
        %v245 = vld [vmem:[%s211 + $0x20] sm:$0xf]
        %v246 = vld [vmem:[%s211 + $0x24] sm:$0xf]
        %v247 = vld [vmem:[%s211 + $0x28] sm:$0xf]
        %v248 = vld [vmem:[%s211 + $0x2c] sm:$0xf]
        %v249 = vld [vmem:[%s211 + $0x30] sm:$0xf]
        %v250 = vld [vmem:[%s211 + $0x34] sm:$0xf]
        %v251 = vld [vmem:[%s211 + $0x38] sm:$0xf]
        %v252 = vld [vmem:[%s211 + $0x3c] sm:$0xf]
        %v253 = vld [vmem:[%s2] sm:$0xf]
        %v254 = vld [vmem:[%s2 + $0x4] sm:$0xf]
        %v255 = vld [vmem:[%s2 + $0x8] sm:$0xf]
        %v256 = vld [vmem:[%s2 + $0xc] sm:$0xf]
        %v257 = vld [vmem:[%s2 + $0x10] sm:$0xf]
        %v258 = vld [vmem:[%s2 + $0x14] sm:$0xf]
        %v259 = vld [vmem:[%s2 + $0x18] sm:$0xf]
        %v260 = vld [vmem:[%s2 + $0x1c] sm:$0xf]
        %v261 = vld [vmem:[%s2 + $0x20] sm:$0xf]
        %v262 = vld [vmem:[%s2 + $0x24] sm:$0xf]
        %v263 = vld [vmem:[%s2 + $0x28] sm:$0xf]
        %v264 = vld [vmem:[%s2 + $0x2c] sm:$0xf]
        %v265 = vld [vmem:[%s2 + $0x30] sm:$0xf]
        %v266 = vld [vmem:[%s2 + $0x34] sm:$0xf]
        %v267 = vld [vmem:[%s2 + $0x38] sm:$0xf]
        %v268 = vld [vmem:[%s2 + $0x3c] sm:$0xf]
        %v269 = vld [vmem:[%s2 + $0x40] sm:$0xf]
        %v270 = vld [vmem:[%s2 + $0x44] sm:$0xf]
        %v271 = vld [vmem:[%s2 + $0x48] sm:$0xf]
        %v272 = vld [vmem:[%s2 + $0x4c] sm:$0xf]
        %v273 = vld [vmem:[%s2 + $0x50] sm:$0xf]
        %v274 = vld [vmem:[%s2 + $0x54] sm:$0xf]
        %v275 = vld [vmem:[%s2 + $0x58] sm:$0xf]
        %v276 = vld [vmem:[%s2 + $0x5c] sm:$0xf]
        %v277 = vld [vmem:[%s2 + $0x60] sm:$0xf]
        %v278 = vld [vmem:[%s2 + $0x64] sm:$0xf]
        %v279 = vld [vmem:[%s2 + $0x68] sm:$0xf]
        %v280 = vld [vmem:[%s2 + $0x6c] sm:$0xf]
        %v281 = vld [vmem:[%s2 + $0x70] sm:$0xf]
        %v282 = vld [vmem:[%s2 + $0x74] sm:$0xf]
        %v283 = vld [vmem:[%s2 + $0x78] sm:$0xf]
        %v284 = vld [vmem:[%s2 + $0x7c] sm:$0xf]
        %v301 = vunpack.c.l.b16 %v221
        %v302 = vunpack.c.l.b16 %v222
        %v303 = vunpack.c.l.b16 %v223
        %v304 = vunpack.c.l.b16 %v224
        %v305 = vunpack.c.l.b16 %v225
        %v306 = vunpack.c.l.b16 %v226
        %v307 = vunpack.c.l.b16 %v227
        %v308 = vunpack.c.l.b16 %v228
        %v309 = vunpack.c.l.b16 %v229
        %v310 = vunpack.c.l.b16 %v230
        %v311 = vunpack.c.l.b16 %v231
        %v312 = vunpack.c.l.b16 %v232
        %v313 = vunpack.c.l.b16 %v233
        %v314 = vunpack.c.l.b16 %v234
        %v315 = vunpack.c.l.b16 %v235
        %v316 = vunpack.c.l.b16 %v236
        %v317 = vpack.c.b16 %v302, %v301
        %v318 = vpack.c.b16 %v304, %v303
        %v319 = vpack.c.b16 %v306, %v305
        %v320 = vpack.c.b16 %v308, %v307
        %v321 = vpack.c.b16 %v310, %v309
        %v322 = vpack.c.b16 %v312, %v311
        %v323 = vpack.c.b16 %v314, %v313
        %v324 = vpack.c.b16 %v316, %v315
        %v365 = vunpack.c.l.b16 %v253
        %v366 = vunpack.c.l.b16 %v254
        %v367 = vunpack.c.l.b16 %v255
        %v368 = vunpack.c.l.b16 %v256
        %v369 = vunpack.c.l.b16 %v257
        %v370 = vunpack.c.l.b16 %v258
        %v371 = vunpack.c.l.b16 %v259
        %v372 = vunpack.c.l.b16 %v260
        %v373 = vunpack.c.l.b16 %v261
        %v374 = vunpack.c.l.b16 %v262
        %v375 = vunpack.c.l.b16 %v263
        %v376 = vunpack.c.l.b16 %v264
        %v377 = vunpack.c.l.b16 %v265
        %v378 = vunpack.c.l.b16 %v266
        %v379 = vunpack.c.l.b16 %v267
        %v380 = vunpack.c.l.b16 %v268
        %v381 = vunpack.c.l.b16 %v269
        %v382 = vunpack.c.l.b16 %v270
        %v383 = vunpack.c.l.b16 %v271
        %v384 = vunpack.c.l.b16 %v272
        %v385 = vunpack.c.l.b16 %v273
        %v386 = vunpack.c.l.b16 %v274
        %v387 = vunpack.c.l.b16 %v275
        %v388 = vunpack.c.l.b16 %v276
        %v389 = vunpack.c.l.b16 %v277
        %v390 = vunpack.c.l.b16 %v278
        %v391 = vunpack.c.l.b16 %v279
        %v392 = vunpack.c.l.b16 %v280
        %v393 = vunpack.c.l.b16 %v281
        %v394 = vunpack.c.l.b16 %v282
        %v395 = vunpack.c.l.b16 %v283
        %v396 = vunpack.c.l.b16 %v284
        %v397 = vpack.c.b16 %v366, %v365
        %v398 = vpack.c.b16 %v368, %v367
        %v399 = vpack.c.b16 %v370, %v369
        %v400 = vpack.c.b16 %v372, %v371
        %v401 = vpack.c.b16 %v374, %v373
        %v402 = vpack.c.b16 %v376, %v375
        %v403 = vpack.c.b16 %v378, %v377
        %v404 = vpack.c.b16 %v380, %v379
        %v405 = vpack.c.b16 %v382, %v381
        %v406 = vpack.c.b16 %v384, %v383
        %v407 = vpack.c.b16 %v386, %v385
        %v408 = vpack.c.b16 %v388, %v387
        %v409 = vpack.c.b16 %v390, %v389
        %v410 = vpack.c.b16 %v392, %v391
        %v411 = vpack.c.b16 %v394, %v393
        %v412 = vpack.c.b16 %v396, %v395
        %429 = vmatprep.subr.bf16.mxu0 0
        %430 = vmatpush1.bf16.xpose.msra.mxu0 %v404
        %431 = vmatprep.subr.bf16.mxu0 0
        %432 = vmatpush1.bf16.xpose.msra.mxu0 %v403
        %433 = vmatprep.subr.bf16.mxu0 0
        %434 = vmatpush1.bf16.xpose.msra.mxu0 %v402
        %435 = vmatprep.subr.bf16.mxu0 0
        %436 = vmatpush1.bf16.xpose.msra.mxu0 %v401
        %437 = vmatprep.subr.bf16.mxu0 0
        %438 = vmatpush1.bf16.xpose.msra.mxu0 %v400
        %439 = vmatprep.subr.bf16.mxu0 0
        %440 = vmatpush1.bf16.xpose.msra.mxu0 %v399
        %441 = vmatprep.subr.bf16.mxu0 0
        %442 = vmatpush1.bf16.xpose.msra.mxu0 %v398
        %443 = vmatprep.subr.bf16.mxu0 0
        %444 = vmatpush1.bf16.xpose.msra.mxu0 %v397
        %445 = vmatprep.subr.bf16.mxu0 0
        %446 = vmatpush2.bf16.xpose.msra.mxu0 %v412
        %447 = vmatprep.subr.bf16.mxu0 0
        %448 = vmatpush2.bf16.xpose.msra.mxu0 %v411
        %449 = vmatprep.subr.bf16.mxu0 0
        %450 = vmatpush2.bf16.xpose.msra.mxu0 %v410
        %451 = vmatprep.subr.bf16.mxu0 0
        %452 = vmatpush2.bf16.xpose.msra.mxu0 %v409
        %453 = vmatprep.subr.bf16.mxu0 0
        %454 = vmatpush2.bf16.xpose.msra.mxu0 %v408
        %455 = vmatprep.subr.bf16.mxu0 0
        %456 = vmatpush2.bf16.xpose.msra.mxu0 %v407
        %457 = vmatprep.subr.bf16.mxu0 0
        %458 = vmatpush2.bf16.xpose.msra.mxu0 %v406
        %459 = vmatprep.subr.bf16.mxu0 0
        %460 = vmatpush2.bf16.xpose.msra.mxu0 %v405
        %461 = vmatprep.mubr.bf16.mxu0 0
        %462 = vmatmul.mubr.bf16.gmra.mxu0 %v317
        %v463 = vpop.f32.mrf.mxu0
        %v464 = vadd.f32 0.0, %v463
        %v465 = vpop.f32.mrf.mxu0
        %v466 = vadd.f32 0.0, %v465
        %v467 = vpop.f32.mrf.mxu0
        %v468 = vadd.f32 0.0, %v467
        %v469 = vpop.f32.mrf.mxu0
        %v470 = vadd.f32 0.0, %v469
        %471 = vmatprep.mubr.bf16.mxu0 0
        %472 = vmatmul.mubr.bf16.gmra.mxu0 %v318
        %v473 = vpop.f32.mrf.mxu0
        %v474 = vadd.f32 0.0, %v473
        %v475 = vpop.f32.mrf.mxu0
        %v476 = vadd.f32 0.0, %v475
        %v477 = vpop.f32.mrf.mxu0
        %v478 = vadd.f32 0.0, %v477
        %v479 = vpop.f32.mrf.mxu0
        %v480 = vadd.f32 0.0, %v479
        %481 = vmatprep.mubr.bf16.mxu0 0
        %482 = vmatmul.mubr.bf16.gmra.mxu0 %v319
        %v483 = vpop.f32.mrf.mxu0
        %v484 = vadd.f32 0.0, %v483
        %v485 = vpop.f32.mrf.mxu0
        %v486 = vadd.f32 0.0, %v485
        %v487 = vpop.f32.mrf.mxu0
        %v488 = vadd.f32 0.0, %v487
        %v489 = vpop.f32.mrf.mxu0
        %v490 = vadd.f32 0.0, %v489
        %491 = vmatprep.mubr.bf16.mxu0 0
        %492 = vmatmul.mubr.bf16.gmra.mxu0 %v320
        %v493 = vpop.f32.mrf.mxu0
        %v494 = vadd.f32 0.0, %v493
        %v495 = vpop.f32.mrf.mxu0
        %v496 = vadd.f32 0.0, %v495
        %v497 = vpop.f32.mrf.mxu0
        %v498 = vadd.f32 0.0, %v497
        %v499 = vpop.f32.mrf.mxu0
        %v500 = vadd.f32 0.0, %v499
        %501 = vmatprep.mubr.bf16.mxu0 0
        %502 = vmatmul.mubr.bf16.gmra.mxu0 %v321
        %v503 = vpop.f32.mrf.mxu0
        %v504 = vadd.f32 0.0, %v503
        %v505 = vpop.f32.mrf.mxu0
        %v506 = vadd.f32 0.0, %v505
        %v507 = vpop.f32.mrf.mxu0
        %v508 = vadd.f32 0.0, %v507
        %v509 = vpop.f32.mrf.mxu0
        %v510 = vadd.f32 0.0, %v509
        %511 = vmatprep.mubr.bf16.mxu0 0
        %512 = vmatmul.mubr.bf16.gmra.mxu0 %v322
        %v513 = vpop.f32.mrf.mxu0
        %v514 = vadd.f32 0.0, %v513
        %v515 = vpop.f32.mrf.mxu0
        %v516 = vadd.f32 0.0, %v515
        %v517 = vpop.f32.mrf.mxu0
        %v518 = vadd.f32 0.0, %v517
        %v519 = vpop.f32.mrf.mxu0
        %v520 = vadd.f32 0.0, %v519
        %521 = vmatprep.mubr.bf16.mxu0 0
        %522 = vmatmul.mubr.bf16.gmra.mxu0 %v323
        %v523 = vpop.f32.mrf.mxu0
        %v524 = vadd.f32 0.0, %v523
        %v525 = vpop.f32.mrf.mxu0
        %v526 = vadd.f32 0.0, %v525
        %v527 = vpop.f32.mrf.mxu0
        %v528 = vadd.f32 0.0, %v527
        %v529 = vpop.f32.mrf.mxu0
        %v530 = vadd.f32 0.0, %v529
        %531 = vmatprep.mubr.bf16.mxu0 0
        %532 = vmatmul.mubr.bf16.gmra.mxu0 %v324
        %v533 = vpop.f32.mrf.mxu0
        %v534 = vadd.f32 0.0, %v533
        %v535 = vpop.f32.mrf.mxu0
        %v536 = vadd.f32 0.0, %v535
        %v537 = vpop.f32.mrf.mxu0
        %v538 = vadd.f32 0.0, %v537
        %v539 = vpop.f32.mrf.mxu0
        %v540 = vadd.f32 0.0, %v539
        %541 = vdwg.mxu0
        %v542 = vld [vmem:[%s213] sm:$0xf]
        %v543 = vld [vmem:[%s213 + $0x4] sm:$0xf]
        %v544 = vld [vmem:[%s213 + $0x8] sm:$0xf]
        %v545 = vld [vmem:[%s213 + $0xc] sm:$0xf]
        %v546 = vld [vmem:[%s213 + $0x10] sm:$0xf]
        %v547 = vld [vmem:[%s213 + $0x14] sm:$0xf]
        %v548 = vld [vmem:[%s213 + $0x18] sm:$0xf]
        %v549 = vld [vmem:[%s213 + $0x1c] sm:$0xf]
        %v550 = vld [vmem:[%s213 + $0x20] sm:$0xf]
        %v551 = vld [vmem:[%s213 + $0x24] sm:$0xf]
        %v552 = vld [vmem:[%s213 + $0x28] sm:$0xf]
        %v553 = vld [vmem:[%s213 + $0x2c] sm:$0xf]
        %v554 = vld [vmem:[%s213 + $0x30] sm:$0xf]
        %v555 = vld [vmem:[%s213 + $0x34] sm:$0xf]
        %v556 = vld [vmem:[%s213 + $0x38] sm:$0xf]
        %v557 = vld [vmem:[%s213 + $0x3c] sm:$0xf]
        %v558 = vld [vmem:[%s213 + $0x40] sm:$0xf]
        %v559 = vld [vmem:[%s213 + $0x44] sm:$0xf]
        %v560 = vld [vmem:[%s213 + $0x48] sm:$0xf]
        %v561 = vld [vmem:[%s213 + $0x4c] sm:$0xf]
        %v562 = vld [vmem:[%s213 + $0x50] sm:$0xf]
        %v563 = vld [vmem:[%s213 + $0x54] sm:$0xf]
        %v564 = vld [vmem:[%s213 + $0x58] sm:$0xf]
        %v565 = vld [vmem:[%s213 + $0x5c] sm:$0xf]
        %v566 = vld [vmem:[%s213 + $0x60] sm:$0xf]
        %v567 = vld [vmem:[%s213 + $0x64] sm:$0xf]
        %v568 = vld [vmem:[%s213 + $0x68] sm:$0xf]
        %v569 = vld [vmem:[%s213 + $0x6c] sm:$0xf]
        %v570 = vld [vmem:[%s213 + $0x70] sm:$0xf]
        %v571 = vld [vmem:[%s213 + $0x74] sm:$0xf]
        %v572 = vld [vmem:[%s213 + $0x78] sm:$0xf]
        %v573 = vld [vmem:[%s213 + $0x7c] sm:$0xf]
        %v606 = vunpack.c.l.b16 %v542
        %v607 = vunpack.c.l.b16 %v543
        %v608 = vunpack.c.l.b16 %v544
        %v609 = vunpack.c.l.b16 %v545
        %v610 = vunpack.c.l.b16 %v546
        %v611 = vunpack.c.l.b16 %v547
        %v612 = vunpack.c.l.b16 %v548
        %v613 = vunpack.c.l.b16 %v549
        %v614 = vunpack.c.l.b16 %v550
        %v615 = vunpack.c.l.b16 %v551
        %v616 = vunpack.c.l.b16 %v552
        %v617 = vunpack.c.l.b16 %v553
        %v618 = vunpack.c.l.b16 %v554
        %v619 = vunpack.c.l.b16 %v555
        %v620 = vunpack.c.l.b16 %v556
        %v621 = vunpack.c.l.b16 %v557
        %v622 = vunpack.c.l.b16 %v558
        %v623 = vunpack.c.l.b16 %v559
        %v624 = vunpack.c.l.b16 %v560
        %v625 = vunpack.c.l.b16 %v561
        %v626 = vunpack.c.l.b16 %v562
        %v627 = vunpack.c.l.b16 %v563
        %v628 = vunpack.c.l.b16 %v564
        %v629 = vunpack.c.l.b16 %v565
        %v630 = vunpack.c.l.b16 %v566
        %v631 = vunpack.c.l.b16 %v567
        %v632 = vunpack.c.l.b16 %v568
        %v633 = vunpack.c.l.b16 %v569
        %v634 = vunpack.c.l.b16 %v570
        %v635 = vunpack.c.l.b16 %v571
        %v636 = vunpack.c.l.b16 %v572
        %v637 = vunpack.c.l.b16 %v573
        %v638 = vpack.c.b16 %v607, %v606
        %v639 = vpack.c.b16 %v609, %v608
        %v640 = vpack.c.b16 %v611, %v610
        %v641 = vpack.c.b16 %v613, %v612
        %v642 = vpack.c.b16 %v615, %v614
        %v643 = vpack.c.b16 %v617, %v616
        %v644 = vpack.c.b16 %v619, %v618
        %v645 = vpack.c.b16 %v621, %v620
        %v646 = vpack.c.b16 %v623, %v622
        %v647 = vpack.c.b16 %v625, %v624
        %v648 = vpack.c.b16 %v627, %v626
        %v649 = vpack.c.b16 %v629, %v628
        %v650 = vpack.c.b16 %v631, %v630
        %v651 = vpack.c.b16 %v633, %v632
        %v652 = vpack.c.b16 %v635, %v634
        %v653 = vpack.c.b16 %v637, %v636
        %670 = vmatprep.subr.bf16.mxu0 0
        %671 = vmatpush1.bf16.xpose.msra.mxu0 %v645
        %672 = vmatprep.subr.bf16.mxu0 0
        %673 = vmatpush1.bf16.xpose.msra.mxu0 %v644
        %674 = vmatprep.subr.bf16.mxu0 0
        %675 = vmatpush1.bf16.xpose.msra.mxu0 %v643
        %676 = vmatprep.subr.bf16.mxu0 0
        %677 = vmatpush1.bf16.xpose.msra.mxu0 %v642
        %678 = vmatprep.subr.bf16.mxu0 0
        %679 = vmatpush1.bf16.xpose.msra.mxu0 %v641
        %680 = vmatprep.subr.bf16.mxu0 0
        %681 = vmatpush1.bf16.xpose.msra.mxu0 %v640
        %682 = vmatprep.subr.bf16.mxu0 0
        %683 = vmatpush1.bf16.xpose.msra.mxu0 %v639
        %684 = vmatprep.subr.bf16.mxu0 0
        %685 = vmatpush1.bf16.xpose.msra.mxu0 %v638
        %686 = vmatprep.subr.bf16.mxu0 0
        %687 = vmatpush2.bf16.xpose.msra.mxu0 %v653
        %688 = vmatprep.subr.bf16.mxu0 0
        %689 = vmatpush2.bf16.xpose.msra.mxu0 %v652
        %690 = vmatprep.subr.bf16.mxu0 0
        %691 = vmatpush2.bf16.xpose.msra.mxu0 %v651
        %692 = vmatprep.subr.bf16.mxu0 0
        %693 = vmatpush2.bf16.xpose.msra.mxu0 %v650
        %694 = vmatprep.subr.bf16.mxu0 0
        %695 = vmatpush2.bf16.xpose.msra.mxu0 %v649
        %696 = vmatprep.subr.bf16.mxu0 0
        %697 = vmatpush2.bf16.xpose.msra.mxu0 %v648
        %698 = vmatprep.subr.bf16.mxu0 0
        %699 = vmatpush2.bf16.xpose.msra.mxu0 %v647
        %700 = vmatprep.subr.bf16.mxu0 0
        %701 = vmatpush2.bf16.xpose.msra.mxu0 %v646
        %702 = vmatprep.mubr.bf16.mxu0 0
        %703 = vmatmul.mubr.bf16.gmra.mxu0 %v317
        %v704 = vpop.f32.mrf.mxu0
        %v705 = vadd.f32 0.0, %v704
        %v706 = vpop.f32.mrf.mxu0
        %v707 = vadd.f32 0.0, %v706
        %v708 = vpop.f32.mrf.mxu0
        %v709 = vadd.f32 0.0, %v708
        %v710 = vpop.f32.mrf.mxu0
        %v711 = vadd.f32 0.0, %v710
        %712 = vmatprep.mubr.bf16.mxu0 0
        %713 = vmatmul.mubr.bf16.gmra.mxu0 %v318
        %v714 = vpop.f32.mrf.mxu0
        %v715 = vadd.f32 0.0, %v714
        %v716 = vpop.f32.mrf.mxu0
        %v717 = vadd.f32 0.0, %v716
        %v718 = vpop.f32.mrf.mxu0
        %v719 = vadd.f32 0.0, %v718
        %v720 = vpop.f32.mrf.mxu0
        %v721 = vadd.f32 0.0, %v720
        %722 = vmatprep.mubr.bf16.mxu0 0
        %723 = vmatmul.mubr.bf16.gmra.mxu0 %v319
        %v724 = vpop.f32.mrf.mxu0
        %v725 = vadd.f32 0.0, %v724
        %v726 = vpop.f32.mrf.mxu0
        %v727 = vadd.f32 0.0, %v726
        %v728 = vpop.f32.mrf.mxu0
        %v729 = vadd.f32 0.0, %v728
        %v730 = vpop.f32.mrf.mxu0
        %v731 = vadd.f32 0.0, %v730
        %732 = vmatprep.mubr.bf16.mxu0 0
        %733 = vmatmul.mubr.bf16.gmra.mxu0 %v320
        %v734 = vpop.f32.mrf.mxu0
        %v735 = vadd.f32 0.0, %v734
        %v736 = vpop.f32.mrf.mxu0
        %v737 = vadd.f32 0.0, %v736
        %v738 = vpop.f32.mrf.mxu0
        %v739 = vadd.f32 0.0, %v738
        %v740 = vpop.f32.mrf.mxu0
        %v741 = vadd.f32 0.0, %v740
        %742 = vmatprep.mubr.bf16.mxu0 0
        %743 = vmatmul.mubr.bf16.gmra.mxu0 %v321
        %v744 = vpop.f32.mrf.mxu0
        %v745 = vadd.f32 0.0, %v744
        %v746 = vpop.f32.mrf.mxu0
        %v747 = vadd.f32 0.0, %v746
        %v748 = vpop.f32.mrf.mxu0
        %v749 = vadd.f32 0.0, %v748
        %v750 = vpop.f32.mrf.mxu0
        %v751 = vadd.f32 0.0, %v750
        %752 = vmatprep.mubr.bf16.mxu0 0
        %753 = vmatmul.mubr.bf16.gmra.mxu0 %v322
        %v754 = vpop.f32.mrf.mxu0
        %v755 = vadd.f32 0.0, %v754
        %v756 = vpop.f32.mrf.mxu0
        %v757 = vadd.f32 0.0, %v756
        %v758 = vpop.f32.mrf.mxu0
        %v759 = vadd.f32 0.0, %v758
        %v760 = vpop.f32.mrf.mxu0
        %v761 = vadd.f32 0.0, %v760
        %762 = vmatprep.mubr.bf16.mxu0 0
        %763 = vmatmul.mubr.bf16.gmra.mxu0 %v323
        %v764 = vpop.f32.mrf.mxu0
        %v765 = vadd.f32 0.0, %v764
        %v766 = vpop.f32.mrf.mxu0
        %v767 = vadd.f32 0.0, %v766
        %v768 = vpop.f32.mrf.mxu0
        %v769 = vadd.f32 0.0, %v768
        %v770 = vpop.f32.mrf.mxu0
        %v771 = vadd.f32 0.0, %v770
        %772 = vmatprep.mubr.bf16.mxu0 0
        %773 = vmatmul.mubr.bf16.gmra.mxu0 %v324
        %v774 = vpop.f32.mrf.mxu0
        %v775 = vadd.f32 0.0, %v774
        %v776 = vpop.f32.mrf.mxu0
        %v777 = vadd.f32 0.0, %v776
        %v778 = vpop.f32.mrf.mxu0
        %v779 = vadd.f32 0.0, %v778
        %v780 = vpop.f32.mrf.mxu0
        %v781 = vadd.f32 0.0, %v780
        %782 = vdwg.mxu0
        %v799 = vunpack.c.l.b16 %v237
        %v800 = vunpack.c.l.b16 %v238
        %v801 = vunpack.c.l.b16 %v239
        %v802 = vunpack.c.l.b16 %v240
        %v803 = vunpack.c.l.b16 %v241
        %v804 = vunpack.c.l.b16 %v242
        %v805 = vunpack.c.l.b16 %v243
        %v806 = vunpack.c.l.b16 %v244
        %v807 = vunpack.c.l.b16 %v245
        %v808 = vunpack.c.l.b16 %v246
        %v809 = vunpack.c.l.b16 %v247
        %v810 = vunpack.c.l.b16 %v248
        %v811 = vunpack.c.l.b16 %v249
        %v812 = vunpack.c.l.b16 %v250
        %v813 = vunpack.c.l.b16 %v251
        %v814 = vunpack.c.l.b16 %v252
        %v815 = vpack.c.b16 %v800, %v799
        %v816 = vpack.c.b16 %v802, %v801
        %v817 = vpack.c.b16 %v804, %v803
        %v818 = vpack.c.b16 %v806, %v805
        %v819 = vpack.c.b16 %v808, %v807
        %v820 = vpack.c.b16 %v810, %v809
        %v821 = vpack.c.b16 %v812, %v811
        %v822 = vpack.c.b16 %v814, %v813
        %831 = vmatprep.subr.bf16.mxu0 0
        %832 = vmatpush1.bf16.xpose.msra.mxu0 %v645
        %833 = vmatprep.subr.bf16.mxu0 0
        %834 = vmatpush1.bf16.xpose.msra.mxu0 %v644
        %835 = vmatprep.subr.bf16.mxu0 0
        %836 = vmatpush1.bf16.xpose.msra.mxu0 %v643
        %837 = vmatprep.subr.bf16.mxu0 0
        %838 = vmatpush1.bf16.xpose.msra.mxu0 %v642
        %839 = vmatprep.subr.bf16.mxu0 0
        %840 = vmatpush1.bf16.xpose.msra.mxu0 %v641
        %841 = vmatprep.subr.bf16.mxu0 0
        %842 = vmatpush1.bf16.xpose.msra.mxu0 %v640
        %843 = vmatprep.subr.bf16.mxu0 0
        %844 = vmatpush1.bf16.xpose.msra.mxu0 %v639
        %845 = vmatprep.subr.bf16.mxu0 0
        %846 = vmatpush1.bf16.xpose.msra.mxu0 %v638
        %847 = vmatprep.subr.bf16.mxu0 0
        %848 = vmatpush2.bf16.xpose.msra.mxu0 %v653
        %849 = vmatprep.subr.bf16.mxu0 0
        %850 = vmatpush2.bf16.xpose.msra.mxu0 %v652
        %851 = vmatprep.subr.bf16.mxu0 0
        %852 = vmatpush2.bf16.xpose.msra.mxu0 %v651
        %853 = vmatprep.subr.bf16.mxu0 0
        %854 = vmatpush2.bf16.xpose.msra.mxu0 %v650
        %855 = vmatprep.subr.bf16.mxu0 0
        %856 = vmatpush2.bf16.xpose.msra.mxu0 %v649
        %857 = vmatprep.subr.bf16.mxu0 0
        %858 = vmatpush2.bf16.xpose.msra.mxu0 %v648
        %859 = vmatprep.subr.bf16.mxu0 0
        %860 = vmatpush2.bf16.xpose.msra.mxu0 %v647
        %861 = vmatprep.subr.bf16.mxu0 0
        %862 = vmatpush2.bf16.xpose.msra.mxu0 %v646
        %863 = vmatprep.mubr.bf16.mxu0 0
        %864 = vmatmul.mubr.bf16.gmra.mxu0 %v815
        %v865 = vpop.f32.mrf.mxu0
        %v866 = vadd.f32 0.0, %v865
        %v867 = vpop.f32.mrf.mxu0
        %v868 = vadd.f32 0.0, %v867
        %v869 = vpop.f32.mrf.mxu0
        %v870 = vadd.f32 0.0, %v869
        %v871 = vpop.f32.mrf.mxu0
        %v872 = vadd.f32 0.0, %v871
        %873 = vmatprep.mubr.bf16.mxu0 0
        %874 = vmatmul.mubr.bf16.gmra.mxu0 %v816
        %v875 = vpop.f32.mrf.mxu0
        %v876 = vadd.f32 0.0, %v875
        %v877 = vpop.f32.mrf.mxu0
        %v878 = vadd.f32 0.0, %v877
        %v879 = vpop.f32.mrf.mxu0
        %v880 = vadd.f32 0.0, %v879
        %v881 = vpop.f32.mrf.mxu0
        %v882 = vadd.f32 0.0, %v881
        %883 = vmatprep.mubr.bf16.mxu0 0
        %884 = vmatmul.mubr.bf16.gmra.mxu0 %v817
        %v885 = vpop.f32.mrf.mxu0
        %v886 = vadd.f32 0.0, %v885
        %v887 = vpop.f32.mrf.mxu0
        %v888 = vadd.f32 0.0, %v887
        %v889 = vpop.f32.mrf.mxu0
        %v890 = vadd.f32 0.0, %v889
        %v891 = vpop.f32.mrf.mxu0
        %v892 = vadd.f32 0.0, %v891
        %893 = vmatprep.mubr.bf16.mxu0 0
        %894 = vmatmul.mubr.bf16.gmra.mxu0 %v818
        %v895 = vpop.f32.mrf.mxu0
        %v896 = vadd.f32 0.0, %v895
        %v897 = vpop.f32.mrf.mxu0
        %v898 = vadd.f32 0.0, %v897
        %v899 = vpop.f32.mrf.mxu0
        %v900 = vadd.f32 0.0, %v899
        %v901 = vpop.f32.mrf.mxu0
        %v902 = vadd.f32 0.0, %v901
        %903 = vmatprep.mubr.bf16.mxu0 0
        %904 = vmatmul.mubr.bf16.gmra.mxu0 %v819
        %v905 = vpop.f32.mrf.mxu0
        %v906 = vadd.f32 0.0, %v905
        %v907 = vpop.f32.mrf.mxu0
        %v908 = vadd.f32 0.0, %v907
        %v909 = vpop.f32.mrf.mxu0
        %v910 = vadd.f32 0.0, %v909
        %v911 = vpop.f32.mrf.mxu0
        %v912 = vadd.f32 0.0, %v911
        %913 = vmatprep.mubr.bf16.mxu0 0
        %914 = vmatmul.mubr.bf16.gmra.mxu0 %v820
        %v915 = vpop.f32.mrf.mxu0
        %v916 = vadd.f32 0.0, %v915
        %v917 = vpop.f32.mrf.mxu0
        %v918 = vadd.f32 0.0, %v917
        %v919 = vpop.f32.mrf.mxu0
        %v920 = vadd.f32 0.0, %v919
        %v921 = vpop.f32.mrf.mxu0
        %v922 = vadd.f32 0.0, %v921
        %923 = vmatprep.mubr.bf16.mxu0 0
        %924 = vmatmul.mubr.bf16.gmra.mxu0 %v821
        %v925 = vpop.f32.mrf.mxu0
        %v926 = vadd.f32 0.0, %v925
        %v927 = vpop.f32.mrf.mxu0
        %v928 = vadd.f32 0.0, %v927
        %v929 = vpop.f32.mrf.mxu0
        %v930 = vadd.f32 0.0, %v929
        %v931 = vpop.f32.mrf.mxu0
        %v932 = vadd.f32 0.0, %v931
        %933 = vmatprep.mubr.bf16.mxu0 0
        %934 = vmatmul.mubr.bf16.gmra.mxu0 %v822
        %v935 = vpop.f32.mrf.mxu0
        %v936 = vadd.f32 0.0, %v935
        %v937 = vpop.f32.mrf.mxu0
        %v938 = vadd.f32 0.0, %v937
        %v939 = vpop.f32.mrf.mxu0
        %v940 = vadd.f32 0.0, %v939
        %v941 = vpop.f32.mrf.mxu0
        %v942 = vadd.f32 0.0, %v941
        %943 = vdwg.mxu0
        %944 = vmatprep.subr.bf16.mxu0 0
        %945 = vmatpush1.bf16.xpose.msra.mxu0 %v404
        %946 = vmatprep.subr.bf16.mxu0 0
        %947 = vmatpush1.bf16.xpose.msra.mxu0 %v403
        %948 = vmatprep.subr.bf16.mxu0 0
        %949 = vmatpush1.bf16.xpose.msra.mxu0 %v402
        %950 = vmatprep.subr.bf16.mxu0 0
        %951 = vmatpush1.bf16.xpose.msra.mxu0 %v401
        %952 = vmatprep.subr.bf16.mxu0 0
        %953 = vmatpush1.bf16.xpose.msra.mxu0 %v400
        %954 = vmatprep.subr.bf16.mxu0 0
        %955 = vmatpush1.bf16.xpose.msra.mxu0 %v399
        %956 = vmatprep.subr.bf16.mxu0 0
        %957 = vmatpush1.bf16.xpose.msra.mxu0 %v398
        %958 = vmatprep.subr.bf16.mxu0 0
        %959 = vmatpush1.bf16.xpose.msra.mxu0 %v397
        %960 = vmatprep.subr.bf16.mxu0 0
        %961 = vmatpush2.bf16.xpose.msra.mxu0 %v412
        %962 = vmatprep.subr.bf16.mxu0 0
        %963 = vmatpush2.bf16.xpose.msra.mxu0 %v411
        %964 = vmatprep.subr.bf16.mxu0 0
        %965 = vmatpush2.bf16.xpose.msra.mxu0 %v410
        %966 = vmatprep.subr.bf16.mxu0 0
        %967 = vmatpush2.bf16.xpose.msra.mxu0 %v409
        %968 = vmatprep.subr.bf16.mxu0 0
        %969 = vmatpush2.bf16.xpose.msra.mxu0 %v408
        %970 = vmatprep.subr.bf16.mxu0 0
        %971 = vmatpush2.bf16.xpose.msra.mxu0 %v407
        %972 = vmatprep.subr.bf16.mxu0 0
        %973 = vmatpush2.bf16.xpose.msra.mxu0 %v406
        %974 = vmatprep.subr.bf16.mxu0 0
        %975 = vmatpush2.bf16.xpose.msra.mxu0 %v405
        %976 = vmatprep.mubr.bf16.mxu0 0
        %977 = vmatmul.mubr.bf16.gmra.mxu0 %v815
        %v978 = vpop.f32.mrf.mxu0
        %v979 = vadd.f32 0.0, %v978
        %v980 = vpop.f32.mrf.mxu0
        %v981 = vadd.f32 0.0, %v980
        %v982 = vpop.f32.mrf.mxu0
        %v983 = vadd.f32 0.0, %v982
        %v984 = vpop.f32.mrf.mxu0
        %v985 = vadd.f32 0.0, %v984
        %986 = vmatprep.mubr.bf16.mxu0 0
        %987 = vmatmul.mubr.bf16.gmra.mxu0 %v816
        %v988 = vpop.f32.mrf.mxu0
        %v989 = vadd.f32 0.0, %v988
        %v990 = vpop.f32.mrf.mxu0
        %v991 = vadd.f32 0.0, %v990
        %v992 = vpop.f32.mrf.mxu0
        %v993 = vadd.f32 0.0, %v992
        %v994 = vpop.f32.mrf.mxu0
        %v995 = vadd.f32 0.0, %v994
        %996 = vmatprep.mubr.bf16.mxu0 0
        %997 = vmatmul.mubr.bf16.gmra.mxu0 %v817
        %v998 = vpop.f32.mrf.mxu0
        %v999 = vadd.f32 0.0, %v998
        %v1000 = vpop.f32.mrf.mxu0
        %v1001 = vadd.f32 0.0, %v1000
        %v1002 = vpop.f32.mrf.mxu0
        %v1003 = vadd.f32 0.0, %v1002
        %v1004 = vpop.f32.mrf.mxu0
        %v1005 = vadd.f32 0.0, %v1004
        %1006 = vmatprep.mubr.bf16.mxu0 0
        %1007 = vmatmul.mubr.bf16.gmra.mxu0 %v818
        %v1008 = vpop.f32.mrf.mxu0
        %v1009 = vadd.f32 0.0, %v1008
        %v1010 = vpop.f32.mrf.mxu0
        %v1011 = vadd.f32 0.0, %v1010
        %v1012 = vpop.f32.mrf.mxu0
        %v1013 = vadd.f32 0.0, %v1012
        %v1014 = vpop.f32.mrf.mxu0
        %v1015 = vadd.f32 0.0, %v1014
        %1016 = vmatprep.mubr.bf16.mxu0 0
        %1017 = vmatmul.mubr.bf16.gmra.mxu0 %v819
        %v1018 = vpop.f32.mrf.mxu0
        %v1019 = vadd.f32 0.0, %v1018
        %v1020 = vpop.f32.mrf.mxu0
        %v1021 = vadd.f32 0.0, %v1020
        %v1022 = vpop.f32.mrf.mxu0
        %v1023 = vadd.f32 0.0, %v1022
        %v1024 = vpop.f32.mrf.mxu0
        %v1025 = vadd.f32 0.0, %v1024
        %1026 = vmatprep.mubr.bf16.mxu0 0
        %1027 = vmatmul.mubr.bf16.gmra.mxu0 %v820
        %v1028 = vpop.f32.mrf.mxu0
        %v1029 = vadd.f32 0.0, %v1028
        %v1030 = vpop.f32.mrf.mxu0
        %v1031 = vadd.f32 0.0, %v1030
        %v1032 = vpop.f32.mrf.mxu0
        %v1033 = vadd.f32 0.0, %v1032
        %v1034 = vpop.f32.mrf.mxu0
        %v1035 = vadd.f32 0.0, %v1034
        %1036 = vmatprep.mubr.bf16.mxu0 0
        %1037 = vmatmul.mubr.bf16.gmra.mxu0 %v821
        %v1038 = vpop.f32.mrf.mxu0
        %v1039 = vadd.f32 0.0, %v1038
        %v1040 = vpop.f32.mrf.mxu0
        %v1041 = vadd.f32 0.0, %v1040
        %v1042 = vpop.f32.mrf.mxu0
        %v1043 = vadd.f32 0.0, %v1042
        %v1044 = vpop.f32.mrf.mxu0
        %v1045 = vadd.f32 0.0, %v1044
        %1046 = vmatprep.mubr.bf16.mxu0 0
        %1047 = vmatmul.mubr.bf16.gmra.mxu0 %v822
        %v1048 = vpop.f32.mrf.mxu0
        %v1049 = vadd.f32 0.0, %v1048
        %v1050 = vpop.f32.mrf.mxu0
        %v1051 = vadd.f32 0.0, %v1050
        %v1052 = vpop.f32.mrf.mxu0
        %v1053 = vadd.f32 0.0, %v1052
        %v1054 = vpop.f32.mrf.mxu0
        %v1055 = vadd.f32 0.0, %v1054
        %1056 = vdwg.mxu0
        %v1057 = vmul.f32 %v464, 2.0
        %v1058 = vmul.f32 %v466, 2.0
        %v1059 = vmul.f32 %v468, 2.0
        %v1060 = vmul.f32 %v470, 2.0
        %v1061 = vmul.f32 %v474, 2.0
        %v1062 = vmul.f32 %v476, 2.0
        %v1063 = vmul.f32 %v478, 2.0
        %v1064 = vmul.f32 %v480, 2.0
        %v1065 = vmul.f32 %v484, 2.0
        %v1066 = vmul.f32 %v486, 2.0
        %v1067 = vmul.f32 %v488, 2.0
        %v1068 = vmul.f32 %v490, 2.0
        %v1069 = vmul.f32 %v494, 2.0
        %v1070 = vmul.f32 %v496, 2.0
        %v1071 = vmul.f32 %v498, 2.0
        %v1072 = vmul.f32 %v500, 2.0
        %v1073 = vmul.f32 %v504, 2.0
        %v1074 = vmul.f32 %v506, 2.0
        %v1075 = vmul.f32 %v508, 2.0
        %v1076 = vmul.f32 %v510, 2.0
        %v1077 = vmul.f32 %v514, 2.0
        %v1078 = vmul.f32 %v516, 2.0
        %v1079 = vmul.f32 %v518, 2.0
        %v1080 = vmul.f32 %v520, 2.0
        %v1081 = vmul.f32 %v524, 2.0
        %v1082 = vmul.f32 %v526, 2.0
        %v1083 = vmul.f32 %v528, 2.0
        %v1084 = vmul.f32 %v530, 2.0
        %v1085 = vmul.f32 %v534, 2.0
        %v1086 = vmul.f32 %v536, 2.0
        %v1087 = vmul.f32 %v538, 2.0
        %v1088 = vmul.f32 %v540, 2.0
        %v1089 = vmul.f32 %v1057, 1.442695
        %v1090 = vpow.pop %v1089
        %v1091 = vmul.f32 %v1058, 1.442695
        %v1092 = vpow.pop %v1091
        %v1093 = vmul.f32 %v1059, 1.442695
        %v1094 = vpow.pop %v1093
        %v1095 = vmul.f32 %v1060, 1.442695
        %v1096 = vpow.pop %v1095
        %v1097 = vmul.f32 %v1061, 1.442695
        %v1098 = vpow.pop %v1097
        %v1099 = vmul.f32 %v1062, 1.442695
        %v1100 = vpow.pop %v1099
        %v1101 = vmul.f32 %v1063, 1.442695
        %v1102 = vpow.pop %v1101
        %v1103 = vmul.f32 %v1064, 1.442695
        %v1104 = vpow.pop %v1103
        %v1105 = vmul.f32 %v1065, 1.442695
        %v1106 = vpow.pop %v1105
        %v1107 = vmul.f32 %v1066, 1.442695
        %v1108 = vpow.pop %v1107
        %v1109 = vmul.f32 %v1067, 1.442695
        %v1110 = vpow.pop %v1109
        %v1111 = vmul.f32 %v1068, 1.442695
        %v1112 = vpow.pop %v1111
        %v1113 = vmul.f32 %v1069, 1.442695
        %v1114 = vpow.pop %v1113
        %v1115 = vmul.f32 %v1070, 1.442695
        %v1116 = vpow.pop %v1115
        %v1117 = vmul.f32 %v1071, 1.442695
        %v1118 = vpow.pop %v1117
        %v1119 = vmul.f32 %v1072, 1.442695
        %v1120 = vpow.pop %v1119
        %v1121 = vmul.f32 %v1073, 1.442695
        %v1122 = vpow.pop %v1121
        %v1123 = vmul.f32 %v1074, 1.442695
        %v1124 = vpow.pop %v1123
        %v1125 = vmul.f32 %v1075, 1.442695
        %v1126 = vpow.pop %v1125
        %v1127 = vmul.f32 %v1076, 1.442695
        %v1128 = vpow.pop %v1127
        %v1129 = vmul.f32 %v1077, 1.442695
        %v1130 = vpow.pop %v1129
        %v1131 = vmul.f32 %v1078, 1.442695
        %v1132 = vpow.pop %v1131
        %v1133 = vmul.f32 %v1079, 1.442695
        %v1134 = vpow.pop %v1133
        %v1135 = vmul.f32 %v1080, 1.442695
        %v1136 = vpow.pop %v1135
        %v1137 = vmul.f32 %v1081, 1.442695
        %v1138 = vpow.pop %v1137
        %v1139 = vmul.f32 %v1082, 1.442695
        %v1140 = vpow.pop %v1139
        %v1141 = vmul.f32 %v1083, 1.442695
        %v1142 = vpow.pop %v1141
        %v1143 = vmul.f32 %v1084, 1.442695
        %v1144 = vpow.pop %v1143
        %v1145 = vmul.f32 %v1085, 1.442695
        %v1146 = vpow.pop %v1145
        %v1147 = vmul.f32 %v1086, 1.442695
        %v1148 = vpow.pop %v1147
        %v1149 = vmul.f32 %v1087, 1.442695
        %v1150 = vpow.pop %v1149
        %v1151 = vmul.f32 %v1088, 1.442695
        %v1152 = vpow.pop %v1151
        %v1153 = vadd.f32 %v1090, %v1092
        %1154 = vadd.xlane.f32.xlu0 %v1153
        %v1155 = vpop.xlane.xlu0 %1154
        %v1156 = vadd.f32 %v1094, %v1096
        %1157 = vadd.xlane.f32.xlu0 %v1156
        %v1158 = vpop.xlane.xlu0 %1157
        %v1159 = vadd.f32 %v1098, %v1100
        %1160 = vadd.xlane.f32.xlu0 %v1159
        %v1161 = vpop.xlane.xlu0 %1160
        %v1162 = vadd.f32 %v1102, %v1104
        %1163 = vadd.xlane.f32.xlu0 %v1162
        %v1164 = vpop.xlane.xlu0 %1163
        %v1165 = vadd.f32 %v1106, %v1108
        %1166 = vadd.xlane.f32.xlu0 %v1165
        %v1167 = vpop.xlane.xlu0 %1166
        %v1168 = vadd.f32 %v1110, %v1112
        %1169 = vadd.xlane.f32.xlu0 %v1168
        %v1170 = vpop.xlane.xlu0 %1169
        %v1171 = vadd.f32 %v1114, %v1116
        %1172 = vadd.xlane.f32.xlu0 %v1171
        %v1173 = vpop.xlane.xlu0 %1172
        %v1174 = vadd.f32 %v1118, %v1120
        %1175 = vadd.xlane.f32.xlu0 %v1174
        %v1176 = vpop.xlane.xlu0 %1175
        %v1177 = vadd.f32 %v1122, %v1124
        %1178 = vadd.xlane.f32.xlu0 %v1177
        %v1179 = vpop.xlane.xlu0 %1178
        %v1180 = vadd.f32 %v1126, %v1128
        %1181 = vadd.xlane.f32.xlu0 %v1180
        %v1182 = vpop.xlane.xlu0 %1181
        %v1183 = vadd.f32 %v1130, %v1132
        %1184 = vadd.xlane.f32.xlu0 %v1183
        %v1185 = vpop.xlane.xlu0 %1184
        %v1186 = vadd.f32 %v1134, %v1136
        %1187 = vadd.xlane.f32.xlu0 %v1186
        %v1188 = vpop.xlane.xlu0 %1187
        %v1189 = vadd.f32 %v1138, %v1140
        %1190 = vadd.xlane.f32.xlu0 %v1189
        %v1191 = vpop.xlane.xlu0 %1190
        %v1192 = vadd.f32 %v1142, %v1144
        %1193 = vadd.xlane.f32.xlu0 %v1192
        %v1194 = vpop.xlane.xlu0 %1193
        %v1195 = vadd.f32 %v1146, %v1148
        %1196 = vadd.xlane.f32.xlu0 %v1195
        %v1197 = vpop.xlane.xlu0 %1196
        %v1198 = vadd.f32 %v1150, %v1152
        %1199 = vadd.xlane.f32.xlu0 %v1198
        %v1200 = vpop.xlane.xlu0 %1199
        %v1201 = vmul.f32 %v705, 2.0
        %v1202 = vmul.f32 %v707, 2.0
        %v1203 = vmul.f32 %v709, 2.0
        %v1204 = vmul.f32 %v711, 2.0
        %v1205 = vmul.f32 %v715, 2.0
        %v1206 = vmul.f32 %v717, 2.0
        %v1207 = vmul.f32 %v719, 2.0
        %v1208 = vmul.f32 %v721, 2.0
        %v1209 = vmul.f32 %v725, 2.0
        %v1210 = vmul.f32 %v727, 2.0
        %v1211 = vmul.f32 %v729, 2.0
        %v1212 = vmul.f32 %v731, 2.0
        %v1213 = vmul.f32 %v735, 2.0
        %v1214 = vmul.f32 %v737, 2.0
        %v1215 = vmul.f32 %v739, 2.0
        %v1216 = vmul.f32 %v741, 2.0
        %v1217 = vmul.f32 %v745, 2.0
        %v1218 = vmul.f32 %v747, 2.0
        %v1219 = vmul.f32 %v749, 2.0
        %v1220 = vmul.f32 %v751, 2.0
        %v1221 = vmul.f32 %v755, 2.0
        %v1222 = vmul.f32 %v757, 2.0
        %v1223 = vmul.f32 %v759, 2.0
        %v1224 = vmul.f32 %v761, 2.0
        %v1225 = vmul.f32 %v765, 2.0
        %v1226 = vmul.f32 %v767, 2.0
        %v1227 = vmul.f32 %v769, 2.0
        %v1228 = vmul.f32 %v771, 2.0
        %v1229 = vmul.f32 %v775, 2.0
        %v1230 = vmul.f32 %v777, 2.0
        %v1231 = vmul.f32 %v779, 2.0
        %v1232 = vmul.f32 %v781, 2.0
        %v1233 = vmul.f32 %v1201, 1.442695
        %v1234 = vpow.pop %v1233
        %v1235 = vmul.f32 %v1202, 1.442695
        %v1236 = vpow.pop %v1235
        %v1237 = vmul.f32 %v1203, 1.442695
        %v1238 = vpow.pop %v1237
        %v1239 = vmul.f32 %v1204, 1.442695
        %v1240 = vpow.pop %v1239
        %v1241 = vmul.f32 %v1205, 1.442695
        %v1242 = vpow.pop %v1241
        %v1243 = vmul.f32 %v1206, 1.442695
        %v1244 = vpow.pop %v1243
        %v1245 = vmul.f32 %v1207, 1.442695
        %v1246 = vpow.pop %v1245
        %v1247 = vmul.f32 %v1208, 1.442695
        %v1248 = vpow.pop %v1247
        %v1249 = vmul.f32 %v1209, 1.442695
        %v1250 = vpow.pop %v1249
        %v1251 = vmul.f32 %v1210, 1.442695
        %v1252 = vpow.pop %v1251
        %v1253 = vmul.f32 %v1211, 1.442695
        %v1254 = vpow.pop %v1253
        %v1255 = vmul.f32 %v1212, 1.442695
        %v1256 = vpow.pop %v1255
        %v1257 = vmul.f32 %v1213, 1.442695
        %v1258 = vpow.pop %v1257
        %v1259 = vmul.f32 %v1214, 1.442695
        %v1260 = vpow.pop %v1259
        %v1261 = vmul.f32 %v1215, 1.442695
        %v1262 = vpow.pop %v1261
        %v1263 = vmul.f32 %v1216, 1.442695
        %v1264 = vpow.pop %v1263
        %v1265 = vmul.f32 %v1217, 1.442695
        %v1266 = vpow.pop %v1265
        %v1267 = vmul.f32 %v1218, 1.442695
        %v1268 = vpow.pop %v1267
        %v1269 = vmul.f32 %v1219, 1.442695
        %v1270 = vpow.pop %v1269
        %v1271 = vmul.f32 %v1220, 1.442695
        %v1272 = vpow.pop %v1271
        %v1273 = vmul.f32 %v1221, 1.442695
        %v1274 = vpow.pop %v1273
        %v1275 = vmul.f32 %v1222, 1.442695
        %v1276 = vpow.pop %v1275
        %v1277 = vmul.f32 %v1223, 1.442695
        %v1278 = vpow.pop %v1277
        %v1279 = vmul.f32 %v1224, 1.442695
        %v1280 = vpow.pop %v1279
        %v1281 = vmul.f32 %v1225, 1.442695
        %v1282 = vpow.pop %v1281
        %v1283 = vmul.f32 %v1226, 1.442695
        %v1284 = vpow.pop %v1283
        %v1285 = vmul.f32 %v1227, 1.442695
        %v1286 = vpow.pop %v1285
        %v1287 = vmul.f32 %v1228, 1.442695
        %v1288 = vpow.pop %v1287
        %v1289 = vmul.f32 %v1229, 1.442695
        %v1290 = vpow.pop %v1289
        %v1291 = vmul.f32 %v1230, 1.442695
        %v1292 = vpow.pop %v1291
        %v1293 = vmul.f32 %v1231, 1.442695
        %v1294 = vpow.pop %v1293
        %v1295 = vmul.f32 %v1232, 1.442695
        %v1296 = vpow.pop %v1295
        %v1297 = vadd.f32 %v1234, %v1236
        %1298 = vadd.xlane.f32.xlu0 %v1297
        %v1299 = vpop.xlane.xlu0 %1298
        %v1300 = vadd.f32 %v1238, %v1240
        %1301 = vadd.xlane.f32.xlu0 %v1300
        %v1302 = vpop.xlane.xlu0 %1301
        %v1303 = vadd.f32 %v1242, %v1244
        %1304 = vadd.xlane.f32.xlu0 %v1303
        %v1305 = vpop.xlane.xlu0 %1304
        %v1306 = vadd.f32 %v1246, %v1248
        %1307 = vadd.xlane.f32.xlu0 %v1306
        %v1308 = vpop.xlane.xlu0 %1307
        %v1309 = vadd.f32 %v1250, %v1252
        %1310 = vadd.xlane.f32.xlu0 %v1309
        %v1311 = vpop.xlane.xlu0 %1310
        %v1312 = vadd.f32 %v1254, %v1256
        %1313 = vadd.xlane.f32.xlu0 %v1312
        %v1314 = vpop.xlane.xlu0 %1313
        %v1315 = vadd.f32 %v1258, %v1260
        %1316 = vadd.xlane.f32.xlu0 %v1315
        %v1317 = vpop.xlane.xlu0 %1316
        %v1318 = vadd.f32 %v1262, %v1264
        %1319 = vadd.xlane.f32.xlu0 %v1318
        %v1320 = vpop.xlane.xlu0 %1319
        %v1321 = vadd.f32 %v1266, %v1268
        %1322 = vadd.xlane.f32.xlu0 %v1321
        %v1323 = vpop.xlane.xlu0 %1322
        %v1324 = vadd.f32 %v1270, %v1272
        %1325 = vadd.xlane.f32.xlu0 %v1324
        %v1326 = vpop.xlane.xlu0 %1325
        %v1327 = vadd.f32 %v1274, %v1276
        %1328 = vadd.xlane.f32.xlu0 %v1327
        %v1329 = vpop.xlane.xlu0 %1328
        %v1330 = vadd.f32 %v1278, %v1280
        %1331 = vadd.xlane.f32.xlu0 %v1330
        %v1332 = vpop.xlane.xlu0 %1331
        %v1333 = vadd.f32 %v1282, %v1284
        %1334 = vadd.xlane.f32.xlu0 %v1333
        %v1335 = vpop.xlane.xlu0 %1334
        %v1336 = vadd.f32 %v1286, %v1288
        %1337 = vadd.xlane.f32.xlu0 %v1336
        %v1338 = vpop.xlane.xlu0 %1337
        %v1339 = vadd.f32 %v1290, %v1292
        %1340 = vadd.xlane.f32.xlu0 %v1339
        %v1341 = vpop.xlane.xlu0 %1340
        %v1342 = vadd.f32 %v1294, %v1296
        %1343 = vadd.xlane.f32.xlu0 %v1342
        %v1344 = vpop.xlane.xlu0 %1343
        %v1345 = vmul.f32 %v866, 2.0
        %v1346 = vmul.f32 %v868, 2.0
        %v1347 = vmul.f32 %v870, 2.0
        %v1348 = vmul.f32 %v872, 2.0
        %v1349 = vmul.f32 %v876, 2.0
        %v1350 = vmul.f32 %v878, 2.0
        %v1351 = vmul.f32 %v880, 2.0
        %v1352 = vmul.f32 %v882, 2.0
        %v1353 = vmul.f32 %v886, 2.0
        %v1354 = vmul.f32 %v888, 2.0
        %v1355 = vmul.f32 %v890, 2.0
        %v1356 = vmul.f32 %v892, 2.0
        %v1357 = vmul.f32 %v896, 2.0
        %v1358 = vmul.f32 %v898, 2.0
        %v1359 = vmul.f32 %v900, 2.0
        %v1360 = vmul.f32 %v902, 2.0
        %v1361 = vmul.f32 %v906, 2.0
        %v1362 = vmul.f32 %v908, 2.0
        %v1363 = vmul.f32 %v910, 2.0
        %v1364 = vmul.f32 %v912, 2.0
        %v1365 = vmul.f32 %v916, 2.0
        %v1366 = vmul.f32 %v918, 2.0
        %v1367 = vmul.f32 %v920, 2.0
        %v1368 = vmul.f32 %v922, 2.0
        %v1369 = vmul.f32 %v926, 2.0
        %v1370 = vmul.f32 %v928, 2.0
        %v1371 = vmul.f32 %v930, 2.0
        %v1372 = vmul.f32 %v932, 2.0
        %v1373 = vmul.f32 %v936, 2.0
        %v1374 = vmul.f32 %v938, 2.0
        %v1375 = vmul.f32 %v940, 2.0
        %v1376 = vmul.f32 %v942, 2.0
        %v1377 = vmul.f32 %v1345, 1.442695
        %v1378 = vpow.pop %v1377
        %v1379 = vmul.f32 %v1346, 1.442695
        %v1380 = vpow.pop %v1379
        %v1381 = vmul.f32 %v1347, 1.442695
        %v1382 = vpow.pop %v1381
        %v1383 = vmul.f32 %v1348, 1.442695
        %v1384 = vpow.pop %v1383
        %v1385 = vmul.f32 %v1349, 1.442695
        %v1386 = vpow.pop %v1385
        %v1387 = vmul.f32 %v1350, 1.442695
        %v1388 = vpow.pop %v1387
        %v1389 = vmul.f32 %v1351, 1.442695
        %v1390 = vpow.pop %v1389
        %v1391 = vmul.f32 %v1352, 1.442695
        %v1392 = vpow.pop %v1391
        %v1393 = vmul.f32 %v1353, 1.442695
        %v1394 = vpow.pop %v1393
        %v1395 = vmul.f32 %v1354, 1.442695
        %v1396 = vpow.pop %v1395
        %v1397 = vmul.f32 %v1355, 1.442695
        %v1398 = vpow.pop %v1397
        %v1399 = vmul.f32 %v1356, 1.442695
        %v1400 = vpow.pop %v1399
        %v1401 = vmul.f32 %v1357, 1.442695
        %v1402 = vpow.pop %v1401
        %v1403 = vmul.f32 %v1358, 1.442695
        %v1404 = vpow.pop %v1403
        %v1405 = vmul.f32 %v1359, 1.442695
        %v1406 = vpow.pop %v1405
        %v1407 = vmul.f32 %v1360, 1.442695
        %v1408 = vpow.pop %v1407
        %v1409 = vmul.f32 %v1361, 1.442695
        %v1410 = vpow.pop %v1409
        %v1411 = vmul.f32 %v1362, 1.442695
        %v1412 = vpow.pop %v1411
        %v1413 = vmul.f32 %v1363, 1.442695
        %v1414 = vpow.pop %v1413
        %v1415 = vmul.f32 %v1364, 1.442695
        %v1416 = vpow.pop %v1415
        %v1417 = vmul.f32 %v1365, 1.442695
        %v1418 = vpow.pop %v1417
        %v1419 = vmul.f32 %v1366, 1.442695
        %v1420 = vpow.pop %v1419
        %v1421 = vmul.f32 %v1367, 1.442695
        %v1422 = vpow.pop %v1421
        %v1423 = vmul.f32 %v1368, 1.442695
        %v1424 = vpow.pop %v1423
        %v1425 = vmul.f32 %v1369, 1.442695
        %v1426 = vpow.pop %v1425
        %v1427 = vmul.f32 %v1370, 1.442695
        %v1428 = vpow.pop %v1427
        %v1429 = vmul.f32 %v1371, 1.442695
        %v1430 = vpow.pop %v1429
        %v1431 = vmul.f32 %v1372, 1.442695
        %v1432 = vpow.pop %v1431
        %v1433 = vmul.f32 %v1373, 1.442695
        %v1434 = vpow.pop %v1433
        %v1435 = vmul.f32 %v1374, 1.442695
        %v1436 = vpow.pop %v1435
        %v1437 = vmul.f32 %v1375, 1.442695
        %v1438 = vpow.pop %v1437
        %v1439 = vmul.f32 %v1376, 1.442695
        %v1440 = vpow.pop %v1439
        %v1441 = vadd.f32 %v1378, %v1380
        %1442 = vadd.xlane.f32.xlu0 %v1441
        %v1443 = vpop.xlane.xlu0 %1442
        %v1444 = vadd.f32 %v1382, %v1384
        %1445 = vadd.xlane.f32.xlu0 %v1444
        %v1446 = vpop.xlane.xlu0 %1445
        %v1447 = vadd.f32 %v1386, %v1388
        %1448 = vadd.xlane.f32.xlu0 %v1447
        %v1449 = vpop.xlane.xlu0 %1448
        %v1450 = vadd.f32 %v1390, %v1392
        %1451 = vadd.xlane.f32.xlu0 %v1450
        %v1452 = vpop.xlane.xlu0 %1451
        %v1453 = vadd.f32 %v1394, %v1396
        %1454 = vadd.xlane.f32.xlu0 %v1453
        %v1455 = vpop.xlane.xlu0 %1454
        %v1456 = vadd.f32 %v1398, %v1400
        %1457 = vadd.xlane.f32.xlu0 %v1456
        %v1458 = vpop.xlane.xlu0 %1457
        %v1459 = vadd.f32 %v1402, %v1404
        %1460 = vadd.xlane.f32.xlu0 %v1459
        %v1461 = vpop.xlane.xlu0 %1460
        %v1462 = vadd.f32 %v1406, %v1408
        %1463 = vadd.xlane.f32.xlu0 %v1462
        %v1464 = vpop.xlane.xlu0 %1463
        %v1465 = vadd.f32 %v1410, %v1412
        %1466 = vadd.xlane.f32.xlu0 %v1465
        %v1467 = vpop.xlane.xlu0 %1466
        %v1468 = vadd.f32 %v1414, %v1416
        %1469 = vadd.xlane.f32.xlu0 %v1468
        %v1470 = vpop.xlane.xlu0 %1469
        %v1471 = vadd.f32 %v1418, %v1420
        %1472 = vadd.xlane.f32.xlu0 %v1471
        %v1473 = vpop.xlane.xlu0 %1472
        %v1474 = vadd.f32 %v1422, %v1424
        %1475 = vadd.xlane.f32.xlu0 %v1474
        %v1476 = vpop.xlane.xlu0 %1475
        %v1477 = vadd.f32 %v1426, %v1428
        %1478 = vadd.xlane.f32.xlu0 %v1477
        %v1479 = vpop.xlane.xlu0 %1478
        %v1480 = vadd.f32 %v1430, %v1432
        %1481 = vadd.xlane.f32.xlu0 %v1480
        %v1482 = vpop.xlane.xlu0 %1481
        %v1483 = vadd.f32 %v1434, %v1436
        %1484 = vadd.xlane.f32.xlu0 %v1483
        %v1485 = vpop.xlane.xlu0 %1484
        %v1486 = vadd.f32 %v1438, %v1440
        %1487 = vadd.xlane.f32.xlu0 %v1486
        %v1488 = vpop.xlane.xlu0 %1487
        %v1489 = vmul.f32 %v979, 2.0
        %v1490 = vmul.f32 %v981, 2.0
        %v1491 = vmul.f32 %v983, 2.0
        %v1492 = vmul.f32 %v985, 2.0
        %v1493 = vmul.f32 %v989, 2.0
        %v1494 = vmul.f32 %v991, 2.0
        %v1495 = vmul.f32 %v993, 2.0
        %v1496 = vmul.f32 %v995, 2.0
        %v1497 = vmul.f32 %v999, 2.0
        %v1498 = vmul.f32 %v1001, 2.0
        %v1499 = vmul.f32 %v1003, 2.0
        %v1500 = vmul.f32 %v1005, 2.0
        %v1501 = vmul.f32 %v1009, 2.0
        %v1502 = vmul.f32 %v1011, 2.0
        %v1503 = vmul.f32 %v1013, 2.0
        %v1504 = vmul.f32 %v1015, 2.0
        %v1505 = vmul.f32 %v1019, 2.0
        %v1506 = vmul.f32 %v1021, 2.0
        %v1507 = vmul.f32 %v1023, 2.0
        %v1508 = vmul.f32 %v1025, 2.0
        %v1509 = vmul.f32 %v1029, 2.0
        %v1510 = vmul.f32 %v1031, 2.0
        %v1511 = vmul.f32 %v1033, 2.0
        %v1512 = vmul.f32 %v1035, 2.0
        %v1513 = vmul.f32 %v1039, 2.0
        %v1514 = vmul.f32 %v1041, 2.0
        %v1515 = vmul.f32 %v1043, 2.0
        %v1516 = vmul.f32 %v1045, 2.0
        %v1517 = vmul.f32 %v1049, 2.0
        %v1518 = vmul.f32 %v1051, 2.0
        %v1519 = vmul.f32 %v1053, 2.0
        %v1520 = vmul.f32 %v1055, 2.0
        %v1521 = vmul.f32 %v1489, 1.442695
        %v1522 = vpow.pop %v1521
        %v1523 = vmul.f32 %v1490, 1.442695
        %v1524 = vpow.pop %v1523
        %v1525 = vmul.f32 %v1491, 1.442695
        %v1526 = vpow.pop %v1525
        %v1527 = vmul.f32 %v1492, 1.442695
        %v1528 = vpow.pop %v1527
        %v1529 = vmul.f32 %v1493, 1.442695
        %v1530 = vpow.pop %v1529
        %v1531 = vmul.f32 %v1494, 1.442695
        %v1532 = vpow.pop %v1531
        %v1533 = vmul.f32 %v1495, 1.442695
        %v1534 = vpow.pop %v1533
        %v1535 = vmul.f32 %v1496, 1.442695
        %v1536 = vpow.pop %v1535
        %v1537 = vmul.f32 %v1497, 1.442695
        %v1538 = vpow.pop %v1537
        %v1539 = vmul.f32 %v1498, 1.442695
        %v1540 = vpow.pop %v1539
        %v1541 = vmul.f32 %v1499, 1.442695
        %v1542 = vpow.pop %v1541
        %v1543 = vmul.f32 %v1500, 1.442695
        %v1544 = vpow.pop %v1543
        %v1545 = vmul.f32 %v1501, 1.442695
        %v1546 = vpow.pop %v1545
        %v1547 = vmul.f32 %v1502, 1.442695
        %v1548 = vpow.pop %v1547
        %v1549 = vmul.f32 %v1503, 1.442695
        %v1550 = vpow.pop %v1549
        %v1551 = vmul.f32 %v1504, 1.442695
        %v1552 = vpow.pop %v1551
        %v1553 = vmul.f32 %v1505, 1.442695
        %v1554 = vpow.pop %v1553
        %v1555 = vmul.f32 %v1506, 1.442695
        %v1556 = vpow.pop %v1555
        %v1557 = vmul.f32 %v1507, 1.442695
        %v1558 = vpow.pop %v1557
        %v1559 = vmul.f32 %v1508, 1.442695
        %v1560 = vpow.pop %v1559
        %v1561 = vmul.f32 %v1509, 1.442695
        %v1562 = vpow.pop %v1561
        %v1563 = vmul.f32 %v1510, 1.442695
        %v1564 = vpow.pop %v1563
        %v1565 = vmul.f32 %v1511, 1.442695
        %v1566 = vpow.pop %v1565
        %v1567 = vmul.f32 %v1512, 1.442695
        %v1568 = vpow.pop %v1567
        %v1569 = vmul.f32 %v1513, 1.442695
        %v1570 = vpow.pop %v1569
        %v1571 = vmul.f32 %v1514, 1.442695
        %v1572 = vpow.pop %v1571
        %v1573 = vmul.f32 %v1515, 1.442695
        %v1574 = vpow.pop %v1573
        %v1575 = vmul.f32 %v1516, 1.442695
        %v1576 = vpow.pop %v1575
        %v1577 = vmul.f32 %v1517, 1.442695
        %v1578 = vpow.pop %v1577
        %v1579 = vmul.f32 %v1518, 1.442695
        %v1580 = vpow.pop %v1579
        %v1581 = vmul.f32 %v1519, 1.442695
        %v1582 = vpow.pop %v1581
        %v1583 = vmul.f32 %v1520, 1.442695
        %v1584 = vpow.pop %v1583
        %v1585 = vadd.f32 %v1522, %v1524
        %1586 = vadd.xlane.f32.xlu0 %v1585
        %v1587 = vpop.xlane.xlu0 %1586
        %v1588 = vadd.f32 %v1526, %v1528
        %1589 = vadd.xlane.f32.xlu0 %v1588
        %v1590 = vpop.xlane.xlu0 %1589
        %v1591 = vadd.f32 %v1530, %v1532
        %1592 = vadd.xlane.f32.xlu0 %v1591
        %v1593 = vpop.xlane.xlu0 %1592
        %v1594 = vadd.f32 %v1534, %v1536
        %1595 = vadd.xlane.f32.xlu0 %v1594
        %v1596 = vpop.xlane.xlu0 %1595
        %v1597 = vadd.f32 %v1538, %v1540
        %1598 = vadd.xlane.f32.xlu0 %v1597
        %v1599 = vpop.xlane.xlu0 %1598
        %v1600 = vadd.f32 %v1542, %v1544
        %1601 = vadd.xlane.f32.xlu0 %v1600
        %v1602 = vpop.xlane.xlu0 %1601
        %v1603 = vadd.f32 %v1546, %v1548
        %1604 = vadd.xlane.f32.xlu0 %v1603
        %v1605 = vpop.xlane.xlu0 %1604
        %v1606 = vadd.f32 %v1550, %v1552
        %1607 = vadd.xlane.f32.xlu0 %v1606
        %v1608 = vpop.xlane.xlu0 %1607
        %v1609 = vadd.f32 %v1554, %v1556
        %1610 = vadd.xlane.f32.xlu0 %v1609
        %v1611 = vpop.xlane.xlu0 %1610
        %v1612 = vadd.f32 %v1558, %v1560
        %1613 = vadd.xlane.f32.xlu0 %v1612
        %v1614 = vpop.xlane.xlu0 %1613
        %v1615 = vadd.f32 %v1562, %v1564
        %1616 = vadd.xlane.f32.xlu0 %v1615
        %v1617 = vpop.xlane.xlu0 %1616
        %v1618 = vadd.f32 %v1566, %v1568
        %1619 = vadd.xlane.f32.xlu0 %v1618
        %v1620 = vpop.xlane.xlu0 %1619
        %v1621 = vadd.f32 %v1570, %v1572
        %1622 = vadd.xlane.f32.xlu0 %v1621
        %v1623 = vpop.xlane.xlu0 %1622
        %v1624 = vadd.f32 %v1574, %v1576
        %1625 = vadd.xlane.f32.xlu0 %v1624
        %v1626 = vpop.xlane.xlu0 %1625
        %v1627 = vadd.f32 %v1578, %v1580
        %1628 = vadd.xlane.f32.xlu0 %v1627
        %v1629 = vpop.xlane.xlu0 %1628
        %v1630 = vadd.f32 %v1582, %v1584
        %1631 = vadd.xlane.f32.xlu0 %v1630
        %v1632 = vpop.xlane.xlu0 %1631
        %v1633 = vunpack.c.l.bf16 %v221
        %v1634 = vunpack.c.l.bf16 %v222
        %v1635 = vunpack.c.l.bf16 %v223
        %v1636 = vunpack.c.l.bf16 %v224
        %v1637 = vunpack.c.l.bf16 %v225
        %v1638 = vunpack.c.l.bf16 %v226
        %v1639 = vunpack.c.l.bf16 %v227
        %v1640 = vunpack.c.l.bf16 %v228
        %v1641 = vunpack.c.l.bf16 %v229
        %v1642 = vunpack.c.l.bf16 %v230
        %v1643 = vunpack.c.l.bf16 %v231
        %v1644 = vunpack.c.l.bf16 %v232
        %v1645 = vunpack.c.l.bf16 %v233
        %v1646 = vunpack.c.l.bf16 %v234
        %v1647 = vunpack.c.l.bf16 %v235
        %v1648 = vunpack.c.l.bf16 %v236
        %v1649 = vunpack.c.l.bf16 %v237
        %v1650 = vunpack.c.l.bf16 %v238
        %v1651 = vunpack.c.l.bf16 %v239
        %v1652 = vunpack.c.l.bf16 %v240
        %v1653 = vunpack.c.l.bf16 %v241
        %v1654 = vunpack.c.l.bf16 %v242
        %v1655 = vunpack.c.l.bf16 %v243
        %v1656 = vunpack.c.l.bf16 %v244
        %v1657 = vunpack.c.l.bf16 %v245
        %v1658 = vunpack.c.l.bf16 %v246
        %v1659 = vunpack.c.l.bf16 %v247
        %v1660 = vunpack.c.l.bf16 %v248
        %v1661 = vunpack.c.l.bf16 %v249
        %v1662 = vunpack.c.l.bf16 %v250
        %v1663 = vunpack.c.l.bf16 %v251
        %v1664 = vunpack.c.l.bf16 %v252
        %v1665 = vmul.f32 %v1633, %v1649
        %v1666 = vmul.f32 %v1634, %v1650
        %v1667 = vmul.f32 %v1635, %v1651
        %v1668 = vmul.f32 %v1636, %v1652
        %v1669 = vmul.f32 %v1637, %v1653
        %v1670 = vmul.f32 %v1638, %v1654
        %v1671 = vmul.f32 %v1639, %v1655
        %v1672 = vmul.f32 %v1640, %v1656
        %v1673 = vmul.f32 %v1641, %v1657
        %v1674 = vmul.f32 %v1642, %v1658
        %v1675 = vmul.f32 %v1643, %v1659
        %v1676 = vmul.f32 %v1644, %v1660
        %v1677 = vmul.f32 %v1645, %v1661
        %v1678 = vmul.f32 %v1646, %v1662
        %v1679 = vmul.f32 %v1647, %v1663
        %v1680 = vmul.f32 %v1648, %v1664
        %1681 = vadd.xlane.f32.xlu0 %v1665
        %v1682 = vpop.xlane.xlu0 %1681
        %1683 = vadd.xlane.f32.xlu0 %v1666
        %v1684 = vpop.xlane.xlu0 %1683
        %1685 = vadd.xlane.f32.xlu0 %v1667
        %v1686 = vpop.xlane.xlu0 %1685
        %1687 = vadd.xlane.f32.xlu0 %v1668
        %v1688 = vpop.xlane.xlu0 %1687
        %1689 = vadd.xlane.f32.xlu0 %v1669
        %v1690 = vpop.xlane.xlu0 %1689
        %1691 = vadd.xlane.f32.xlu0 %v1670
        %v1692 = vpop.xlane.xlu0 %1691
        %1693 = vadd.xlane.f32.xlu0 %v1671
        %v1694 = vpop.xlane.xlu0 %1693
        %1695 = vadd.xlane.f32.xlu0 %v1672
        %v1696 = vpop.xlane.xlu0 %1695
        %1697 = vadd.xlane.f32.xlu0 %v1673
        %v1698 = vpop.xlane.xlu0 %1697
        %1699 = vadd.xlane.f32.xlu0 %v1674
        %v1700 = vpop.xlane.xlu0 %1699
        %1701 = vadd.xlane.f32.xlu0 %v1675
        %v1702 = vpop.xlane.xlu0 %1701
        %1703 = vadd.xlane.f32.xlu0 %v1676
        %v1704 = vpop.xlane.xlu0 %1703
        %1705 = vadd.xlane.f32.xlu0 %v1677
        %v1706 = vpop.xlane.xlu0 %1705
        %1707 = vadd.xlane.f32.xlu0 %v1678
        %v1708 = vpop.xlane.xlu0 %1707
        %1709 = vadd.xlane.f32.xlu0 %v1679
        %v1710 = vpop.xlane.xlu0 %1709
        %1711 = vadd.xlane.f32.xlu0 %v1680
        %v1712 = vpop.xlane.xlu0 %1711
        %v1713 = vmul.f32 %v1682, 2.0
        %v1714 = vmul.f32 %v1684, 2.0
        %v1715 = vmul.f32 %v1686, 2.0
        %v1716 = vmul.f32 %v1688, 2.0
        %v1717 = vmul.f32 %v1690, 2.0
        %v1718 = vmul.f32 %v1692, 2.0
        %v1719 = vmul.f32 %v1694, 2.0
        %v1720 = vmul.f32 %v1696, 2.0
        %v1721 = vmul.f32 %v1698, 2.0
        %v1722 = vmul.f32 %v1700, 2.0
        %v1723 = vmul.f32 %v1702, 2.0
        %v1724 = vmul.f32 %v1704, 2.0
        %v1725 = vmul.f32 %v1706, 2.0
        %v1726 = vmul.f32 %v1708, 2.0
        %v1727 = vmul.f32 %v1710, 2.0
        %v1728 = vmul.f32 %v1712, 2.0
        %v1729 = vadd.f32 %v1155, %v1299
        %v1730 = vadd.f32 %v1158, %v1302
        %v1731 = vadd.f32 %v1161, %v1305
        %v1732 = vadd.f32 %v1164, %v1308
        %v1733 = vadd.f32 %v1167, %v1311
        %v1734 = vadd.f32 %v1170, %v1314
        %v1735 = vadd.f32 %v1173, %v1317
        %v1736 = vadd.f32 %v1176, %v1320
        %v1737 = vadd.f32 %v1179, %v1323
        %v1738 = vadd.f32 %v1182, %v1326
        %v1739 = vadd.f32 %v1185, %v1329
        %v1740 = vadd.f32 %v1188, %v1332
        %v1741 = vadd.f32 %v1191, %v1335
        %v1742 = vadd.f32 %v1194, %v1338
        %v1743 = vadd.f32 %v1197, %v1341
        %v1744 = vadd.f32 %v1200, %v1344
        %v1745 = vsub.f32 %v1729, 7.389056
        %v1746 = vsub.f32 %v1730, 7.389056
        %v1747 = vsub.f32 %v1731, 7.389056
        %v1748 = vsub.f32 %v1732, 7.389056
        %v1749 = vsub.f32 %v1733, 7.389056
        %v1750 = vsub.f32 %v1734, 7.389056
        %v1751 = vsub.f32 %v1735, 7.389056
        %v1752 = vsub.f32 %v1736, 7.389056
        %v1753 = vsub.f32 %v1737, 7.389056
        %v1754 = vsub.f32 %v1738, 7.389056
        %v1755 = vsub.f32 %v1739, 7.389056
        %v1756 = vsub.f32 %v1740, 7.389056
        %v1757 = vsub.f32 %v1741, 7.389056
        %v1758 = vsub.f32 %v1742, 7.389056
        %v1759 = vsub.f32 %v1743, 7.389056
        %v1760 = vsub.f32 %v1744, 7.389056
        %v1761 = vlog2.pop %v1745
        %v1762 = vmul.f32 %v1761, 0.6931472
        %v1763 = vlog2.pop %v1746
        %v1764 = vmul.f32 %v1763, 0.6931472
        %v1765 = vlog2.pop %v1747
        %v1766 = vmul.f32 %v1765, 0.6931472
        %v1767 = vlog2.pop %v1748
        %v1768 = vmul.f32 %v1767, 0.6931472
        %v1769 = vlog2.pop %v1749
        %v1770 = vmul.f32 %v1769, 0.6931472
        %v1771 = vlog2.pop %v1750
        %v1772 = vmul.f32 %v1771, 0.6931472
        %v1773 = vlog2.pop %v1751
        %v1774 = vmul.f32 %v1773, 0.6931472
        %v1775 = vlog2.pop %v1752
        %v1776 = vmul.f32 %v1775, 0.6931472
        %v1777 = vlog2.pop %v1753
        %v1778 = vmul.f32 %v1777, 0.6931472
        %v1779 = vlog2.pop %v1754
        %v1780 = vmul.f32 %v1779, 0.6931472
        %v1781 = vlog2.pop %v1755
        %v1782 = vmul.f32 %v1781, 0.6931472
        %v1783 = vlog2.pop %v1756
        %v1784 = vmul.f32 %v1783, 0.6931472
        %v1785 = vlog2.pop %v1757
        %v1786 = vmul.f32 %v1785, 0.6931472
        %v1787 = vlog2.pop %v1758
        %v1788 = vmul.f32 %v1787, 0.6931472
        %v1789 = vlog2.pop %v1759
        %v1790 = vmul.f32 %v1789, 0.6931472
        %v1791 = vlog2.pop %v1760
        %v1792 = vmul.f32 %v1791, 0.6931472
        %v1793 = vsub.f32 %v1762, %v1713
        %v1794 = vsub.f32 %v1764, %v1714
        %v1795 = vsub.f32 %v1766, %v1715
        %v1796 = vsub.f32 %v1768, %v1716
        %v1797 = vsub.f32 %v1770, %v1717
        %v1798 = vsub.f32 %v1772, %v1718
        %v1799 = vsub.f32 %v1774, %v1719
        %v1800 = vsub.f32 %v1776, %v1720
        %v1801 = vsub.f32 %v1778, %v1721
        %v1802 = vsub.f32 %v1780, %v1722
        %v1803 = vsub.f32 %v1782, %v1723
        %v1804 = vsub.f32 %v1784, %v1724
        %v1805 = vsub.f32 %v1786, %v1725
        %v1806 = vsub.f32 %v1788, %v1726
        %v1807 = vsub.f32 %v1790, %v1727
        %v1808 = vsub.f32 %v1792, %v1728
        %v1809 = vadd.f32 %v1443, %v1587
        %v1810 = vadd.f32 %v1446, %v1590
        %v1811 = vadd.f32 %v1449, %v1593
        %v1812 = vadd.f32 %v1452, %v1596
        %v1813 = vadd.f32 %v1455, %v1599
        %v1814 = vadd.f32 %v1458, %v1602
        %v1815 = vadd.f32 %v1461, %v1605
        %v1816 = vadd.f32 %v1464, %v1608
        %v1817 = vadd.f32 %v1467, %v1611
        %v1818 = vadd.f32 %v1470, %v1614
        %v1819 = vadd.f32 %v1473, %v1617
        %v1820 = vadd.f32 %v1476, %v1620
        %v1821 = vadd.f32 %v1479, %v1623
        %v1822 = vadd.f32 %v1482, %v1626
        %v1823 = vadd.f32 %v1485, %v1629
        %v1824 = vadd.f32 %v1488, %v1632
        %v1825 = vsub.f32 %v1809, 7.389056
        %v1826 = vsub.f32 %v1810, 7.389056
        %v1827 = vsub.f32 %v1811, 7.389056
        %v1828 = vsub.f32 %v1812, 7.389056
        %v1829 = vsub.f32 %v1813, 7.389056
        %v1830 = vsub.f32 %v1814, 7.389056
        %v1831 = vsub.f32 %v1815, 7.389056
        %v1832 = vsub.f32 %v1816, 7.389056
        %v1833 = vsub.f32 %v1817, 7.389056
        %v1834 = vsub.f32 %v1818, 7.389056
        %v1835 = vsub.f32 %v1819, 7.389056
        %v1836 = vsub.f32 %v1820, 7.389056
        %v1837 = vsub.f32 %v1821, 7.389056
        %v1838 = vsub.f32 %v1822, 7.389056
        %v1839 = vsub.f32 %v1823, 7.389056
        %v1840 = vsub.f32 %v1824, 7.389056
        %v1841 = vlog2.pop %v1825
        %v1842 = vmul.f32 %v1841, 0.6931472
        %v1843 = vlog2.pop %v1826
        %v1844 = vmul.f32 %v1843, 0.6931472
        %v1845 = vlog2.pop %v1827
        %v1846 = vmul.f32 %v1845, 0.6931472
        %v1847 = vlog2.pop %v1828
        %v1848 = vmul.f32 %v1847, 0.6931472
        %v1849 = vlog2.pop %v1829
        %v1850 = vmul.f32 %v1849, 0.6931472
        %v1851 = vlog2.pop %v1830
        %v1852 = vmul.f32 %v1851, 0.6931472
        %v1853 = vlog2.pop %v1831
        %v1854 = vmul.f32 %v1853, 0.6931472
        %v1855 = vlog2.pop %v1832
        %v1856 = vmul.f32 %v1855, 0.6931472
        %v1857 = vlog2.pop %v1833
        %v1858 = vmul.f32 %v1857, 0.6931472
        %v1859 = vlog2.pop %v1834
        %v1860 = vmul.f32 %v1859, 0.6931472
        %v1861 = vlog2.pop %v1835
        %v1862 = vmul.f32 %v1861, 0.6931472
        %v1863 = vlog2.pop %v1836
        %v1864 = vmul.f32 %v1863, 0.6931472
        %v1865 = vlog2.pop %v1837
        %v1866 = vmul.f32 %v1865, 0.6931472
        %v1867 = vlog2.pop %v1838
        %v1868 = vmul.f32 %v1867, 0.6931472
        %v1869 = vlog2.pop %v1839
        %v1870 = vmul.f32 %v1869, 0.6931472
        %v1871 = vlog2.pop %v1840
        %v1872 = vmul.f32 %v1871, 0.6931472
        %v1873 = vsub.f32 %v1842, %v1713
        %v1874 = vsub.f32 %v1844, %v1714
        %v1875 = vsub.f32 %v1846, %v1715
        %v1876 = vsub.f32 %v1848, %v1716
        %v1877 = vsub.f32 %v1850, %v1717
        %v1878 = vsub.f32 %v1852, %v1718
        %v1879 = vsub.f32 %v1854, %v1719
        %v1880 = vsub.f32 %v1856, %v1720
        %v1881 = vsub.f32 %v1858, %v1721
        %v1882 = vsub.f32 %v1860, %v1722
        %v1883 = vsub.f32 %v1862, %v1723
        %v1884 = vsub.f32 %v1864, %v1724
        %v1885 = vsub.f32 %v1866, %v1725
        %v1886 = vsub.f32 %v1868, %v1726
        %v1887 = vsub.f32 %v1870, %v1727
        %v1888 = vsub.f32 %v1872, %v1728
        %s1889 = sld [smem:[#allocation2]]
        %vm1890 = vcmask 7168
        %v1891 = vsel %vm1890, %v1793, 0.0
        %v1892 = vsel %vm1890, %v1794, 0.0
        %v1893 = vadd.f32 %v1891, %v1892
        %v1894 = vsel %vm1890, %v1795, 0.0
        %v1895 = vadd.f32 %v1893, %v1894
        %v1896 = vsel %vm1890, %v1796, 0.0
        %v1897 = vadd.f32 %v1895, %v1896
        %v1898 = vsel %vm1890, %v1797, 0.0
        %v1899 = vadd.f32 %v1897, %v1898
        %v1900 = vsel %vm1890, %v1798, 0.0
        %v1901 = vadd.f32 %v1899, %v1900
        %v1902 = vsel %vm1890, %v1799, 0.0
        %v1903 = vadd.f32 %v1901, %v1902
        %v1904 = vsel %vm1890, %v1800, 0.0
        %v1905 = vadd.f32 %v1903, %v1904
        %v1906 = vsel %vm1890, %v1801, 0.0
        %v1907 = vadd.f32 %v1905, %v1906
        %v1908 = vsel %vm1890, %v1802, 0.0
        %v1909 = vadd.f32 %v1907, %v1908
        %v1910 = vsel %vm1890, %v1803, 0.0
        %v1911 = vadd.f32 %v1909, %v1910
        %v1912 = vsel %vm1890, %v1804, 0.0
        %v1913 = vadd.f32 %v1911, %v1912
        %v1914 = vsel %vm1890, %v1805, 0.0
        %v1915 = vadd.f32 %v1913, %v1914
        %v1916 = vsel %vm1890, %v1806, 0.0
        %v1917 = vadd.f32 %v1915, %v1916
        %v1918 = vsel %vm1890, %v1807, 0.0
        %v1919 = vadd.f32 %v1917, %v1918
        %v1920 = vsel %vm1890, %v1808, 0.0
        %v1921 = vadd.f32 %v1919, %v1920
        %1922 = vadd.xlane.f32.xlu0 %v1921
        %v1923 = vpop.xlane.xlu0 %1922
        %v1924 = vrot.slane %v1923, 4
        %v1925 = vadd.f32 %v1923, %v1924
        %v1926 = vrot.slane %v1925, 2
        %v1927 = vadd.f32 %v1925, %v1926
        %v1928 = vrot.slane %v1927, 1
        %v1929 = vadd.f32 %v1927, %v1928
        %s1930 = vtos %v1929
        %s1931 = smul.f32 %s1930, 0.5
        %v1932 = vsel %vm1890, %v1873, 0.0
        %v1933 = vsel %vm1890, %v1874, 0.0
        %v1934 = vadd.f32 %v1932, %v1933
        %v1935 = vsel %vm1890, %v1875, 0.0
        %v1936 = vadd.f32 %v1934, %v1935
        %v1937 = vsel %vm1890, %v1876, 0.0
        %v1938 = vadd.f32 %v1936, %v1937
        %v1939 = vsel %vm1890, %v1877, 0.0
        %v1940 = vadd.f32 %v1938, %v1939
        %v1941 = vsel %vm1890, %v1878, 0.0
        %v1942 = vadd.f32 %v1940, %v1941
        %v1943 = vsel %vm1890, %v1879, 0.0
        %v1944 = vadd.f32 %v1942, %v1943
        %v1945 = vsel %vm1890, %v1880, 0.0
        %v1946 = vadd.f32 %v1944, %v1945
        %v1947 = vsel %vm1890, %v1881, 0.0
        %v1948 = vadd.f32 %v1946, %v1947
        %v1949 = vsel %vm1890, %v1882, 0.0
        %v1950 = vadd.f32 %v1948, %v1949
        %v1951 = vsel %vm1890, %v1883, 0.0
        %v1952 = vadd.f32 %v1950, %v1951
        %v1953 = vsel %vm1890, %v1884, 0.0
        %v1954 = vadd.f32 %v1952, %v1953
        %v1955 = vsel %vm1890, %v1885, 0.0
        %v1956 = vadd.f32 %v1954, %v1955
        %v1957 = vsel %vm1890, %v1886, 0.0
        %v1958 = vadd.f32 %v1956, %v1957
        %v1959 = vsel %vm1890, %v1887, 0.0
        %v1960 = vadd.f32 %v1958, %v1959
        %v1961 = vsel %vm1890, %v1888, 0.0
        %v1962 = vadd.f32 %v1960, %v1961
        %1963 = vadd.xlane.f32.xlu0 %v1962
        %v1964 = vpop.xlane.xlu0 %1963
        %v1965 = vrot.slane %v1964, 4
        %v1966 = vadd.f32 %v1964, %v1965
        %v1967 = vrot.slane %v1966, 2
        %v1968 = vadd.f32 %v1966, %v1967
        %v1969 = vrot.slane %v1968, 1
        %v1970 = vadd.f32 %v1968, %v1969
        %s1971 = vtos %v1970
        %s1972 = smul.f32 %s1971, 0.5
        %s1973 = sadd.f32 %s1931, %s1972
        %s1974 = sadd.f32 %s1889, %s1973
        %s1975 = scalar_lea.smem [#allocation2], 0
        %1976 = sst [smem:[%s1975]] %s1974
        %p1977 = scmp.eq.s32.totalorder %s16, 1
        // Predicated region
        $region41: #{cl_hgcn_forward.5} parent=35 // pred_check
          %p1978 = pneg %p1977
        $region42: #{cl_hgcn_forward.5} parent=35 // pred_check_branch
          %1980 = sbr.rel (%p1978) target = $region44
        $region43: #{cl_hgcn_forward.5} parent=35 // pred_region
          %s1981 = sld [smem:[#allocation2]]
          %s1982 = scalar_lea.smem [#allocation3], 0
          %1983 = sst [smem:[%s1982]] %s1981
        $region44: #{cl_hgcn_forward.5} parent=35 // pred_fallthru
          _
        // Predicated region
        $region45: #{cl_hgcn_forward.5} parent=35 // pred_check
          %p1984 = pneg %p123
        $region46: #{cl_hgcn_forward.5} parent=35 // pred_check_branch
          %1986 = sbr.rel (%p1984) target = $region48
        $region47: #{cl_hgcn_forward.5} parent=35 // pred_region
          %s1988 = ssub.s32 16, 16
          %1989 = vsyncadd [#allocation4], %s1988
          %1992 = dma.smem_to_hbm [#allocation3], 16, %s4, [#allocation4]
        $region48: #{cl_hgcn_forward.5} parent=35 // pred_fallthru
          _
        // Predicated region
        $region49: #{cl_hgcn_forward.5} parent=35 // pred_check
          %p1993 = pneg %p123
        $region50: #{cl_hgcn_forward.5} parent=35 // pred_check_branch
          %1995 = sbr.rel (%p1993) target = $region52
        $region51: #{cl_hgcn_forward.5} parent=35 // pred_region
          %1996 = dma.done [#allocation4], 16
        $region52: #{cl_hgcn_forward.5} parent=35 // pred_fallthru
          _
        %1997 = sfence
      $region36: #{cl_hgcn_forward.5} parent=5 // pred_fallthru
        _
      %p1998 = scmp.le.s32.totalorder 2, %s11
      // Predicated region
      $region53: #{cl_hgcn_forward.5} parent=5 // pred_check
        %p1999 = pneg %p1998
      $region54: #{cl_hgcn_forward.5} parent=5 // pred_check_branch
        %2001 = sbr.rel (%p1999) target = $region56
      $region55: #{cl_hgcn_forward.5} parent=5 // pred_region
        %s2002 = ssub.s32 %s11, 2
      $region56: #{cl_hgcn_forward.5} parent=5 // pred_fallthru
        _
    $region6: #{cl_hgcn_forward.5} parent=1 // loop_footer
      %s15 = sadd.s32 1, %s11
    $region7: #{cl_hgcn_forward.5} parent=1 // loop_footer_branch
      %10 = sbr.rel target = $region3
    $region8: #{cl_hgcn_forward.5} parent=1 // loop_exit
      _
    %2003 = vsyncpa [#allocation4], 1
    %s2004 = scalar_lea.sflag [#allocation4], 1
    %2005 = vsyncpa %s2004, 1

</llo_original>
